<compile_context>
chip_gen: v6e
topology: v6e:2x2x1
jax: 0.10.0
libtpu: 0.0.40
codegen_flags: <defaults>
</compile_context>

<pallas_src>
import jax
import jax.numpy as jnp
from jax import lax
from jax.experimental import pallas as pl
from jax.experimental.pallas import tpu as pltpu

COUT_PAD = 128  # lane-dense conv output channel padding


# --------------------------------------------------------------------------- #
# Fused conv3x3 (padding=1) + bias + ReLU + 2x2 max-pool
# --------------------------------------------------------------------------- #
def _conv3x3_relu_pool_kernel(x_ref, w_ref, b_ref, o_ref, acc_ref):
    """x_ref:  (4, TR, Kp) bf16 im2col rows; slab q holds window-position q of
               each 2x2 pooling window, row = (image, ho, wo).
       w_ref:  (Kp, 128) bf16 filter taps flattened on K, Cout padded to 128.
       b_ref:  (1, 128) f32 bias.
       o_ref:  (TR, 128) bf16 pooled activations (lane-dense).
       acc_ref:(TR, 128) f32 VMEM scratch holding the running window max."""
    acc_ref[...] = jnp.dot(x_ref[0], w_ref[...],
                           preferred_element_type=jnp.float32)
    for q in range(1, 4):
        acc_ref[...] = jnp.maximum(
            acc_ref[...],
            jnp.dot(x_ref[q], w_ref[...], preferred_element_type=jnp.float32))
    # bias-add + ReLU commute with the (monotone) window max -> single epilogue.
    o_ref[...] = jnp.maximum(acc_ref[...] + b_ref[...], 0.0).astype(o_ref.dtype)


def conv3x3_relu_pool(x_nhwc, w_hwio, b, *, row_tile=512):
    """Same-padded 3x3 conv + bias + ReLU + 2x2 max-pool.
    x: (B, H, W, >=Cin) (extra channels are previous-layer padding and ignored),
    w: (3, 3, Cin, Cout) with Cout <= 128.
    Returns (B, H//2, W//2, 128) bf16 with channels >= Cout zero-padded."""
    B, H, W, _ = x_nhwc.shape
    _, _, Cin, Cout = w_hwio.shape
    Ho, Wo = H // 2, W // 2

    # ---- host-side layout plumbing (data movement only, no compute) -------- #
    # TODO(synk): im2col construction / pool-order transpose / channel slicing is
    # plain-JAX data movement between the Pallas calls, not inside a kernel.
    x = x_nhwc[..., :Cin].astype(jnp.bfloat16)
    xp = jnp.pad(x, ((0, 0), (1, 1), (1, 1), (0, 0)))          # conv padding = 1
    taps = [xp[:, ky:ky + H, kx:kx + W, :] for ky in range(3) for kx in range(3)]
    patches = jnp.stack(taps, axis=3).reshape(B, H, W, 9 * Cin)
    # Reorder rows so the 4 members of each 2x2 pooling window form 4 slabs.
    patches = patches.reshape(B, Ho, 2, Wo, 2, 9 * Cin)
    xq = jnp.transpose(patches, (2, 4, 0, 1, 3, 5)).reshape(4, B * Ho * Wo, 9 * Cin)

    K = 9 * Cin
    Kp = pl.cdiv(K, 8) * 8
    rows = B * Ho * Wo
    TR = max(8, (min(row_tile, rows) // 8) * 8)                 # row tile (mult of 8)
    rows_p = pl.cdiv(rows, TR) * TR
    xq = jnp.pad(xq, ((0, 0), (0, rows_p - rows), (0, Kp - K)))

    wf = jnp.pad(w_hwio.reshape(K, Cout),
                 ((0, Kp - K), (0, COUT_PAD - Cout))).astype(jnp.bfloat16)
    bf = jnp.pad(b.reshape(1, Cout),
                 ((0, 0), (0, COUT_PAD - Cout))).astype(jnp.float32)

    cost = pl.CostEstimate(
        flops=2 * 4 * rows_p * Kp * COUT_PAD,
        transcendentals=0,
        bytes_accessed=xq.size * 2 + wf.size * 2 + bf.size * 4
        + rows_p * COUT_PAD * 2)

    out = pl.pallas_call(
        _conv3x3_relu_pool_kernel,
        out_shape=jax.ShapeDtypeStruct((rows_p, COUT_PAD), jnp.bfloat16),
        grid=(rows_p // TR,),                                   # tiles of pooled rows
        in_specs=[
            pl.BlockSpec((4, TR, Kp), lambda i: (0, i, 0)),     # pipelined per step
            pl.BlockSpec((Kp, COUT_PAD), lambda i: (0, 0)),     # weights VMEM-resident
            pl.BlockSpec((1, COUT_PAD), lambda i: (0, 0)),
        ],
        out_specs=pl.BlockSpec((TR, COUT_PAD), lambda i: (i, 0)),  # lane-dense output
        scratch_shapes=[pltpu.VMEM((TR, COUT_PAD), jnp.float32)],
        compiler_params=pltpu.CompilerParams(
            dimension_semantics=("parallel",)),
        cost_estimate=cost,
    )(xq, wf, bf)
    return out[:rows].reshape(B, Ho, Wo, COUT_PAD)


# --------------------------------------------------------------------------- #
# Fused fc1 + ReLU + (dropout: identity in eval) + fc2
# --------------------------------------------------------------------------- #
def _mlp_kernel(x_ref, w1_ref, b1_ref, w2_ref, b2_ref, o_ref, h_ref):
    # fc1 on the MXU: bf16 inputs, f32 accumulation; bias/ReLU in f32.
    h = jnp.dot(x_ref[...], w1_ref[...], preferred_element_type=jnp.float32)
    h_ref[...] = jnp.maximum(h + b1_ref[...], 0.0).astype(h_ref.dtype)
    # TODO(synk): nn.Dropout(0.1) is identity in eval mode; training-mode dropout
    # would use pltpu.prng_seed / pltpu.prng_random_bits here.
    out = jnp.dot(h_ref[...], w2_ref[...], preferred_element_type=jnp.float32)
    o_ref[...] = (out + b2_ref[...]).astype(o_ref.dtype)


def _default_fc_batch_tile():
    """Generation-aware FC batch tile: v5e/v6e (128 MiB VMEM) -> 2048; v7x (64 MiB)
    and anything unknown -> 1024."""
    try:
        kind = jax.devices()[0].device_kind.lower()
    except Exception:
        return 1024
    return 2048 if ("v5" in kind or "v6" in kind) else 1024


def mlp_forward(x2d, w1, b1, w2, b2, *, batch_tile=None):
    """x2d: (B, D); weights stored (in_features, out_features)."""
    B, D = x2d.shape
    NH = w1.shape[1]
    C = w2.shape[1]
    if batch_tile is None:
        batch_tile = _default_fc_batch_tile()

    # Lane-dense padding and balanced batch tiles (no near-empty trailing tile).
    Dp = pl.cdiv(D, 128) * 128
    Cp = pl.cdiv(C, 128) * 128
    n_tiles = pl.cdiv(B, batch_tile)
    TB = max(8, pl.cdiv(pl.cdiv(B, n_tiles), 8) * 8)
    Bp = pl.cdiv(B, TB) * TB

    # bf16 operands halve HBM<->VMEM DMA; matmuls still accumulate in f32.
    x_p = jnp.zeros((Bp, Dp), jnp.bfloat16).at[:B, :D].set(
        x2d.astype(jnp.bfloat16))
    w1_p = jnp.zeros((Dp, NH), jnp.bfloat16).at[:D, :].set(
        w1.astype(jnp.bfloat16))
    w2_p = jnp.zeros((NH, Cp), jnp.bfloat16).at[:, :C].set(
        w2.astype(jnp.bfloat16))
    b1_p = b1.reshape(1, NH).astype(jnp.float32)
    b2_p = jnp.zeros((1, Cp), jnp.float32).at[:, :C].set(
        b2.reshape(1, C).astype(jnp.float32))

    cost = pl.CostEstimate(
        flops=2 * Bp * Dp * NH + 2 * Bp * NH * Cp,
        transcendentals=0,
        bytes_accessed=(x_p.size + w1_p.size + w2_p.size) * 2
        + (b1_p.size + b2_p.size + Bp * Cp) * 4)

    out = pl.pallas_call(
        _mlp_kernel,
        out_shape=jax.ShapeDtypeStruct((Bp, Cp), jnp.float32),
        grid=(Bp // TB,),                                   # tile the batch
        in_specs=[
            pl.BlockSpec((TB, Dp), lambda i: (i, 0)),       # pipelined per step
            pl.BlockSpec((Dp, NH), lambda i: (0, 0)),       # weights VMEM-resident
            pl.BlockSpec((1, NH), lambda i: (0, 0)),
            pl.BlockSpec((NH, Cp), lambda i: (0, 0)),
            pl.BlockSpec((1, Cp), lambda i: (0, 0)),
        ],
        out_specs=pl.BlockSpec((TB, Cp), lambda i: (i, 0)),  # lane-dense output
        scratch_shapes=[pltpu.VMEM((TB, NH), jnp.bfloat16)],  # hidden activations
        compiler_params=pltpu.CompilerParams(
            dimension_semantics=("parallel",),               # megacore sharding
            vmem_limit_bytes=48 * 1024 * 1024,
        ),
        cost_estimate=cost,
    )(x_p, w1_p, b1_p, w2_p, b2_p)
    return out[:B, :C]


# --------------------------------------------------------------------------- #
# Full forward pass + plain-JAX reference
# --------------------------------------------------------------------------- #
def cnn_forward(x_nchw, params, *, conv_row_tile=512, fc_batch_tile=None):
    x = jnp.transpose(x_nchw, (0, 2, 3, 1)).astype(jnp.bfloat16)   # NCHW -> NHWC
    x = conv3x3_relu_pool(x, params["w_c1"], params["b_c1"], row_tile=conv_row_tile)
    x = conv3x3_relu_pool(x, params["w_c2"], params["b_c2"], row_tile=conv_row_tile)
    x = conv3x3_relu_pool(x, params["w_c3"], params["b_c3"], row_tile=conv_row_tile)
    B = x.shape[0]
    # Flatten in PyTorch's NCHW order (x.view(B, -1) after the NCHW conv stack).
    feat = jnp.transpose(x, (0, 3, 1, 2)).reshape(B, -1)
    return mlp_forward(feat, params["w_fc1"], params["b_fc1"],
                       params["w_fc2"], params["b_fc2"], batch_tile=fc_batch_tile)


def maxpool2x2(x_nhwc):
    B, H, W, C = x_nhwc.shape
    return jnp.max(x_nhwc.reshape(B, H // 2, 2, W // 2, 2, C), axis=(2, 4))


def cnn_reference(x_nchw, params):
    """Pure-JAX float32 reference (no Pallas), same semantics as the PyTorch module."""
    x = jnp.transpose(x_nchw, (0, 2, 3, 1)).astype(jnp.float32)
    for wk, bk in (("w_c1", "b_c1"), ("w_c2", "b_c2"), ("w_c3", "b_c3")):
        x = lax.conv_general_dilated(
            x, params[wk], window_strides=(1, 1), padding="SAME",
            dimension_numbers=("NHWC", "HWIO", "NHWC"))
        x = maxpool2x2(jnp.maximum(x + params[bk], 0.0))
    B = x.shape[0]
    feat = jnp.transpose(x, (0, 3, 1, 2)).reshape(B, -1)
    h = jnp.maximum(feat @ params["w_fc1"] + params["b_fc1"], 0.0)
    return h @ params["w_fc2"] + params["b_fc2"]


if __name__ == "__main__":
    B, CIN, S = 2, 3, 32          # CIFAR-10 sized input: (2, 3, 32, 32)
    NUM_CLASSES = 10
    key = jax.random.PRNGKey(0)
    ks = jax.random.split(key, 11)

    def w_init(k, shape, fan_in):
        return jax.random.normal(k, shape, jnp.float32) / jnp.sqrt(float(fan_in))

    def b_init(k, n):
        return 0.01 * jax.random.normal(k, (n,), jnp.float32)

    x = jax.random.normal(ks[0], (B, CIN, S, S), jnp.float32)
    params = {
        # conv weights stored HWIO; fc weights stored (in_features, out_features)
        # (i.e. transposed relative to PyTorch's storage conventions).
        "w_c1": w_init(ks[1], (3, 3, 3, 32), 3 * 9),      "b_c1": b_init(ks[2], 32),
        "w_c2": w_init(ks[3], (3, 3, 32, 64), 32 * 9),    "b_c2": b_init(ks[4], 64),
        "w_c3": w_init(ks[5], (3, 3, 64, 128), 64 * 9),   "b_c3": b_init(ks[6], 128),
        "w_fc1": w_init(ks[7], (128 * 4 * 4, 512), 2048), "b_fc1": b_init(ks[8], 512),
        "w_fc2": w_init(ks[9], (512, NUM_CLASSES), 512),  "b_fc2": b_init(ks[10], NUM_CLASSES),
    }

    logits = cnn_forward(x, params)
    jax.block_until_ready(logits)
    assert logits.shape == (B, NUM_CLASSES)

    ref = cnn_reference(x, params)
    err = float(jnp.max(jnp.abs(logits - ref)))
    # bf16 operands through all conv + FC matmuls (f32 accumulation) introduce a
    # few-percent error on O(1) logits vs the f32 reference.
    assert jnp.allclose(logits, ref, atol=1e-1, rtol=1e-1), f"max abs err {err}"

    print("KERNEL_OK")
</pallas_src>

<mosaic_0001>
module attributes {stable_mosaic.version = 11 : i64} {
  func.func @_conv3x3_relu_pool_kernel(%arg0: i32, %arg1: memref<4x512x32xbf16, #tpu.memory_space<vmem>>, %arg2: memref<32x128xbf16, #tpu.memory_space<vmem>>, %arg3: memref<1x128xf32, #tpu.memory_space<vmem>>, %arg4: memref<512x128xbf16, #tpu.memory_space<vmem>>, %arg5: memref<512x128xf32, #tpu.memory_space<vmem>>) attributes {dimension_semantics = [#tpu.dimension_semantics<parallel>], iteration_bounds = array<i64: 1>, scalar_prefetch = 0 : i64, scratch_operands = 1 : i64, tpu.core_type = #tpu.core_type<tc>, window_params = [{transform_indices = @transform_0, window_bounds = array<i64: 4, 512, 32>}, {pipeline_mode = #tpu.pipeline_mode<synchronous>, transform_indices = @transform_1, window_bounds = array<i64: 32, 128>}, {pipeline_mode = #tpu.pipeline_mode<synchronous>, transform_indices = @transform_2, window_bounds = array<i64: 1, 128>}, {transform_indices = @transform_3, window_bounds = array<i64: 512, 128>}]} {
    %c0 = arith.constant 0 : index
    %c0_0 = arith.constant 0 : index
    %c0_1 = arith.constant 0 : index
    %0 = vector.load %arg1[%c0, %c0_0, %c0_1] : memref<4x512x32xbf16, #tpu.memory_space<vmem>>, vector<1x512x32xbf16>
    %1 = vector.shape_cast %0 : vector<1x512x32xbf16> to vector<512x32xbf16>
    %c0_2 = arith.constant 0 : index
    %c0_3 = arith.constant 0 : index
    %2 = vector.load %arg2[%c0_2, %c0_3] : memref<32x128xbf16, #tpu.memory_space<vmem>>, vector<32x128xbf16>
    %cst = arith.constant dense<0.000000e+00> : vector<512x128xf32>
    %3 = tpu.matmul %1, %2, %cst {dimension_numbers = #tpu.dot_dimension_numbers<[1], [0], [0], [1], [0, 0, 1, 1], [], []>} : vector<512x32xbf16>, vector<32x128xbf16>, vector<512x128xf32> -> vector<512x128xf32>
    %c0_4 = arith.constant 0 : index
    %c0_5 = arith.constant 0 : index
    %4 = vector.load %arg5[%c0_4, %c0_5] : memref<512x128xf32, #tpu.memory_space<vmem>>, vector<512x128xf32>
    tpu.vector_store %arg5[%c0_4, %c0_5], %3 {strides = array<i32>} : memref<512x128xf32, #tpu.memory_space<vmem>>, vector<512x128xf32>,
    %c0_6 = arith.constant 0 : index
    %c0_7 = arith.constant 0 : index
    %5 = vector.load %arg5[%c0_6, %c0_7] : memref<512x128xf32, #tpu.memory_space<vmem>>, vector<512x128xf32>
    %c1 = arith.constant 1 : index
    %c0_8 = arith.constant 0 : index
    %c0_9 = arith.constant 0 : index
    %6 = vector.load %arg1[%c1, %c0_8, %c0_9] : memref<4x512x32xbf16, #tpu.memory_space<vmem>>, vector<1x512x32xbf16>
    %7 = vector.shape_cast %6 : vector<1x512x32xbf16> to vector<512x32xbf16>
    %c0_10 = arith.constant 0 : index
    %c0_11 = arith.constant 0 : index
    %8 = vector.load %arg2[%c0_10, %c0_11] : memref<32x128xbf16, #tpu.memory_space<vmem>>, vector<32x128xbf16>
    %cst_12 = arith.constant dense<0.000000e+00> : vector<512x128xf32>
    %9 = tpu.matmul %7, %8, %cst_12 {dimension_numbers = #tpu.dot_dimension_numbers<[1], [0], [0], [1], [0, 0, 1, 1], [], []>} : vector<512x32xbf16>, vector<32x128xbf16>, vector<512x128xf32> -> vector<512x128xf32>
    %10 = arith.maximumf %5, %9 : vector<512x128xf32>
    %c0_13 = arith.constant 0 : index
    %c0_14 = arith.constant 0 : index
    %11 = vector.load %arg5[%c0_13, %c0_14] : memref<512x128xf32, #tpu.memory_space<vmem>>, vector<512x128xf32>
    tpu.vector_store %arg5[%c0_13, %c0_14], %10 {strides = array<i32>} : memref<512x128xf32, #tpu.memory_space<vmem>>, vector<512x128xf32>,
    %c0_15 = arith.constant 0 : index
    %c0_16 = arith.constant 0 : index
    %12 = vector.load %arg5[%c0_15, %c0_16] : memref<512x128xf32, #tpu.memory_space<vmem>>, vector<512x128xf32>
    %c2 = arith.constant 2 : index
    %c0_17 = arith.constant 0 : index
    %c0_18 = arith.constant 0 : index
    %13 = vector.load %arg1[%c2, %c0_17, %c0_18] : memref<4x512x32xbf16, #tpu.memory_space<vmem>>, vector<1x512x32xbf16>
    %14 = vector.shape_cast %13 : vector<1x512x32xbf16> to vector<512x32xbf16>
    %c0_19 = arith.constant 0 : index
    %c0_20 = arith.constant 0 : index
    %15 = vector.load %arg2[%c0_19, %c0_20] : memref<32x128xbf16, #tpu.memory_space<vmem>>, vector<32x128xbf16>
    %cst_21 = arith.constant dense<0.000000e+00> : vector<512x128xf32>
    %16 = tpu.matmul %14, %15, %cst_21 {dimension_numbers = #tpu.dot_dimension_numbers<[1], [0], [0], [1], [0, 0, 1, 1], [], []>} : vector<512x32xbf16>, vector<32x128xbf16>, vector<512x128xf32> -> vector<512x128xf32>
    %17 = arith.maximumf %12, %16 : vector<512x128xf32>
    %c0_22 = arith.constant 0 : index
    %c0_23 = arith.constant 0 : index
    %18 = vector.load %arg5[%c0_22, %c0_23] : memref<512x128xf32, #tpu.memory_space<vmem>>, vector<512x128xf32>
    tpu.vector_store %arg5[%c0_22, %c0_23], %17 {strides = array<i32>} : memref<512x128xf32, #tpu.memory_space<vmem>>, vector<512x128xf32>,
    %c0_24 = arith.constant 0 : index
    %c0_25 = arith.constant 0 : index
    %19 = vector.load %arg5[%c0_24, %c0_25] : memref<512x128xf32, #tpu.memory_space<vmem>>, vector<512x128xf32>
    %c3 = arith.constant 3 : index
    %c0_26 = arith.constant 0 : index
    %c0_27 = arith.constant 0 : index
    %20 = vector.load %arg1[%c3, %c0_26, %c0_27] : memref<4x512x32xbf16, #tpu.memory_space<vmem>>, vector<1x512x32xbf16>
    %21 = vector.shape_cast %20 : vector<1x512x32xbf16> to vector<512x32xbf16>
    %c0_28 = arith.constant 0 : index
    %c0_29 = arith.constant 0 : index
    %22 = vector.load %arg2[%c0_28, %c0_29] : memref<32x128xbf16, #tpu.memory_space<vmem>>, vector<32x128xbf16>
    %cst_30 = arith.constant dense<0.000000e+00> : vector<512x128xf32>
    %23 = tpu.matmul %21, %22, %cst_30 {dimension_numbers = #tpu.dot_dimension_numbers<[1], [0], [0], [1], [0, 0, 1, 1], [], []>} : vector<512x32xbf16>, vector<32x128xbf16>, vector<512x128xf32> -> vector<512x128xf32>
    %24 = arith.maximumf %19, %23 : vector<512x128xf32>
    %c0_31 = arith.constant 0 : index
    %c0_32 = arith.constant 0 : index
    %25 = vector.load %arg5[%c0_31, %c0_32] : memref<512x128xf32, #tpu.memory_space<vmem>>, vector<512x128xf32>
    tpu.vector_store %arg5[%c0_31, %c0_32], %24 {strides = array<i32>} : memref<512x128xf32, #tpu.memory_space<vmem>>, vector<512x128xf32>,
    %c0_33 = arith.constant 0 : index
    %c0_34 = arith.constant 0 : index
    %26 = vector.load %arg5[%c0_33, %c0_34] : memref<512x128xf32, #tpu.memory_space<vmem>>, vector<512x128xf32>
    %c0_35 = arith.constant 0 : index
    %c0_36 = arith.constant 0 : index
    %27 = vector.load %arg3[%c0_35, %c0_36] : memref<1x128xf32, #tpu.memory_space<vmem>>, vector<1x128xf32>
    %28 = vector.broadcast %27 : vector<1x128xf32> to vector<512x128xf32>
    %29 = arith.addf %26, %28 : vector<512x128xf32>
    %cst_37 = arith.constant 0.000000e+00 : f32
    %30 = vector.broadcast %cst_37 : f32 to vector<512x128xf32>
    %31 = arith.maximumf %29, %30 : vector<512x128xf32>
    %32 = arith.truncf %31 : vector<512x128xf32> to vector<512x128xbf16>
    %c0_38 = arith.constant 0 : index
    %c0_39 = arith.constant 0 : index
    %33 = vector.load %arg4[%c0_38, %c0_39] : memref<512x128xbf16, #tpu.memory_space<vmem>>, vector<512x128xbf16>
    tpu.vector_store %arg4[%c0_38, %c0_39], %32 {strides = array<i32>} : memref<512x128xbf16, #tpu.memory_space<vmem>>, vector<512x128xbf16>,
    return
  }
  func.func @transform_0(%arg0: i32) -> (i32, i32, i32) {
    %c0_i32 = arith.constant 0 : i32
    %c0_i32_0 = arith.constant 0 : i32
    %c0_i32_1 = arith.constant 0 : i32
    return %c0_i32, %arg0, %c0_i32_0 : i32, i32, i32
  }
  func.func @transform_1(%arg0: i32) -> (i32, i32) {
    %c0_i32 = arith.constant 0 : i32
    %c0_i32_0 = arith.constant 0 : i32
    %c0_i32_1 = arith.constant 0 : i32
    return %c0_i32, %c0_i32_0 : i32, i32
  }
  func.func @transform_2(%arg0: i32) -> (i32, i32) {
    %c0_i32 = arith.constant 0 : i32
    %c0_i32_0 = arith.constant 0 : i32
    %c0_i32_1 = arith.constant 0 : i32
    return %c0_i32, %c0_i32_0 : i32, i32
  }
  func.func @transform_3(%arg0: i32) -> (i32, i32) {
    %c0_i32 = arith.constant 0 : i32
    %c0_i32_0 = arith.constant 0 : i32
    return %arg0, %c0_i32 : i32, i32
  }
}

</mosaic_0001>

<llo_original>
// kernel: tpu_custom_call.1
$region0: #{tpu_custom_call.1}
  #allocation0 [shape = 'u32[]', space=smem, size = 0x4, offset = 0x4, fixed_abs, tag = 'smem constant byte address 0x4 - core index']
  #allocation1 [shape = 'u32[144,128]{1,0:T(1,128)}', space=vmem, size = 0x12000, scoped, tag = 'internal scratch']
  #allocation2 [shape = 'f32[512,128]{1,0:T(8,128)}', space=vmem, size = 0x40000, scoped, tag = 'scratch operand']
  %s0 = inlined_call_operand.vmem [shape: bf16[4,512,32], index: 0, kind: input, shape index: {}]
  %s1 = inlined_call_operand.vmem [shape: bf16[32,128], index: 1, kind: input, shape index: {}]
  %s2 = inlined_call_operand.vmem [shape: f32[1,128], index: 2, kind: input, shape index: {}]
  %s3 = inlined_call_operand.hbm [shape: bf16[512,128], index: 3, kind: output, shape index: {}]
  %s4 = sld [smem:[#allocation0]]
  $region22: #{tpu_custom_call.1} parent=0
    _
  %s6 = ssub.s32 1, %s4
  %s7 = scalar_select 0, %s6, %s4
  $region1: #{tpu_custom_call.1} parent=0
    #allocation3 [shape = 'u8[131072]{0}', space=vmem, size = 0x20000, scoped, tag = 'output window, operand 0, single buffered']
    #allocation4 [shape = 's32[1]{0}', space=sflag, size = 0x4, scoped, tag = 'scoped memory for tpu_custom_call.1']
    %8 = vsyncpa [#allocation4], 0
    // Predicated region
    $region2: #{tpu_custom_call.1} parent=1 // pred_check
      _
    $region3: #{tpu_custom_call.1} parent=1 // pred_check_branch
      %10 = sbr.rel (0) target = $region5
    $region4: #{tpu_custom_call.1} parent=1 // pred_region
      _
    $region5: #{tpu_custom_call.1} parent=1 // pred_fallthru
      _
    // Predicated region
    $region6: #{tpu_custom_call.1} parent=1 // pred_check
      _
    $region7: #{tpu_custom_call.1} parent=1 // pred_check_branch
      %12 = sbr.rel (0) target = $region9
    $region8: #{tpu_custom_call.1} parent=1 // pred_region
      _
    $region9: #{tpu_custom_call.1} parent=1 // pred_fallthru
      _
    // Predicated region
    $region10: #{tpu_custom_call.1} parent=1 // pred_check
      _
    $region11: #{tpu_custom_call.1} parent=1 // pred_check_branch
      %14 = sbr.rel (0) target = $region13
    $region12: #{tpu_custom_call.1} parent=1 // pred_region
      _
    $region13: #{tpu_custom_call.1} parent=1 // pred_fallthru
      _
    %v16 = vld [vmem:[%s0] sm:$0xf]
    %v17 = vld [vmem:[%s0 + $0x4] sm:$0xf]
    %v18 = vld [vmem:[%s0 + $0x8] sm:$0xf]
    %v19 = vld [vmem:[%s0 + $0xc] sm:$0xf]
    %v20 = vld [vmem:[%s0 + $0x10] sm:$0xf]
    %v21 = vld [vmem:[%s0 + $0x14] sm:$0xf]
    %v22 = vld [vmem:[%s0 + $0x18] sm:$0xf]
    %v23 = vld [vmem:[%s0 + $0x1c] sm:$0xf]
    %v24 = vld [vmem:[%s0 + $0x20] sm:$0xf]
    %v25 = vld [vmem:[%s0 + $0x24] sm:$0xf]
    %v26 = vld [vmem:[%s0 + $0x28] sm:$0xf]
    %v27 = vld [vmem:[%s0 + $0x2c] sm:$0xf]
    %v28 = vld [vmem:[%s0 + $0x30] sm:$0xf]
    %v29 = vld [vmem:[%s0 + $0x34] sm:$0xf]
    %v30 = vld [vmem:[%s0 + $0x38] sm:$0xf]
    %v31 = vld [vmem:[%s0 + $0x3c] sm:$0xf]
    %v32 = vld [vmem:[%s0 + $0x40] sm:$0xf]
    %v33 = vld [vmem:[%s0 + $0x44] sm:$0xf]
    %v34 = vld [vmem:[%s0 + $0x48] sm:$0xf]
    %v35 = vld [vmem:[%s0 + $0x4c] sm:$0xf]
    %v36 = vld [vmem:[%s0 + $0x50] sm:$0xf]
    %v37 = vld [vmem:[%s0 + $0x54] sm:$0xf]
    %v38 = vld [vmem:[%s0 + $0x58] sm:$0xf]
    %v39 = vld [vmem:[%s0 + $0x5c] sm:$0xf]
    %v40 = vld [vmem:[%s0 + $0x60] sm:$0xf]
    %v41 = vld [vmem:[%s0 + $0x64] sm:$0xf]
    %v42 = vld [vmem:[%s0 + $0x68] sm:$0xf]
    %v43 = vld [vmem:[%s0 + $0x6c] sm:$0xf]
    %v44 = vld [vmem:[%s0 + $0x70] sm:$0xf]
    %v45 = vld [vmem:[%s0 + $0x74] sm:$0xf]
    %v46 = vld [vmem:[%s0 + $0x78] sm:$0xf]
    %v47 = vld [vmem:[%s0 + $0x7c] sm:$0xf]
    %v48 = vld [vmem:[%s0 + $0x80] sm:$0xf]
    %v49 = vld [vmem:[%s0 + $0x84] sm:$0xf]
    %v50 = vld [vmem:[%s0 + $0x88] sm:$0xf]
    %v51 = vld [vmem:[%s0 + $0x8c] sm:$0xf]
    %v52 = vld [vmem:[%s0 + $0x90] sm:$0xf]
    %v53 = vld [vmem:[%s0 + $0x94] sm:$0xf]
    %v54 = vld [vmem:[%s0 + $0x98] sm:$0xf]
    %v55 = vld [vmem:[%s0 + $0x9c] sm:$0xf]
    %v56 = vld [vmem:[%s0 + $0xa0] sm:$0xf]
    %v57 = vld [vmem:[%s0 + $0xa4] sm:$0xf]
    %v58 = vld [vmem:[%s0 + $0xa8] sm:$0xf]
    %v59 = vld [vmem:[%s0 + $0xac] sm:$0xf]
    %v60 = vld [vmem:[%s0 + $0xb0] sm:$0xf]
    %v61 = vld [vmem:[%s0 + $0xb4] sm:$0xf]
    %v62 = vld [vmem:[%s0 + $0xb8] sm:$0xf]
    %v63 = vld [vmem:[%s0 + $0xbc] sm:$0xf]
    %v64 = vld [vmem:[%s0 + $0xc0] sm:$0xf]
    %v65 = vld [vmem:[%s0 + $0xc4] sm:$0xf]
    %v66 = vld [vmem:[%s0 + $0xc8] sm:$0xf]
    %v67 = vld [vmem:[%s0 + $0xcc] sm:$0xf]
    %v68 = vld [vmem:[%s0 + $0xd0] sm:$0xf]
    %v69 = vld [vmem:[%s0 + $0xd4] sm:$0xf]
    %v70 = vld [vmem:[%s0 + $0xd8] sm:$0xf]
    %v71 = vld [vmem:[%s0 + $0xdc] sm:$0xf]
    %v72 = vld [vmem:[%s0 + $0xe0] sm:$0xf]
    %v73 = vld [vmem:[%s0 + $0xe4] sm:$0xf]
    %v74 = vld [vmem:[%s0 + $0xe8] sm:$0xf]
    %v75 = vld [vmem:[%s0 + $0xec] sm:$0xf]
    %v76 = vld [vmem:[%s0 + $0xf0] sm:$0xf]
    %v77 = vld [vmem:[%s0 + $0xf4] sm:$0xf]
    %v78 = vld [vmem:[%s0 + $0xf8] sm:$0xf]
    %v79 = vld [vmem:[%s0 + $0xfc] sm:$0xf]
    %v80 = vld [vmem:[%s1] sm:$0xf]
    %v81 = vld [vmem:[%s1 + $0x4] sm:$0xf]
    %v82 = vld [vmem:[%s1 + $0x8] sm:$0xf]
    %v83 = vld [vmem:[%s1 + $0xc] sm:$0xf]
    %v148 = vunpack.c.l.b16 %v16
    %v149 = vunpack.c.l.b16 %v17
    %v150 = vunpack.c.l.b16 %v18
    %v151 = vunpack.c.l.b16 %v19
    %v152 = vunpack.c.l.b16 %v20
    %v153 = vunpack.c.l.b16 %v21
    %v154 = vunpack.c.l.b16 %v22
    %v155 = vunpack.c.l.b16 %v23
    %v156 = vunpack.c.l.b16 %v24
    %v157 = vunpack.c.l.b16 %v25
    %v158 = vunpack.c.l.b16 %v26
    %v159 = vunpack.c.l.b16 %v27
    %v160 = vunpack.c.l.b16 %v28
    %v161 = vunpack.c.l.b16 %v29
    %v162 = vunpack.c.l.b16 %v30
    %v163 = vunpack.c.l.b16 %v31
    %v164 = vunpack.c.l.b16 %v32
    %v165 = vunpack.c.l.b16 %v33
    %v166 = vunpack.c.l.b16 %v34
    %v167 = vunpack.c.l.b16 %v35
    %v168 = vunpack.c.l.b16 %v36
    %v169 = vunpack.c.l.b16 %v37
    %v170 = vunpack.c.l.b16 %v38
    %v171 = vunpack.c.l.b16 %v39
    %v172 = vunpack.c.l.b16 %v40
    %v173 = vunpack.c.l.b16 %v41
    %v174 = vunpack.c.l.b16 %v42
    %v175 = vunpack.c.l.b16 %v43
    %v176 = vunpack.c.l.b16 %v44
    %v177 = vunpack.c.l.b16 %v45
    %v178 = vunpack.c.l.b16 %v46
    %v179 = vunpack.c.l.b16 %v47
    %v180 = vunpack.c.l.b16 %v48
    %v181 = vunpack.c.l.b16 %v49
    %v182 = vunpack.c.l.b16 %v50
    %v183 = vunpack.c.l.b16 %v51
    %v184 = vunpack.c.l.b16 %v52
    %v185 = vunpack.c.l.b16 %v53
    %v186 = vunpack.c.l.b16 %v54
    %v187 = vunpack.c.l.b16 %v55
    %v188 = vunpack.c.l.b16 %v56
    %v189 = vunpack.c.l.b16 %v57
    %v190 = vunpack.c.l.b16 %v58
    %v191 = vunpack.c.l.b16 %v59
    %v192 = vunpack.c.l.b16 %v60
    %v193 = vunpack.c.l.b16 %v61
    %v194 = vunpack.c.l.b16 %v62
    %v195 = vunpack.c.l.b16 %v63
    %v196 = vunpack.c.l.b16 %v64
    %v197 = vunpack.c.l.b16 %v65
    %v198 = vunpack.c.l.b16 %v66
    %v199 = vunpack.c.l.b16 %v67
    %v200 = vunpack.c.l.b16 %v68
    %v201 = vunpack.c.l.b16 %v69
    %v202 = vunpack.c.l.b16 %v70
    %v203 = vunpack.c.l.b16 %v71
    %v204 = vunpack.c.l.b16 %v72
    %v205 = vunpack.c.l.b16 %v73
    %v206 = vunpack.c.l.b16 %v74
    %v207 = vunpack.c.l.b16 %v75
    %v208 = vunpack.c.l.b16 %v76
    %v209 = vunpack.c.l.b16 %v77
    %v210 = vunpack.c.l.b16 %v78
    %v211 = vunpack.c.l.b16 %v79
    %v212 = vpack.c.b16 %v149, %v148
    %v213 = vpack.c.b16 %v151, %v150
    %v214 = vpack.c.b16 %v153, %v152
    %v215 = vpack.c.b16 %v155, %v154
    %v216 = vpack.c.b16 %v157, %v156
    %v217 = vpack.c.b16 %v159, %v158
    %v218 = vpack.c.b16 %v161, %v160
    %v219 = vpack.c.b16 %v163, %v162
    %v220 = vpack.c.b16 %v165, %v164
    %v221 = vpack.c.b16 %v167, %v166
    %v222 = vpack.c.b16 %v169, %v168
    %v223 = vpack.c.b16 %v171, %v170
    %v224 = vpack.c.b16 %v173, %v172
    %v225 = vpack.c.b16 %v175, %v174
    %v226 = vpack.c.b16 %v177, %v176
    %v227 = vpack.c.b16 %v179, %v178
    %v228 = vpack.c.b16 %v181, %v180
    %v229 = vpack.c.b16 %v183, %v182
    %v230 = vpack.c.b16 %v185, %v184
    %v231 = vpack.c.b16 %v187, %v186
    %v232 = vpack.c.b16 %v189, %v188
    %v233 = vpack.c.b16 %v191, %v190
    %v234 = vpack.c.b16 %v193, %v192
    %v235 = vpack.c.b16 %v195, %v194
    %v236 = vpack.c.b16 %v197, %v196
    %v237 = vpack.c.b16 %v199, %v198
    %v238 = vpack.c.b16 %v201, %v200
    %v239 = vpack.c.b16 %v203, %v202
    %v240 = vpack.c.b16 %v205, %v204
    %v241 = vpack.c.b16 %v207, %v206
    %v242 = vpack.c.b16 %v209, %v208
    %v243 = vpack.c.b16 %v211, %v210
    %v248 = vunpack.c.l.b16 %v80
    %v249 = vunpack.c.l.b16 %v81
    %v250 = vunpack.c.l.b16 %v82
    %v251 = vunpack.c.l.b16 %v83
    %v252 = vpack.c.b16 %v249, %v248
    %v253 = vpack.c.b16 %v251, %v250
    %vm256 = vcmask 261120
    %v258 = vsel %vm256, %v212, 0
    %v261 = vsel %vm256, %v213, 0
    %v264 = vsel %vm256, %v214, 0
    %v267 = vsel %vm256, %v215, 0
    %v270 = vsel %vm256, %v216, 0
    %v273 = vsel %vm256, %v217, 0
    %v276 = vsel %vm256, %v218, 0
    %v279 = vsel %vm256, %v219, 0
    %v282 = vsel %vm256, %v220, 0
    %v285 = vsel %vm256, %v221, 0
    %v288 = vsel %vm256, %v222, 0
    %v291 = vsel %vm256, %v223, 0
    %v294 = vsel %vm256, %v224, 0
    %v297 = vsel %vm256, %v225, 0
    %v300 = vsel %vm256, %v226, 0
    %v303 = vsel %vm256, %v227, 0
    %v306 = vsel %vm256, %v228, 0
    %v309 = vsel %vm256, %v229, 0
    %v312 = vsel %vm256, %v230, 0
    %v315 = vsel %vm256, %v231, 0
    %v318 = vsel %vm256, %v232, 0
    %v321 = vsel %vm256, %v233, 0
    %v324 = vsel %vm256, %v234, 0
    %v327 = vsel %vm256, %v235, 0
    %v330 = vsel %vm256, %v236, 0
    %v333 = vsel %vm256, %v237, 0
    %v336 = vsel %vm256, %v238, 0
    %v339 = vsel %vm256, %v239, 0
    %v342 = vsel %vm256, %v240, 0
    %v345 = vsel %vm256, %v241, 0
    %v348 = vsel %vm256, %v242, 0
    %v351 = vsel %vm256, %v243, 0
    %353 = vmatprep.subr.bf16.mxu0 0
    %354 = vmatpush1.bf16.msra.mxu0 0
    %355 = vmatprep.subr.bf16.mxu0 0
    %356 = vmatpush1.bf16.msra.mxu0 0
    %357 = vmatprep.subr.bf16.mxu0 0
    %358 = vmatpush1.bf16.msra.mxu0 0
    %359 = vmatprep.subr.bf16.mxu0 0
    %360 = vmatpush1.bf16.msra.mxu0 0
    %361 = vmatprep.subr.bf16.mxu0 0
    %362 = vmatpush1.bf16.msra.mxu0 0
    %363 = vmatprep.subr.bf16.mxu0 0
    %364 = vmatpush1.bf16.msra.mxu0 0
    %365 = vmatprep.subr.bf16.mxu0 0
    %366 = vmatpush1.bf16.msra.mxu0 %v253
    %367 = vmatprep.subr.bf16.mxu0 0
    %368 = vmatpush1.bf16.msra.mxu0 %v252
    %369 = vmatprep.subr.bf16.mxu0 0
    %370 = vmatpush2.bf16.msra.mxu0 0
    %371 = vmatprep.subr.bf16.mxu0 0
    %372 = vmatpush2.bf16.msra.mxu0 0
    %373 = vmatprep.subr.bf16.mxu0 0
    %374 = vmatpush2.bf16.msra.mxu0 0
    %375 = vmatprep.subr.bf16.mxu0 0
    %376 = vmatpush2.bf16.msra.mxu0 0
    %377 = vmatprep.subr.bf16.mxu0 0
    %378 = vmatpush2.bf16.msra.mxu0 0
    %379 = vmatprep.subr.bf16.mxu0 0
    %380 = vmatpush2.bf16.msra.mxu0 0
    %381 = vmatprep.subr.bf16.mxu0 0
    %382 = vmatpush2.bf16.msra.mxu0 0
    %383 = vmatprep.subr.bf16.mxu0 0
    %384 = vmatpush2.bf16.msra.mxu0 0
    %385 = vmatprep.mubr.bf16.mxu0 0
    %386 = vmatmul.mubr.bf16.gmra.mxu0 %v258
    %v387 = vpop.f32.mrf.mxu0
    %v388 = vadd.f32 0.0, %v387
    %v389 = vpop.f32.mrf.mxu0
    %v390 = vpop.f32.mrf.mxu0
    %v391 = vadd.f32 0.0, %v390
    %v392 = vpop.f32.mrf.mxu0
    %393 = vmatprep.mubr.bf16.mxu0 0
    %394 = vmatmul.mubr.bf16.gmra.mxu0 %v261
    %v395 = vpop.f32.mrf.mxu0
    %v396 = vadd.f32 0.0, %v395
    %v397 = vpop.f32.mrf.mxu0
    %v398 = vpop.f32.mrf.mxu0
    %v399 = vadd.f32 0.0, %v398
    %v400 = vpop.f32.mrf.mxu0
    %401 = vmatprep.mubr.bf16.mxu0 0
    %402 = vmatmul.mubr.bf16.gmra.mxu0 %v264
    %v403 = vpop.f32.mrf.mxu0
    %v404 = vadd.f32 0.0, %v403
    %v405 = vpop.f32.mrf.mxu0
    %v406 = vpop.f32.mrf.mxu0
    %v407 = vadd.f32 0.0, %v406
    %v408 = vpop.f32.mrf.mxu0
    %409 = vmatprep.mubr.bf16.mxu0 0
    %410 = vmatmul.mubr.bf16.gmra.mxu0 %v267
    %v411 = vpop.f32.mrf.mxu0
    %v412 = vadd.f32 0.0, %v411
    %v413 = vpop.f32.mrf.mxu0
    %v414 = vpop.f32.mrf.mxu0
    %v415 = vadd.f32 0.0, %v414
    %v416 = vpop.f32.mrf.mxu0
    %417 = vmatprep.mubr.bf16.mxu0 0
    %418 = vmatmul.mubr.bf16.gmra.mxu0 %v270
    %v419 = vpop.f32.mrf.mxu0
    %v420 = vadd.f32 0.0, %v419
    %v421 = vpop.f32.mrf.mxu0
    %v422 = vpop.f32.mrf.mxu0
    %v423 = vadd.f32 0.0, %v422
    %v424 = vpop.f32.mrf.mxu0
    %425 = vmatprep.mubr.bf16.mxu0 0
    %426 = vmatmul.mubr.bf16.gmra.mxu0 %v273
    %v427 = vpop.f32.mrf.mxu0
    %v428 = vadd.f32 0.0, %v427
    %v429 = vpop.f32.mrf.mxu0
    %v430 = vpop.f32.mrf.mxu0
    %v431 = vadd.f32 0.0, %v430
    %v432 = vpop.f32.mrf.mxu0
    %433 = vmatprep.mubr.bf16.mxu0 0
    %434 = vmatmul.mubr.bf16.gmra.mxu0 %v276
    %v435 = vpop.f32.mrf.mxu0
    %v436 = vadd.f32 0.0, %v435
    %v437 = vpop.f32.mrf.mxu0
    %v438 = vpop.f32.mrf.mxu0
    %v439 = vadd.f32 0.0, %v438
    %v440 = vpop.f32.mrf.mxu0
    %441 = vmatprep.mubr.bf16.mxu0 0
    %442 = vmatmul.mubr.bf16.gmra.mxu0 %v279
    %v443 = vpop.f32.mrf.mxu0
    %v444 = vadd.f32 0.0, %v443
    %v445 = vpop.f32.mrf.mxu0
    %v446 = vpop.f32.mrf.mxu0
    %v447 = vadd.f32 0.0, %v446
    %v448 = vpop.f32.mrf.mxu0
    %449 = vmatprep.mubr.bf16.mxu0 0
    %450 = vmatmul.mubr.bf16.gmra.mxu0 %v282
    %v451 = vpop.f32.mrf.mxu0
    %v452 = vadd.f32 0.0, %v451
    %v453 = vpop.f32.mrf.mxu0
    %v454 = vpop.f32.mrf.mxu0
    %v455 = vadd.f32 0.0, %v454
    %v456 = vpop.f32.mrf.mxu0
    %457 = vmatprep.mubr.bf16.mxu0 0
    %458 = vmatmul.mubr.bf16.gmra.mxu0 %v285
    %v459 = vpop.f32.mrf.mxu0
    %v460 = vadd.f32 0.0, %v459
    %v461 = vpop.f32.mrf.mxu0
    %v462 = vpop.f32.mrf.mxu0
    %v463 = vadd.f32 0.0, %v462
    %v464 = vpop.f32.mrf.mxu0
    %465 = vmatprep.mubr.bf16.mxu0 0
    %466 = vmatmul.mubr.bf16.gmra.mxu0 %v288
    %v467 = vpop.f32.mrf.mxu0
    %v468 = vadd.f32 0.0, %v467
    %v469 = vpop.f32.mrf.mxu0
    %v470 = vpop.f32.mrf.mxu0
    %v471 = vadd.f32 0.0, %v470
    %v472 = vpop.f32.mrf.mxu0
    %473 = vmatprep.mubr.bf16.mxu0 0
    %474 = vmatmul.mubr.bf16.gmra.mxu0 %v291
    %v475 = vpop.f32.mrf.mxu0
    %v476 = vadd.f32 0.0, %v475
    %v477 = vpop.f32.mrf.mxu0
    %v478 = vpop.f32.mrf.mxu0
    %v479 = vadd.f32 0.0, %v478
    %v480 = vpop.f32.mrf.mxu0
    %481 = vmatprep.mubr.bf16.mxu0 0
    %482 = vmatmul.mubr.bf16.gmra.mxu0 %v294
    %v483 = vpop.f32.mrf.mxu0
    %v484 = vadd.f32 0.0, %v483
    %v485 = vpop.f32.mrf.mxu0
    %v486 = vpop.f32.mrf.mxu0
    %v487 = vadd.f32 0.0, %v486
    %v488 = vpop.f32.mrf.mxu0
    %489 = vmatprep.mubr.bf16.mxu0 0
    %490 = vmatmul.mubr.bf16.gmra.mxu0 %v297
    %v491 = vpop.f32.mrf.mxu0
    %v492 = vadd.f32 0.0, %v491
    %v493 = vpop.f32.mrf.mxu0
    %v494 = vpop.f32.mrf.mxu0
    %v495 = vadd.f32 0.0, %v494
    %v496 = vpop.f32.mrf.mxu0
    %497 = vmatprep.mubr.bf16.mxu0 0
    %498 = vmatmul.mubr.bf16.gmra.mxu0 %v300
    %v499 = vpop.f32.mrf.mxu0
    %v500 = vadd.f32 0.0, %v499
    %v501 = vpop.f32.mrf.mxu0
    %v502 = vpop.f32.mrf.mxu0
    %v503 = vadd.f32 0.0, %v502
    %v504 = vpop.f32.mrf.mxu0
    %505 = vmatprep.mubr.bf16.mxu0 0
    %506 = vmatmul.mubr.bf16.gmra.mxu0 %v303
    %v507 = vpop.f32.mrf.mxu0
    %v508 = vadd.f32 0.0, %v507
    %v509 = vpop.f32.mrf.mxu0
    %v510 = vpop.f32.mrf.mxu0
    %v511 = vadd.f32 0.0, %v510
    %v512 = vpop.f32.mrf.mxu0
    %513 = vmatprep.mubr.bf16.mxu0 0
    %514 = vmatmul.mubr.bf16.gmra.mxu0 %v306
    %v515 = vpop.f32.mrf.mxu0
    %v516 = vadd.f32 0.0, %v515
    %v517 = vpop.f32.mrf.mxu0
    %v518 = vpop.f32.mrf.mxu0
    %v519 = vadd.f32 0.0, %v518
    %v520 = vpop.f32.mrf.mxu0
    %521 = vmatprep.mubr.bf16.mxu0 0
    %522 = vmatmul.mubr.bf16.gmra.mxu0 %v309
    %v523 = vpop.f32.mrf.mxu0
    %v524 = vadd.f32 0.0, %v523
    %v525 = vpop.f32.mrf.mxu0
    %v526 = vpop.f32.mrf.mxu0
    %v527 = vadd.f32 0.0, %v526
    %v528 = vpop.f32.mrf.mxu0
    %529 = vmatprep.mubr.bf16.mxu0 0
    %530 = vmatmul.mubr.bf16.gmra.mxu0 %v312
    %v531 = vpop.f32.mrf.mxu0
    %v532 = vadd.f32 0.0, %v531
    %v533 = vpop.f32.mrf.mxu0
    %v534 = vpop.f32.mrf.mxu0
    %v535 = vadd.f32 0.0, %v534
    %v536 = vpop.f32.mrf.mxu0
    %537 = vmatprep.mubr.bf16.mxu0 0
    %538 = vmatmul.mubr.bf16.gmra.mxu0 %v315
    %v539 = vpop.f32.mrf.mxu0
    %v540 = vadd.f32 0.0, %v539
    %v541 = vpop.f32.mrf.mxu0
    %v542 = vpop.f32.mrf.mxu0
    %v543 = vadd.f32 0.0, %v542
    %v544 = vpop.f32.mrf.mxu0
    %545 = vmatprep.mubr.bf16.mxu0 0
    %546 = vmatmul.mubr.bf16.gmra.mxu0 %v318
    %v547 = vpop.f32.mrf.mxu0
    %v548 = vadd.f32 0.0, %v547
    %v549 = vpop.f32.mrf.mxu0
    %v550 = vpop.f32.mrf.mxu0
    %v551 = vadd.f32 0.0, %v550
    %v552 = vpop.f32.mrf.mxu0
    %553 = vmatprep.mubr.bf16.mxu0 0
    %554 = vmatmul.mubr.bf16.gmra.mxu0 %v321
    %v555 = vpop.f32.mrf.mxu0
    %v556 = vadd.f32 0.0, %v555
    %v557 = vpop.f32.mrf.mxu0
    %v558 = vpop.f32.mrf.mxu0
    %v559 = vadd.f32 0.0, %v558
    %v560 = vpop.f32.mrf.mxu0
    %561 = vmatprep.mubr.bf16.mxu0 0
    %562 = vmatmul.mubr.bf16.gmra.mxu0 %v324
    %v563 = vpop.f32.mrf.mxu0
    %v564 = vadd.f32 0.0, %v563
    %v565 = vpop.f32.mrf.mxu0
    %v566 = vpop.f32.mrf.mxu0
    %v567 = vadd.f32 0.0, %v566
    %v568 = vpop.f32.mrf.mxu0
    %569 = vmatprep.mubr.bf16.mxu0 0
    %570 = vmatmul.mubr.bf16.gmra.mxu0 %v327
    %v571 = vpop.f32.mrf.mxu0
    %v572 = vadd.f32 0.0, %v571
    %v573 = vpop.f32.mrf.mxu0
    %v574 = vpop.f32.mrf.mxu0
    %v575 = vadd.f32 0.0, %v574
    %v576 = vpop.f32.mrf.mxu0
    %577 = vmatprep.mubr.bf16.mxu0 0
    %578 = vmatmul.mubr.bf16.gmra.mxu0 %v330
    %v579 = vpop.f32.mrf.mxu0
    %v580 = vadd.f32 0.0, %v579
    %v581 = vpop.f32.mrf.mxu0
    %v582 = vpop.f32.mrf.mxu0
    %v583 = vadd.f32 0.0, %v582
    %v584 = vpop.f32.mrf.mxu0
    %585 = vmatprep.mubr.bf16.mxu0 0
    %586 = vmatmul.mubr.bf16.gmra.mxu0 %v333
    %v587 = vpop.f32.mrf.mxu0
    %v588 = vadd.f32 0.0, %v587
    %v589 = vpop.f32.mrf.mxu0
    %v590 = vpop.f32.mrf.mxu0
    %v591 = vadd.f32 0.0, %v590
    %v592 = vpop.f32.mrf.mxu0
    %593 = vmatprep.mubr.bf16.mxu0 0
    %594 = vmatmul.mubr.bf16.gmra.mxu0 %v336
    %v595 = vpop.f32.mrf.mxu0
    %v596 = vadd.f32 0.0, %v595
    %v597 = vpop.f32.mrf.mxu0
    %v598 = vpop.f32.mrf.mxu0
    %v599 = vadd.f32 0.0, %v598
    %v600 = vpop.f32.mrf.mxu0
    %601 = vmatprep.mubr.bf16.mxu0 0
    %602 = vmatmul.mubr.bf16.gmra.mxu0 %v339
    %v603 = vpop.f32.mrf.mxu0
    %v604 = vadd.f32 0.0, %v603
    %v605 = vpop.f32.mrf.mxu0
    %v606 = vpop.f32.mrf.mxu0
    %v607 = vadd.f32 0.0, %v606
    %v608 = vpop.f32.mrf.mxu0
    %609 = vmatprep.mubr.bf16.mxu0 0
    %610 = vmatmul.mubr.bf16.gmra.mxu0 %v342
    %v611 = vpop.f32.mrf.mxu0
    %v612 = vadd.f32 0.0, %v611
    %v613 = vpop.f32.mrf.mxu0
    %v614 = vpop.f32.mrf.mxu0
    %v615 = vadd.f32 0.0, %v614
    %v616 = vpop.f32.mrf.mxu0
    %617 = vmatprep.mubr.bf16.mxu0 0
    %618 = vmatmul.mubr.bf16.gmra.mxu0 %v345
    %v619 = vpop.f32.mrf.mxu0
    %v620 = vadd.f32 0.0, %v619
    %v621 = vpop.f32.mrf.mxu0
    %v622 = vpop.f32.mrf.mxu0
    %v623 = vadd.f32 0.0, %v622
    %v624 = vpop.f32.mrf.mxu0
    %625 = vmatprep.mubr.bf16.mxu0 0
    %626 = vmatmul.mubr.bf16.gmra.mxu0 %v348
    %v627 = vpop.f32.mrf.mxu0
    %v628 = vadd.f32 0.0, %v627
    %v629 = vpop.f32.mrf.mxu0
    %v630 = vpop.f32.mrf.mxu0
    %v631 = vadd.f32 0.0, %v630
    %v632 = vpop.f32.mrf.mxu0
    %633 = vmatprep.mubr.bf16.mxu0 0
    %634 = vmatmul.mubr.bf16.gmra.mxu0 %v351
    %v635 = vpop.f32.mrf.mxu0
    %v636 = vadd.f32 0.0, %v635
    %v637 = vpop.f32.mrf.mxu0
    %v638 = vpop.f32.mrf.mxu0
    %v639 = vadd.f32 0.0, %v638
    %v640 = vpop.f32.mrf.mxu0
    %641 = vdwg.mxu0
    %642 = vst [vmem:[#allocation2] sm:$0xff] %v388
    %643 = vst [vmem:[#allocation2 + $0x8] sm:$0xff] %v391
    %644 = vst [vmem:[#allocation2 + $0x10] sm:$0xff] %v396
    %645 = vst [vmem:[#allocation2 + $0x18] sm:$0xff] %v399
    %646 = vst [vmem:[#allocation2 + $0x20] sm:$0xff] %v404
    %647 = vst [vmem:[#allocation2 + $0x28] sm:$0xff] %v407
    %648 = vst [vmem:[#allocation2 + $0x30] sm:$0xff] %v412
    %649 = vst [vmem:[#allocation2 + $0x38] sm:$0xff] %v415
    %650 = vst [vmem:[#allocation2 + $0x40] sm:$0xff] %v420
    %651 = vst [vmem:[#allocation2 + $0x48] sm:$0xff] %v423
    %652 = vst [vmem:[#allocation2 + $0x50] sm:$0xff] %v428
    %653 = vst [vmem:[#allocation2 + $0x58] sm:$0xff] %v431
    %654 = vst [vmem:[#allocation2 + $0x60] sm:$0xff] %v436
    %655 = vst [vmem:[#allocation2 + $0x68] sm:$0xff] %v439
    %656 = vst [vmem:[#allocation2 + $0x70] sm:$0xff] %v444
    %657 = vst [vmem:[#allocation2 + $0x78] sm:$0xff] %v447
    %658 = vst [vmem:[#allocation2 + $0x80] sm:$0xff] %v452
    %659 = vst [vmem:[#allocation2 + $0x88] sm:$0xff] %v455
    %660 = vst [vmem:[#allocation2 + $0x90] sm:$0xff] %v460
    %661 = vst [vmem:[#allocation2 + $0x98] sm:$0xff] %v463
    %662 = vst [vmem:[#allocation2 + $0xa0] sm:$0xff] %v468
    %663 = vst [vmem:[#allocation2 + $0xa8] sm:$0xff] %v471
    %664 = vst [vmem:[#allocation2 + $0xb0] sm:$0xff] %v476
    %665 = vst [vmem:[#allocation2 + $0xb8] sm:$0xff] %v479
    %666 = vst [vmem:[#allocation2 + $0xc0] sm:$0xff] %v484
    %667 = vst [vmem:[#allocation2 + $0xc8] sm:$0xff] %v487
    %668 = vst [vmem:[#allocation2 + $0xd0] sm:$0xff] %v492
    %669 = vst [vmem:[#allocation2 + $0xd8] sm:$0xff] %v495
    %670 = vst [vmem:[#allocation2 + $0xe0] sm:$0xff] %v500
    %671 = vst [vmem:[#allocation2 + $0xe8] sm:$0xff] %v503
    %672 = vst [vmem:[#allocation2 + $0xf0] sm:$0xff] %v508
    %673 = vst [vmem:[#allocation2 + $0xf8] sm:$0xff] %v511
    %674 = vst [vmem:[#allocation2 + $0x100] sm:$0xff] %v516
    %675 = vst [vmem:[#allocation2 + $0x108] sm:$0xff] %v519
    %676 = vst [vmem:[#allocation2 + $0x110] sm:$0xff] %v524
    %677 = vst [vmem:[#allocation2 + $0x118] sm:$0xff] %v527
    %678 = vst [vmem:[#allocation2 + $0x120] sm:$0xff] %v532
    %679 = vst [vmem:[#allocation2 + $0x128] sm:$0xff] %v535
    %680 = vst [vmem:[#allocation2 + $0x130] sm:$0xff] %v540
    %681 = vst [vmem:[#allocation2 + $0x138] sm:$0xff] %v543
    %682 = vst [vmem:[#allocation2 + $0x140] sm:$0xff] %v548
    %683 = vst [vmem:[#allocation2 + $0x148] sm:$0xff] %v551
    %684 = vst [vmem:[#allocation2 + $0x150] sm:$0xff] %v556
    %685 = vst [vmem:[#allocation2 + $0x158] sm:$0xff] %v559
    %686 = vst [vmem:[#allocation2 + $0x160] sm:$0xff] %v564
    %687 = vst [vmem:[#allocation2 + $0x168] sm:$0xff] %v567
    %688 = vst [vmem:[#allocation2 + $0x170] sm:$0xff] %v572
    %689 = vst [vmem:[#allocation2 + $0x178] sm:$0xff] %v575
    %690 = vst [vmem:[#allocation2 + $0x180] sm:$0xff] %v580
    %691 = vst [vmem:[#allocation2 + $0x188] sm:$0xff] %v583
    %692 = vst [vmem:[#allocation2 + $0x190] sm:$0xff] %v588
    %693 = vst [vmem:[#allocation2 + $0x198] sm:$0xff] %v591
    %694 = vst [vmem:[#allocation2 + $0x1a0] sm:$0xff] %v596
    %695 = vst [vmem:[#allocation2 + $0x1a8] sm:$0xff] %v599
    %696 = vst [vmem:[#allocation2 + $0x1b0] sm:$0xff] %v604
    %697 = vst [vmem:[#allocation2 + $0x1b8] sm:$0xff] %v607
    %698 = vst [vmem:[#allocation2 + $0x1c0] sm:$0xff] %v612
    %699 = vst [vmem:[#allocation2 + $0x1c8] sm:$0xff] %v615
    %700 = vst [vmem:[#allocation2 + $0x1d0] sm:$0xff] %v620
    %701 = vst [vmem:[#allocation2 + $0x1d8] sm:$0xff] %v623
    %702 = vst [vmem:[#allocation2 + $0x1e0] sm:$0xff] %v628
    %703 = vst [vmem:[#allocation2 + $0x1e8] sm:$0xff] %v631
    %704 = vst [vmem:[#allocation2 + $0x1f0] sm:$0xff] %v636
    %705 = vst [vmem:[#allocation2 + $0x1f8] sm:$0xff] %v639
    %v706 = vld [vmem:[#allocation2] sm:$0xff]
    %v707 = vld [vmem:[#allocation2 + $0x8] sm:$0xff]
    %v708 = vld [vmem:[#allocation2 + $0x10] sm:$0xff]
    %v709 = vld [vmem:[#allocation2 + $0x18] sm:$0xff]
    %v710 = vld [vmem:[#allocation2 + $0x20] sm:$0xff]
    %v711 = vld [vmem:[#allocation2 + $0x28] sm:$0xff]
    %v712 = vld [vmem:[#allocation2 + $0x30] sm:$0xff]
    %v713 = vld [vmem:[#allocation2 + $0x38] sm:$0xff]
    %v714 = vld [vmem:[#allocation2 + $0x40] sm:$0xff]
    %v715 = vld [vmem:[#allocation2 + $0x48] sm:$0xff]
    %v716 = vld [vmem:[#allocation2 + $0x50] sm:$0xff]
    %v717 = vld [vmem:[#allocation2 + $0x58] sm:$0xff]
    %v718 = vld [vmem:[#allocation2 + $0x60] sm:$0xff]
    %v719 = vld [vmem:[#allocation2 + $0x68] sm:$0xff]
    %v720 = vld [vmem:[#allocation2 + $0x70] sm:$0xff]
    %v721 = vld [vmem:[#allocation2 + $0x78] sm:$0xff]
    %v722 = vld [vmem:[#allocation2 + $0x80] sm:$0xff]
    %v723 = vld [vmem:[#allocation2 + $0x88] sm:$0xff]
    %v724 = vld [vmem:[#allocation2 + $0x90] sm:$0xff]
    %v725 = vld [vmem:[#allocation2 + $0x98] sm:$0xff]
    %v726 = vld [vmem:[#allocation2 + $0xa0] sm:$0xff]
    %v727 = vld [vmem:[#allocation2 + $0xa8] sm:$0xff]
    %v728 = vld [vmem:[#allocation2 + $0xb0] sm:$0xff]
    %v729 = vld [vmem:[#allocation2 + $0xb8] sm:$0xff]
    %v730 = vld [vmem:[#allocation2 + $0xc0] sm:$0xff]
    %v731 = vld [vmem:[#allocation2 + $0xc8] sm:$0xff]
    %v732 = vld [vmem:[#allocation2 + $0xd0] sm:$0xff]
    %v733 = vld [vmem:[#allocation2 + $0xd8] sm:$0xff]
    %v734 = vld [vmem:[#allocation2 + $0xe0] sm:$0xff]
    %v735 = vld [vmem:[#allocation2 + $0xe8] sm:$0xff]
    %v736 = vld [vmem:[#allocation2 + $0xf0] sm:$0xff]
    %v737 = vld [vmem:[#allocation2 + $0xf8] sm:$0xff]
    %v738 = vld [vmem:[#allocation2 + $0x100] sm:$0xff]
    %v739 = vld [vmem:[#allocation2 + $0x108] sm:$0xff]
    %v740 = vld [vmem:[#allocation2 + $0x110] sm:$0xff]
    %v741 = vld [vmem:[#allocation2 + $0x118] sm:$0xff]
    %v742 = vld [vmem:[#allocation2 + $0x120] sm:$0xff]
    %v743 = vld [vmem:[#allocation2 + $0x128] sm:$0xff]
    %v744 = vld [vmem:[#allocation2 + $0x130] sm:$0xff]
    %v745 = vld [vmem:[#allocation2 + $0x138] sm:$0xff]
    %v746 = vld [vmem:[#allocation2 + $0x140] sm:$0xff]
    %v747 = vld [vmem:[#allocation2 + $0x148] sm:$0xff]
    %v748 = vld [vmem:[#allocation2 + $0x150] sm:$0xff]
    %v749 = vld [vmem:[#allocation2 + $0x158] sm:$0xff]
    %v750 = vld [vmem:[#allocation2 + $0x160] sm:$0xff]
    %v751 = vld [vmem:[#allocation2 + $0x168] sm:$0xff]
    %v752 = vld [vmem:[#allocation2 + $0x170] sm:$0xff]
    %v753 = vld [vmem:[#allocation2 + $0x178] sm:$0xff]
    %v754 = vld [vmem:[#allocation2 + $0x180] sm:$0xff]
    %v755 = vld [vmem:[#allocation2 + $0x188] sm:$0xff]
    %v756 = vld [vmem:[#allocation2 + $0x190] sm:$0xff]
    %v757 = vld [vmem:[#allocation2 + $0x198] sm:$0xff]
    %v758 = vld [vmem:[#allocation2 + $0x1a0] sm:$0xff]
    %v759 = vld [vmem:[#allocation2 + $0x1a8] sm:$0xff]
    %v760 = vld [vmem:[#allocation2 + $0x1b0] sm:$0xff]
    %v761 = vld [vmem:[#allocation2 + $0x1b8] sm:$0xff]
    %v762 = vld [vmem:[#allocation2 + $0x1c0] sm:$0xff]
    %v763 = vld [vmem:[#allocation2 + $0x1c8] sm:$0xff]
    %v764 = vld [vmem:[#allocation2 + $0x1d0] sm:$0xff]
    %v765 = vld [vmem:[#allocation2 + $0x1d8] sm:$0xff]
    %v766 = vld [vmem:[#allocation2 + $0x1e0] sm:$0xff]
    %v767 = vld [vmem:[#allocation2 + $0x1e8] sm:$0xff]
    %v768 = vld [vmem:[#allocation2 + $0x1f0] sm:$0xff]
    %v769 = vld [vmem:[#allocation2 + $0x1f8] sm:$0xff]
    %s770 = scalar_lea.vmem %s0, 256
    %v771 = vld [vmem:[%s770] sm:$0xf]
    %v772 = vld [vmem:[%s770 + $0x4] sm:$0xf]
    %v773 = vld [vmem:[%s770 + $0x8] sm:$0xf]
    %v774 = vld [vmem:[%s770 + $0xc] sm:$0xf]
    %v775 = vld [vmem:[%s770 + $0x10] sm:$0xf]
    %v776 = vld [vmem:[%s770 + $0x14] sm:$0xf]
    %v777 = vld [vmem:[%s770 + $0x18] sm:$0xf]
    %v778 = vld [vmem:[%s770 + $0x1c] sm:$0xf]
    %v779 = vld [vmem:[%s770 + $0x20] sm:$0xf]
    %v780 = vld [vmem:[%s770 + $0x24] sm:$0xf]
    %v781 = vld [vmem:[%s770 + $0x28] sm:$0xf]
    %v782 = vld [vmem:[%s770 + $0x2c] sm:$0xf]
    %v783 = vld [vmem:[%s770 + $0x30] sm:$0xf]
    %v784 = vld [vmem:[%s770 + $0x34] sm:$0xf]
    %v785 = vld [vmem:[%s770 + $0x38] sm:$0xf]
    %v786 = vld [vmem:[%s770 + $0x3c] sm:$0xf]
    %v787 = vld [vmem:[%s770 + $0x40] sm:$0xf]
    %v788 = vld [vmem:[%s770 + $0x44] sm:$0xf]
    %v789 = vld [vmem:[%s770 + $0x48] sm:$0xf]
    %v790 = vld [vmem:[%s770 + $0x4c] sm:$0xf]
    %v791 = vld [vmem:[%s770 + $0x50] sm:$0xf]
    %v792 = vld [vmem:[%s770 + $0x54] sm:$0xf]
    %v793 = vld [vmem:[%s770 + $0x58] sm:$0xf]
    %v794 = vld [vmem:[%s770 + $0x5c] sm:$0xf]
    %v795 = vld [vmem:[%s770 + $0x60] sm:$0xf]
    %v796 = vld [vmem:[%s770 + $0x64] sm:$0xf]
    %v797 = vld [vmem:[%s770 + $0x68] sm:$0xf]
    %v798 = vld [vmem:[%s770 + $0x6c] sm:$0xf]
    %v799 = vld [vmem:[%s770 + $0x70] sm:$0xf]
    %v800 = vld [vmem:[%s770 + $0x74] sm:$0xf]
    %v801 = vld [vmem:[%s770 + $0x78] sm:$0xf]
    %v802 = vld [vmem:[%s770 + $0x7c] sm:$0xf]
    %v803 = vld [vmem:[%s770 + $0x80] sm:$0xf]
    %v804 = vld [vmem:[%s770 + $0x84] sm:$0xf]
    %v805 = vld [vmem:[%s770 + $0x88] sm:$0xf]
    %v806 = vld [vmem:[%s770 + $0x8c] sm:$0xf]
    %v807 = vld [vmem:[%s770 + $0x90] sm:$0xf]
    %v808 = vld [vmem:[%s770 + $0x94] sm:$0xf]
    %v809 = vld [vmem:[%s770 + $0x98] sm:$0xf]
    %v810 = vld [vmem:[%s770 + $0x9c] sm:$0xf]
    %v811 = vld [vmem:[%s770 + $0xa0] sm:$0xf]
    %v812 = vld [vmem:[%s770 + $0xa4] sm:$0xf]
    %v813 = vld [vmem:[%s770 + $0xa8] sm:$0xf]
    %v814 = vld [vmem:[%s770 + $0xac] sm:$0xf]
    %v815 = vld [vmem:[%s770 + $0xb0] sm:$0xf]
    %v816 = vld [vmem:[%s770 + $0xb4] sm:$0xf]
    %v817 = vld [vmem:[%s770 + $0xb8] sm:$0xf]
    %v818 = vld [vmem:[%s770 + $0xbc] sm:$0xf]
    %v819 = vld [vmem:[%s770 + $0xc0] sm:$0xf]
    %v820 = vld [vmem:[%s770 + $0xc4] sm:$0xf]
    %v821 = vld [vmem:[%s770 + $0xc8] sm:$0xf]
    %v822 = vld [vmem:[%s770 + $0xcc] sm:$0xf]
    %v823 = vld [vmem:[%s770 + $0xd0] sm:$0xf]
    %v824 = vld [vmem:[%s770 + $0xd4] sm:$0xf]
    %v825 = vld [vmem:[%s770 + $0xd8] sm:$0xf]
    %v826 = vld [vmem:[%s770 + $0xdc] sm:$0xf]
    %v827 = vld [vmem:[%s770 + $0xe0] sm:$0xf]
    %v828 = vld [vmem:[%s770 + $0xe4] sm:$0xf]
    %v829 = vld [vmem:[%s770 + $0xe8] sm:$0xf]
    %v830 = vld [vmem:[%s770 + $0xec] sm:$0xf]
    %v831 = vld [vmem:[%s770 + $0xf0] sm:$0xf]
    %v832 = vld [vmem:[%s770 + $0xf4] sm:$0xf]
    %v833 = vld [vmem:[%s770 + $0xf8] sm:$0xf]
    %v834 = vld [vmem:[%s770 + $0xfc] sm:$0xf]
    %v835 = vld [vmem:[%s1] sm:$0xf]
    %v836 = vld [vmem:[%s1 + $0x4] sm:$0xf]
    %v837 = vld [vmem:[%s1 + $0x8] sm:$0xf]
    %v838 = vld [vmem:[%s1 + $0xc] sm:$0xf]
    %v903 = vunpack.c.l.b16 %v771
    %v904 = vunpack.c.l.b16 %v772
    %v905 = vunpack.c.l.b16 %v773
    %v906 = vunpack.c.l.b16 %v774
    %v907 = vunpack.c.l.b16 %v775
    %v908 = vunpack.c.l.b16 %v776
    %v909 = vunpack.c.l.b16 %v777
    %v910 = vunpack.c.l.b16 %v778
    %v911 = vunpack.c.l.b16 %v779
    %v912 = vunpack.c.l.b16 %v780
    %v913 = vunpack.c.l.b16 %v781
    %v914 = vunpack.c.l.b16 %v782
    %v915 = vunpack.c.l.b16 %v783
    %v916 = vunpack.c.l.b16 %v784
    %v917 = vunpack.c.l.b16 %v785
    %v918 = vunpack.c.l.b16 %v786
    %v919 = vunpack.c.l.b16 %v787
    %v920 = vunpack.c.l.b16 %v788
    %v921 = vunpack.c.l.b16 %v789
    %v922 = vunpack.c.l.b16 %v790
    %v923 = vunpack.c.l.b16 %v791
    %v924 = vunpack.c.l.b16 %v792
    %v925 = vunpack.c.l.b16 %v793
    %v926 = vunpack.c.l.b16 %v794
    %v927 = vunpack.c.l.b16 %v795
    %v928 = vunpack.c.l.b16 %v796
    %v929 = vunpack.c.l.b16 %v797
    %v930 = vunpack.c.l.b16 %v798
    %v931 = vunpack.c.l.b16 %v799
    %v932 = vunpack.c.l.b16 %v800
    %v933 = vunpack.c.l.b16 %v801
    %v934 = vunpack.c.l.b16 %v802
    %v935 = vunpack.c.l.b16 %v803
    %v936 = vunpack.c.l.b16 %v804
    %v937 = vunpack.c.l.b16 %v805
    %v938 = vunpack.c.l.b16 %v806
    %v939 = vunpack.c.l.b16 %v807
    %v940 = vunpack.c.l.b16 %v808
    %v941 = vunpack.c.l.b16 %v809
    %v942 = vunpack.c.l.b16 %v810
    %v943 = vunpack.c.l.b16 %v811
    %v944 = vunpack.c.l.b16 %v812
    %v945 = vunpack.c.l.b16 %v813
    %v946 = vunpack.c.l.b16 %v814
    %v947 = vunpack.c.l.b16 %v815
    %v948 = vunpack.c.l.b16 %v816
    %v949 = vunpack.c.l.b16 %v817
    %v950 = vunpack.c.l.b16 %v818
    %v951 = vunpack.c.l.b16 %v819
    %v952 = vunpack.c.l.b16 %v820
    %v953 = vunpack.c.l.b16 %v821
    %v954 = vunpack.c.l.b16 %v822
    %v955 = vunpack.c.l.b16 %v823
    %v956 = vunpack.c.l.b16 %v824
    %v957 = vunpack.c.l.b16 %v825
    %v958 = vunpack.c.l.b16 %v826
    %v959 = vunpack.c.l.b16 %v827
    %v960 = vunpack.c.l.b16 %v828
    %v961 = vunpack.c.l.b16 %v829
    %v962 = vunpack.c.l.b16 %v830
    %v963 = vunpack.c.l.b16 %v831
    %v964 = vunpack.c.l.b16 %v832
    %v965 = vunpack.c.l.b16 %v833
    %v966 = vunpack.c.l.b16 %v834
    %v967 = vpack.c.b16 %v904, %v903
    %v968 = vpack.c.b16 %v906, %v905
    %v969 = vpack.c.b16 %v908, %v907
    %v970 = vpack.c.b16 %v910, %v909
    %v971 = vpack.c.b16 %v912, %v911
    %v972 = vpack.c.b16 %v914, %v913
    %v973 = vpack.c.b16 %v916, %v915
    %v974 = vpack.c.b16 %v918, %v917
    %v975 = vpack.c.b16 %v920, %v919
    %v976 = vpack.c.b16 %v922, %v921
    %v977 = vpack.c.b16 %v924, %v923
    %v978 = vpack.c.b16 %v926, %v925
    %v979 = vpack.c.b16 %v928, %v927
    %v980 = vpack.c.b16 %v930, %v929
    %v981 = vpack.c.b16 %v932, %v931
    %v982 = vpack.c.b16 %v934, %v933
    %v983 = vpack.c.b16 %v936, %v935
    %v984 = vpack.c.b16 %v938, %v937
    %v985 = vpack.c.b16 %v940, %v939
    %v986 = vpack.c.b16 %v942, %v941
    %v987 = vpack.c.b16 %v944, %v943
    %v988 = vpack.c.b16 %v946, %v945
    %v989 = vpack.c.b16 %v948, %v947
    %v990 = vpack.c.b16 %v950, %v949
    %v991 = vpack.c.b16 %v952, %v951
    %v992 = vpack.c.b16 %v954, %v953
    %v993 = vpack.c.b16 %v956, %v955
    %v994 = vpack.c.b16 %v958, %v957
    %v995 = vpack.c.b16 %v960, %v959
    %v996 = vpack.c.b16 %v962, %v961
    %v997 = vpack.c.b16 %v964, %v963
    %v998 = vpack.c.b16 %v966, %v965
    %v1003 = vunpack.c.l.b16 %v835
    %v1004 = vunpack.c.l.b16 %v836
    %v1005 = vunpack.c.l.b16 %v837
    %v1006 = vunpack.c.l.b16 %v838
    %v1007 = vpack.c.b16 %v1004, %v1003
    %v1008 = vpack.c.b16 %v1006, %v1005
    %v1012 = vsel %vm256, %v967, 0
    %v1015 = vsel %vm256, %v968, 0
    %v1018 = vsel %vm256, %v969, 0
    %v1021 = vsel %vm256, %v970, 0
    %v1024 = vsel %vm256, %v971, 0
    %v1027 = vsel %vm256, %v972, 0
    %v1030 = vsel %vm256, %v973, 0
    %v1033 = vsel %vm256, %v974, 0
    %v1036 = vsel %vm256, %v975, 0
    %v1039 = vsel %vm256, %v976, 0
    %v1042 = vsel %vm256, %v977, 0
    %v1045 = vsel %vm256, %v978, 0
    %v1048 = vsel %vm256, %v979, 0
    %v1051 = vsel %vm256, %v980, 0
    %v1054 = vsel %vm256, %v981, 0
    %v1057 = vsel %vm256, %v982, 0
    %v1060 = vsel %vm256, %v983, 0
    %v1063 = vsel %vm256, %v984, 0
    %v1066 = vsel %vm256, %v985, 0
    %v1069 = vsel %vm256, %v986, 0
    %v1072 = vsel %vm256, %v987, 0
    %v1075 = vsel %vm256, %v988, 0
    %v1078 = vsel %vm256, %v989, 0
    %v1081 = vsel %vm256, %v990, 0
    %v1084 = vsel %vm256, %v991, 0
    %v1087 = vsel %vm256, %v992, 0
    %v1090 = vsel %vm256, %v993, 0
    %v1093 = vsel %vm256, %v994, 0
    %v1096 = vsel %vm256, %v995, 0
    %v1099 = vsel %vm256, %v996, 0
    %v1102 = vsel %vm256, %v997, 0
    %v1105 = vsel %vm256, %v998, 0
    %1107 = vmatprep.subr.bf16.mxu0 0
    %1108 = vmatpush1.bf16.msra.mxu0 0
    %1109 = vmatprep.subr.bf16.mxu0 0
    %1110 = vmatpush1.bf16.msra.mxu0 0
    %1111 = vmatprep.subr.bf16.mxu0 0
    %1112 = vmatpush1.bf16.msra.mxu0 0
    %1113 = vmatprep.subr.bf16.mxu0 0
    %1114 = vmatpush1.bf16.msra.mxu0 0
    %1115 = vmatprep.subr.bf16.mxu0 0
    %1116 = vmatpush1.bf16.msra.mxu0 0
    %1117 = vmatprep.subr.bf16.mxu0 0
    %1118 = vmatpush1.bf16.msra.mxu0 0
    %1119 = vmatprep.subr.bf16.mxu0 0
    %1120 = vmatpush1.bf16.msra.mxu0 %v1008
    %1121 = vmatprep.subr.bf16.mxu0 0
    %1122 = vmatpush1.bf16.msra.mxu0 %v1007
    %1123 = vmatprep.subr.bf16.mxu0 0
    %1124 = vmatpush2.bf16.msra.mxu0 0
    %1125 = vmatprep.subr.bf16.mxu0 0
    %1126 = vmatpush2.bf16.msra.mxu0 0
    %1127 = vmatprep.subr.bf16.mxu0 0
    %1128 = vmatpush2.bf16.msra.mxu0 0
    %1129 = vmatprep.subr.bf16.mxu0 0
    %1130 = vmatpush2.bf16.msra.mxu0 0
    %1131 = vmatprep.subr.bf16.mxu0 0
    %1132 = vmatpush2.bf16.msra.mxu0 0
    %1133 = vmatprep.subr.bf16.mxu0 0
    %1134 = vmatpush2.bf16.msra.mxu0 0
    %1135 = vmatprep.subr.bf16.mxu0 0
    %1136 = vmatpush2.bf16.msra.mxu0 0
    %1137 = vmatprep.subr.bf16.mxu0 0
    %1138 = vmatpush2.bf16.msra.mxu0 0
    %1139 = vmatprep.mubr.bf16.mxu0 0
    %1140 = vmatmul.mubr.bf16.gmra.mxu0 %v1012
    %v1141 = vpop.f32.mrf.mxu0
    %v1142 = vadd.f32 0.0, %v1141
    %v1143 = vpop.f32.mrf.mxu0
    %v1144 = vpop.f32.mrf.mxu0
    %v1145 = vadd.f32 0.0, %v1144
    %v1146 = vpop.f32.mrf.mxu0
    %1147 = vmatprep.mubr.bf16.mxu0 0
    %1148 = vmatmul.mubr.bf16.gmra.mxu0 %v1015
    %v1149 = vpop.f32.mrf.mxu0
    %v1150 = vadd.f32 0.0, %v1149
    %v1151 = vpop.f32.mrf.mxu0
    %v1152 = vpop.f32.mrf.mxu0
    %v1153 = vadd.f32 0.0, %v1152
    %v1154 = vpop.f32.mrf.mxu0
    %1155 = vmatprep.mubr.bf16.mxu0 0
    %1156 = vmatmul.mubr.bf16.gmra.mxu0 %v1018
    %v1157 = vpop.f32.mrf.mxu0
    %v1158 = vadd.f32 0.0, %v1157
    %v1159 = vpop.f32.mrf.mxu0
    %v1160 = vpop.f32.mrf.mxu0
    %v1161 = vadd.f32 0.0, %v1160
    %v1162 = vpop.f32.mrf.mxu0
    %1163 = vmatprep.mubr.bf16.mxu0 0
    %1164 = vmatmul.mubr.bf16.gmra.mxu0 %v1021
    %v1165 = vpop.f32.mrf.mxu0
    %v1166 = vadd.f32 0.0, %v1165
    %v1167 = vpop.f32.mrf.mxu0
    %v1168 = vpop.f32.mrf.mxu0
    %v1169 = vadd.f32 0.0, %v1168
    %v1170 = vpop.f32.mrf.mxu0
    %1171 = vmatprep.mubr.bf16.mxu0 0
    %1172 = vmatmul.mubr.bf16.gmra.mxu0 %v1024
    %v1173 = vpop.f32.mrf.mxu0
    %v1174 = vadd.f32 0.0, %v1173
    %v1175 = vpop.f32.mrf.mxu0
    %v1176 = vpop.f32.mrf.mxu0
    %v1177 = vadd.f32 0.0, %v1176
    %v1178 = vpop.f32.mrf.mxu0
    %1179 = vmatprep.mubr.bf16.mxu0 0
    %1180 = vmatmul.mubr.bf16.gmra.mxu0 %v1027
    %v1181 = vpop.f32.mrf.mxu0
    %v1182 = vadd.f32 0.0, %v1181
    %v1183 = vpop.f32.mrf.mxu0
    %v1184 = vpop.f32.mrf.mxu0
    %v1185 = vadd.f32 0.0, %v1184
    %v1186 = vpop.f32.mrf.mxu0
    %1187 = vmatprep.mubr.bf16.mxu0 0
    %1188 = vmatmul.mubr.bf16.gmra.mxu0 %v1030
    %v1189 = vpop.f32.mrf.mxu0
    %v1190 = vadd.f32 0.0, %v1189
    %v1191 = vpop.f32.mrf.mxu0
    %v1192 = vpop.f32.mrf.mxu0
    %v1193 = vadd.f32 0.0, %v1192
    %v1194 = vpop.f32.mrf.mxu0
    %1195 = vmatprep.mubr.bf16.mxu0 0
    %1196 = vmatmul.mubr.bf16.gmra.mxu0 %v1033
    %v1197 = vpop.f32.mrf.mxu0
    %v1198 = vadd.f32 0.0, %v1197
    %v1199 = vpop.f32.mrf.mxu0
    %v1200 = vpop.f32.mrf.mxu0
    %v1201 = vadd.f32 0.0, %v1200
    %v1202 = vpop.f32.mrf.mxu0
    %1203 = vmatprep.mubr.bf16.mxu0 0
    %1204 = vmatmul.mubr.bf16.gmra.mxu0 %v1036
    %v1205 = vpop.f32.mrf.mxu0
    %v1206 = vadd.f32 0.0, %v1205
    %v1207 = vpop.f32.mrf.mxu0
    %v1208 = vpop.f32.mrf.mxu0
    %v1209 = vadd.f32 0.0, %v1208
    %v1210 = vpop.f32.mrf.mxu0
    %1211 = vmatprep.mubr.bf16.mxu0 0
    %1212 = vmatmul.mubr.bf16.gmra.mxu0 %v1039
    %v1213 = vpop.f32.mrf.mxu0
    %v1214 = vadd.f32 0.0, %v1213
    %v1215 = vpop.f32.mrf.mxu0
    %v1216 = vpop.f32.mrf.mxu0
    %v1217 = vadd.f32 0.0, %v1216
    %v1218 = vpop.f32.mrf.mxu0
    %1219 = vmatprep.mubr.bf16.mxu0 0
    %1220 = vmatmul.mubr.bf16.gmra.mxu0 %v1042
    %v1221 = vpop.f32.mrf.mxu0
    %v1222 = vadd.f32 0.0, %v1221
    %v1223 = vpop.f32.mrf.mxu0
    %v1224 = vpop.f32.mrf.mxu0
    %v1225 = vadd.f32 0.0, %v1224
    %v1226 = vpop.f32.mrf.mxu0
    %1227 = vmatprep.mubr.bf16.mxu0 0
    %1228 = vmatmul.mubr.bf16.gmra.mxu0 %v1045
    %v1229 = vpop.f32.mrf.mxu0
    %v1230 = vadd.f32 0.0, %v1229
    %v1231 = vpop.f32.mrf.mxu0
    %v1232 = vpop.f32.mrf.mxu0
    %v1233 = vadd.f32 0.0, %v1232
    %v1234 = vpop.f32.mrf.mxu0
    %1235 = vmatprep.mubr.bf16.mxu0 0
    %1236 = vmatmul.mubr.bf16.gmra.mxu0 %v1048
    %v1237 = vpop.f32.mrf.mxu0
    %v1238 = vadd.f32 0.0, %v1237
    %v1239 = vpop.f32.mrf.mxu0
    %v1240 = vpop.f32.mrf.mxu0
    %v1241 = vadd.f32 0.0, %v1240
    %v1242 = vpop.f32.mrf.mxu0
    %1243 = vmatprep.mubr.bf16.mxu0 0
    %1244 = vmatmul.mubr.bf16.gmra.mxu0 %v1051
    %v1245 = vpop.f32.mrf.mxu0
    %v1246 = vadd.f32 0.0, %v1245
    %v1247 = vpop.f32.mrf.mxu0
    %v1248 = vpop.f32.mrf.mxu0
    %v1249 = vadd.f32 0.0, %v1248
    %v1250 = vpop.f32.mrf.mxu0
    %1251 = vmatprep.mubr.bf16.mxu0 0
    %1252 = vmatmul.mubr.bf16.gmra.mxu0 %v1054
    %v1253 = vpop.f32.mrf.mxu0
    %v1254 = vadd.f32 0.0, %v1253
    %v1255 = vpop.f32.mrf.mxu0
    %v1256 = vpop.f32.mrf.mxu0
    %v1257 = vadd.f32 0.0, %v1256
    %v1258 = vpop.f32.mrf.mxu0
    %1259 = vmatprep.mubr.bf16.mxu0 0
    %1260 = vmatmul.mubr.bf16.gmra.mxu0 %v1057
    %v1261 = vpop.f32.mrf.mxu0
    %v1262 = vadd.f32 0.0, %v1261
    %v1263 = vpop.f32.mrf.mxu0
    %v1264 = vpop.f32.mrf.mxu0
    %v1265 = vadd.f32 0.0, %v1264
    %v1266 = vpop.f32.mrf.mxu0
    %1267 = vmatprep.mubr.bf16.mxu0 0
    %1268 = vmatmul.mubr.bf16.gmra.mxu0 %v1060
    %v1269 = vpop.f32.mrf.mxu0
    %v1270 = vadd.f32 0.0, %v1269
    %v1271 = vpop.f32.mrf.mxu0
    %v1272 = vpop.f32.mrf.mxu0
    %v1273 = vadd.f32 0.0, %v1272
    %v1274 = vpop.f32.mrf.mxu0
    %1275 = vmatprep.mubr.bf16.mxu0 0
    %1276 = vmatmul.mubr.bf16.gmra.mxu0 %v1063
    %v1277 = vpop.f32.mrf.mxu0
    %v1278 = vadd.f32 0.0, %v1277
    %v1279 = vpop.f32.mrf.mxu0
    %v1280 = vpop.f32.mrf.mxu0
    %v1281 = vadd.f32 0.0, %v1280
    %v1282 = vpop.f32.mrf.mxu0
    %1283 = vmatprep.mubr.bf16.mxu0 0
    %1284 = vmatmul.mubr.bf16.gmra.mxu0 %v1066
    %v1285 = vpop.f32.mrf.mxu0
    %v1286 = vadd.f32 0.0, %v1285
    %v1287 = vpop.f32.mrf.mxu0
    %v1288 = vpop.f32.mrf.mxu0
    %v1289 = vadd.f32 0.0, %v1288
    %v1290 = vpop.f32.mrf.mxu0
    %1291 = vmatprep.mubr.bf16.mxu0 0
    %1292 = vmatmul.mubr.bf16.gmra.mxu0 %v1069
    %v1293 = vpop.f32.mrf.mxu0
    %v1294 = vadd.f32 0.0, %v1293
    %v1295 = vpop.f32.mrf.mxu0
    %v1296 = vpop.f32.mrf.mxu0
    %v1297 = vadd.f32 0.0, %v1296
    %v1298 = vpop.f32.mrf.mxu0
    %1299 = vmatprep.mubr.bf16.mxu0 0
    %1300 = vmatmul.mubr.bf16.gmra.mxu0 %v1072
    %v1301 = vpop.f32.mrf.mxu0
    %v1302 = vadd.f32 0.0, %v1301
    %v1303 = vpop.f32.mrf.mxu0
    %v1304 = vpop.f32.mrf.mxu0
    %v1305 = vadd.f32 0.0, %v1304
    %v1306 = vpop.f32.mrf.mxu0
    %1307 = vmatprep.mubr.bf16.mxu0 0
    %1308 = vmatmul.mubr.bf16.gmra.mxu0 %v1075
    %v1309 = vpop.f32.mrf.mxu0
    %v1310 = vadd.f32 0.0, %v1309
    %v1311 = vpop.f32.mrf.mxu0
    %v1312 = vpop.f32.mrf.mxu0
    %v1313 = vadd.f32 0.0, %v1312
    %v1314 = vpop.f32.mrf.mxu0
    %1315 = vmatprep.mubr.bf16.mxu0 0
    %1316 = vmatmul.mubr.bf16.gmra.mxu0 %v1078
    %v1317 = vpop.f32.mrf.mxu0
    %v1318 = vadd.f32 0.0, %v1317
    %v1319 = vpop.f32.mrf.mxu0
    %v1320 = vpop.f32.mrf.mxu0
    %v1321 = vadd.f32 0.0, %v1320
    %v1322 = vpop.f32.mrf.mxu0
    %1323 = vmatprep.mubr.bf16.mxu0 0
    %1324 = vmatmul.mubr.bf16.gmra.mxu0 %v1081
    %v1325 = vpop.f32.mrf.mxu0
    %v1326 = vadd.f32 0.0, %v1325
    %v1327 = vpop.f32.mrf.mxu0
    %v1328 = vpop.f32.mrf.mxu0
    %v1329 = vadd.f32 0.0, %v1328
    %v1330 = vpop.f32.mrf.mxu0
    %1331 = vmatprep.mubr.bf16.mxu0 0
    %1332 = vmatmul.mubr.bf16.gmra.mxu0 %v1084
    %v1333 = vpop.f32.mrf.mxu0
    %v1334 = vadd.f32 0.0, %v1333
    %v1335 = vpop.f32.mrf.mxu0
    %v1336 = vpop.f32.mrf.mxu0
    %v1337 = vadd.f32 0.0, %v1336
    %v1338 = vpop.f32.mrf.mxu0
    %1339 = vmatprep.mubr.bf16.mxu0 0
    %1340 = vmatmul.mubr.bf16.gmra.mxu0 %v1087
    %v1341 = vpop.f32.mrf.mxu0
    %v1342 = vadd.f32 0.0, %v1341
    %v1343 = vpop.f32.mrf.mxu0
    %v1344 = vpop.f32.mrf.mxu0
    %v1345 = vadd.f32 0.0, %v1344
    %v1346 = vpop.f32.mrf.mxu0
    %1347 = vmatprep.mubr.bf16.mxu0 0
    %1348 = vmatmul.mubr.bf16.gmra.mxu0 %v1090
    %v1349 = vpop.f32.mrf.mxu0
    %v1350 = vadd.f32 0.0, %v1349
    %v1351 = vpop.f32.mrf.mxu0
    %v1352 = vpop.f32.mrf.mxu0
    %v1353 = vadd.f32 0.0, %v1352
    %v1354 = vpop.f32.mrf.mxu0
    %1355 = vmatprep.mubr.bf16.mxu0 0
    %1356 = vmatmul.mubr.bf16.gmra.mxu0 %v1093
    %v1357 = vpop.f32.mrf.mxu0
    %v1358 = vadd.f32 0.0, %v1357
    %v1359 = vpop.f32.mrf.mxu0
    %v1360 = vpop.f32.mrf.mxu0
    %v1361 = vadd.f32 0.0, %v1360
    %v1362 = vpop.f32.mrf.mxu0
    %1363 = vmatprep.mubr.bf16.mxu0 0
    %1364 = vmatmul.mubr.bf16.gmra.mxu0 %v1096
    %v1365 = vpop.f32.mrf.mxu0
    %v1366 = vadd.f32 0.0, %v1365
    %v1367 = vpop.f32.mrf.mxu0
    %v1368 = vpop.f32.mrf.mxu0
    %v1369 = vadd.f32 0.0, %v1368
    %v1370 = vpop.f32.mrf.mxu0
    %1371 = vmatprep.mubr.bf16.mxu0 0
    %1372 = vmatmul.mubr.bf16.gmra.mxu0 %v1099
    %v1373 = vpop.f32.mrf.mxu0
    %v1374 = vadd.f32 0.0, %v1373
    %v1375 = vpop.f32.mrf.mxu0
    %v1376 = vpop.f32.mrf.mxu0
    %v1377 = vadd.f32 0.0, %v1376
    %v1378 = vpop.f32.mrf.mxu0
    %1379 = vmatprep.mubr.bf16.mxu0 0
    %1380 = vmatmul.mubr.bf16.gmra.mxu0 %v1102
    %v1381 = vpop.f32.mrf.mxu0
    %v1382 = vadd.f32 0.0, %v1381
    %v1383 = vpop.f32.mrf.mxu0
    %v1384 = vpop.f32.mrf.mxu0
    %v1385 = vadd.f32 0.0, %v1384
    %v1386 = vpop.f32.mrf.mxu0
    %1387 = vmatprep.mubr.bf16.mxu0 0
    %1388 = vmatmul.mubr.bf16.gmra.mxu0 %v1105
    %v1389 = vpop.f32.mrf.mxu0
    %v1390 = vadd.f32 0.0, %v1389
    %v1391 = vpop.f32.mrf.mxu0
    %v1392 = vpop.f32.mrf.mxu0
    %v1393 = vadd.f32 0.0, %v1392
    %v1394 = vpop.f32.mrf.mxu0
    %1395 = vdwg.mxu0
    %v1396 = vmax.f32 %v706, %v1142
    %v1397 = vmax.f32 %v707, %v1145
    %v1398 = vmax.f32 %v708, %v1150
    %v1399 = vmax.f32 %v709, %v1153
    %v1400 = vmax.f32 %v710, %v1158
    %v1401 = vmax.f32 %v711, %v1161
    %v1402 = vmax.f32 %v712, %v1166
    %v1403 = vmax.f32 %v713, %v1169
    %v1404 = vmax.f32 %v714, %v1174
    %v1405 = vmax.f32 %v715, %v1177
    %v1406 = vmax.f32 %v716, %v1182
    %v1407 = vmax.f32 %v717, %v1185
    %v1408 = vmax.f32 %v718, %v1190
    %v1409 = vmax.f32 %v719, %v1193
    %v1410 = vmax.f32 %v720, %v1198
    %v1411 = vmax.f32 %v721, %v1201
    %v1412 = vmax.f32 %v722, %v1206
    %v1413 = vmax.f32 %v723, %v1209
    %v1414 = vmax.f32 %v724, %v1214
    %v1415 = vmax.f32 %v725, %v1217
    %v1416 = vmax.f32 %v726, %v1222
    %v1417 = vmax.f32 %v727, %v1225
    %v1418 = vmax.f32 %v728, %v1230
    %v1419 = vmax.f32 %v729, %v1233
    %v1420 = vmax.f32 %v730, %v1238
    %v1421 = vmax.f32 %v731, %v1241
    %v1422 = vmax.f32 %v732, %v1246
    %v1423 = vmax.f32 %v733, %v1249
    %v1424 = vmax.f32 %v734, %v1254
    %v1425 = vmax.f32 %v735, %v1257
    %v1426 = vmax.f32 %v736, %v1262
    %v1427 = vmax.f32 %v737, %v1265
    %v1428 = vmax.f32 %v738, %v1270
    %v1429 = vmax.f32 %v739, %v1273
    %v1430 = vmax.f32 %v740, %v1278
    %v1431 = vmax.f32 %v741, %v1281
    %v1432 = vmax.f32 %v742, %v1286
    %v1433 = vmax.f32 %v743, %v1289
    %v1434 = vmax.f32 %v744, %v1294
    %v1435 = vmax.f32 %v745, %v1297
    %v1436 = vmax.f32 %v746, %v1302
    %v1437 = vmax.f32 %v747, %v1305
    %v1438 = vmax.f32 %v748, %v1310
    %v1439 = vmax.f32 %v749, %v1313
    %v1440 = vmax.f32 %v750, %v1318
    %v1441 = vmax.f32 %v751, %v1321
    %v1442 = vmax.f32 %v752, %v1326
    %v1443 = vmax.f32 %v753, %v1329
    %v1444 = vmax.f32 %v754, %v1334
    %v1445 = vmax.f32 %v755, %v1337
    %v1446 = vmax.f32 %v756, %v1342
    %v1447 = vmax.f32 %v757, %v1345
    %v1448 = vmax.f32 %v758, %v1350
    %v1449 = vmax.f32 %v759, %v1353
    %v1450 = vmax.f32 %v760, %v1358
    %v1451 = vmax.f32 %v761, %v1361
    %v1452 = vmax.f32 %v762, %v1366
    %v1453 = vmax.f32 %v763, %v1369
    %v1454 = vmax.f32 %v764, %v1374
    %v1455 = vmax.f32 %v765, %v1377
    %v1456 = vmax.f32 %v766, %v1382
    %v1457 = vmax.f32 %v767, %v1385
    %v1458 = vmax.f32 %v768, %v1390
    %v1459 = vmax.f32 %v769, %v1393
    %1460 = vst [vmem:[#allocation2] sm:$0xff] %v1396
    %1461 = vst [vmem:[#allocation2 + $0x8] sm:$0xff] %v1397
    %1462 = vst [vmem:[#allocation2 + $0x10] sm:$0xff] %v1398
    %1463 = vst [vmem:[#allocation2 + $0x18] sm:$0xff] %v1399
    %1464 = vst [vmem:[#allocation2 + $0x20] sm:$0xff] %v1400
    %1465 = vst [vmem:[#allocation2 + $0x28] sm:$0xff] %v1401
    %1466 = vst [vmem:[#allocation2 + $0x30] sm:$0xff] %v1402
    %1467 = vst [vmem:[#allocation2 + $0x38] sm:$0xff] %v1403
    %1468 = vst [vmem:[#allocation2 + $0x40] sm:$0xff] %v1404
    %1469 = vst [vmem:[#allocation2 + $0x48] sm:$0xff] %v1405
    %1470 = vst [vmem:[#allocation2 + $0x50] sm:$0xff] %v1406
    %1471 = vst [vmem:[#allocation2 + $0x58] sm:$0xff] %v1407
    %1472 = vst [vmem:[#allocation2 + $0x60] sm:$0xff] %v1408
    %1473 = vst [vmem:[#allocation2 + $0x68] sm:$0xff] %v1409
    %1474 = vst [vmem:[#allocation2 + $0x70] sm:$0xff] %v1410
    %1475 = vst [vmem:[#allocation2 + $0x78] sm:$0xff] %v1411
    %1476 = vst [vmem:[#allocation2 + $0x80] sm:$0xff] %v1412
    %1477 = vst [vmem:[#allocation2 + $0x88] sm:$0xff] %v1413
    %1478 = vst [vmem:[#allocation2 + $0x90] sm:$0xff] %v1414
    %1479 = vst [vmem:[#allocation2 + $0x98] sm:$0xff] %v1415
    %1480 = vst [vmem:[#allocation2 + $0xa0] sm:$0xff] %v1416
    %1481 = vst [vmem:[#allocation2 + $0xa8] sm:$0xff] %v1417
    %1482 = vst [vmem:[#allocation2 + $0xb0] sm:$0xff] %v1418
    %1483 = vst [vmem:[#allocation2 + $0xb8] sm:$0xff] %v1419
    %1484 = vst [vmem:[#allocation2 + $0xc0] sm:$0xff] %v1420
    %1485 = vst [vmem:[#allocation2 + $0xc8] sm:$0xff] %v1421
    %1486 = vst [vmem:[#allocation2 + $0xd0] sm:$0xff] %v1422
    %1487 = vst [vmem:[#allocation2 + $0xd8] sm:$0xff] %v1423
    %1488 = vst [vmem:[#allocation2 + $0xe0] sm:$0xff] %v1424
    %1489 = vst [vmem:[#allocation2 + $0xe8] sm:$0xff] %v1425
    %1490 = vst [vmem:[#allocation2 + $0xf0] sm:$0xff] %v1426
    %1491 = vst [vmem:[#allocation2 + $0xf8] sm:$0xff] %v1427
    %1492 = vst [vmem:[#allocation2 + $0x100] sm:$0xff] %v1428
    %1493 = vst [vmem:[#allocation2 + $0x108] sm:$0xff] %v1429
    %1494 = vst [vmem:[#allocation2 + $0x110] sm:$0xff] %v1430
    %1495 = vst [vmem:[#allocation2 + $0x118] sm:$0xff] %v1431
    %1496 = vst [vmem:[#allocation2 + $0x120] sm:$0xff] %v1432
    %1497 = vst [vmem:[#allocation2 + $0x128] sm:$0xff] %v1433
    %1498 = vst [vmem:[#allocation2 + $0x130] sm:$0xff] %v1434
    %1499 = vst [vmem:[#allocation2 + $0x138] sm:$0xff] %v1435
    %1500 = vst [vmem:[#allocation2 + $0x140] sm:$0xff] %v1436
    %1501 = vst [vmem:[#allocation2 + $0x148] sm:$0xff] %v1437
    %1502 = vst [vmem:[#allocation2 + $0x150] sm:$0xff] %v1438
    %1503 = vst [vmem:[#allocation2 + $0x158] sm:$0xff] %v1439
    %1504 = vst [vmem:[#allocation2 + $0x160] sm:$0xff] %v1440
    %1505 = vst [vmem:[#allocation2 + $0x168] sm:$0xff] %v1441
    %1506 = vst [vmem:[#allocation2 + $0x170] sm:$0xff] %v1442
    %1507 = vst [vmem:[#allocation2 + $0x178] sm:$0xff] %v1443
    %1508 = vst [vmem:[#allocation2 + $0x180] sm:$0xff] %v1444
    %1509 = vst [vmem:[#allocation2 + $0x188] sm:$0xff] %v1445
    %1510 = vst [vmem:[#allocation2 + $0x190] sm:$0xff] %v1446
    %1511 = vst [vmem:[#allocation2 + $0x198] sm:$0xff] %v1447
    %1512 = vst [vmem:[#allocation2 + $0x1a0] sm:$0xff] %v1448
    %1513 = vst [vmem:[#allocation2 + $0x1a8] sm:$0xff] %v1449
    %1514 = vst [vmem:[#allocation2 + $0x1b0] sm:$0xff] %v1450
    %1515 = vst [vmem:[#allocation2 + $0x1b8] sm:$0xff] %v1451
    %1516 = vst [vmem:[#allocation2 + $0x1c0] sm:$0xff] %v1452
    %1517 = vst [vmem:[#allocation2 + $0x1c8] sm:$0xff] %v1453
    %1518 = vst [vmem:[#allocation2 + $0x1d0] sm:$0xff] %v1454
    %1519 = vst [vmem:[#allocation2 + $0x1d8] sm:$0xff] %v1455
    %1520 = vst [vmem:[#allocation2 + $0x1e0] sm:$0xff] %v1456
    %1521 = vst [vmem:[#allocation2 + $0x1e8] sm:$0xff] %v1457
    %1522 = vst [vmem:[#allocation2 + $0x1f0] sm:$0xff] %v1458
    %1523 = vst [vmem:[#allocation2 + $0x1f8] sm:$0xff] %v1459
    %v1524 = vld [vmem:[#allocation2] sm:$0xff]
    %v1525 = vld [vmem:[#allocation2 + $0x8] sm:$0xff]
    %v1526 = vld [vmem:[#allocation2 + $0x10] sm:$0xff]
    %v1527 = vld [vmem:[#allocation2 + $0x18] sm:$0xff]
    %v1528 = vld [vmem:[#allocation2 + $0x20] sm:$0xff]
    %v1529 = vld [vmem:[#allocation2 + $0x28] sm:$0xff]
    %v1530 = vld [vmem:[#allocation2 + $0x30] sm:$0xff]
    %v1531 = vld [vmem:[#allocation2 + $0x38] sm:$0xff]
    %v1532 = vld [vmem:[#allocation2 + $0x40] sm:$0xff]
    %v1533 = vld [vmem:[#allocation2 + $0x48] sm:$0xff]
    %v1534 = vld [vmem:[#allocation2 + $0x50] sm:$0xff]
    %v1535 = vld [vmem:[#allocation2 + $0x58] sm:$0xff]
    %v1536 = vld [vmem:[#allocation2 + $0x60] sm:$0xff]
    %v1537 = vld [vmem:[#allocation2 + $0x68] sm:$0xff]
    %v1538 = vld [vmem:[#allocation2 + $0x70] sm:$0xff]
    %v1539 = vld [vmem:[#allocation2 + $0x78] sm:$0xff]
    %v1540 = vld [vmem:[#allocation2 + $0x80] sm:$0xff]
    %v1541 = vld [vmem:[#allocation2 + $0x88] sm:$0xff]
    %v1542 = vld [vmem:[#allocation2 + $0x90] sm:$0xff]
    %v1543 = vld [vmem:[#allocation2 + $0x98] sm:$0xff]
    %v1544 = vld [vmem:[#allocation2 + $0xa0] sm:$0xff]
    %v1545 = vld [vmem:[#allocation2 + $0xa8] sm:$0xff]
    %v1546 = vld [vmem:[#allocation2 + $0xb0] sm:$0xff]
    %v1547 = vld [vmem:[#allocation2 + $0xb8] sm:$0xff]
    %v1548 = vld [vmem:[#allocation2 + $0xc0] sm:$0xff]
    %v1549 = vld [vmem:[#allocation2 + $0xc8] sm:$0xff]
    %v1550 = vld [vmem:[#allocation2 + $0xd0] sm:$0xff]
    %v1551 = vld [vmem:[#allocation2 + $0xd8] sm:$0xff]
    %v1552 = vld [vmem:[#allocation2 + $0xe0] sm:$0xff]
    %v1553 = vld [vmem:[#allocation2 + $0xe8] sm:$0xff]
    %v1554 = vld [vmem:[#allocation2 + $0xf0] sm:$0xff]
    %v1555 = vld [vmem:[#allocation2 + $0xf8] sm:$0xff]
    %v1556 = vld [vmem:[#allocation2 + $0x100] sm:$0xff]
    %v1557 = vld [vmem:[#allocation2 + $0x108] sm:$0xff]
    %v1558 = vld [vmem:[#allocation2 + $0x110] sm:$0xff]
    %v1559 = vld [vmem:[#allocation2 + $0x118] sm:$0xff]
    %v1560 = vld [vmem:[#allocation2 + $0x120] sm:$0xff]
    %v1561 = vld [vmem:[#allocation2 + $0x128] sm:$0xff]
    %v1562 = vld [vmem:[#allocation2 + $0x130] sm:$0xff]
    %v1563 = vld [vmem:[#allocation2 + $0x138] sm:$0xff]
    %v1564 = vld [vmem:[#allocation2 + $0x140] sm:$0xff]
    %v1565 = vld [vmem:[#allocation2 + $0x148] sm:$0xff]
    %v1566 = vld [vmem:[#allocation2 + $0x150] sm:$0xff]
    %v1567 = vld [vmem:[#allocation2 + $0x158] sm:$0xff]
    %v1568 = vld [vmem:[#allocation2 + $0x160] sm:$0xff]
    %v1569 = vld [vmem:[#allocation2 + $0x168] sm:$0xff]
    %v1570 = vld [vmem:[#allocation2 + $0x170] sm:$0xff]
    %v1571 = vld [vmem:[#allocation2 + $0x178] sm:$0xff]
    %v1572 = vld [vmem:[#allocation2 + $0x180] sm:$0xff]
    %v1573 = vld [vmem:[#allocation2 + $0x188] sm:$0xff]
    %v1574 = vld [vmem:[#allocation2 + $0x190] sm:$0xff]
    %v1575 = vld [vmem:[#allocation2 + $0x198] sm:$0xff]
    %v1576 = vld [vmem:[#allocation2 + $0x1a0] sm:$0xff]
    %v1577 = vld [vmem:[#allocation2 + $0x1a8] sm:$0xff]
    %v1578 = vld [vmem:[#allocation2 + $0x1b0] sm:$0xff]
    %v1579 = vld [vmem:[#allocation2 + $0x1b8] sm:$0xff]
    %v1580 = vld [vmem:[#allocation2 + $0x1c0] sm:$0xff]
    %v1581 = vld [vmem:[#allocation2 + $0x1c8] sm:$0xff]
    %v1582 = vld [vmem:[#allocation2 + $0x1d0] sm:$0xff]
    %v1583 = vld [vmem:[#allocation2 + $0x1d8] sm:$0xff]
    %v1584 = vld [vmem:[#allocation2 + $0x1e0] sm:$0xff]
    %v1585 = vld [vmem:[#allocation2 + $0x1e8] sm:$0xff]
    %v1586 = vld [vmem:[#allocation2 + $0x1f0] sm:$0xff]
    %v1587 = vld [vmem:[#allocation2 + $0x1f8] sm:$0xff]
    %s1588 = scalar_lea.vmem %s0, 512
    %v1589 = vld [vmem:[%s1588] sm:$0xf]
    %v1590 = vld [vmem:[%s1588 + $0x4] sm:$0xf]
    %v1591 = vld [vmem:[%s1588 + $0x8] sm:$0xf]
    %v1592 = vld [vmem:[%s1588 + $0xc] sm:$0xf]
    %v1593 = vld [vmem:[%s1588 + $0x10] sm:$0xf]
    %v1594 = vld [vmem:[%s1588 + $0x14] sm:$0xf]
    %v1595 = vld [vmem:[%s1588 + $0x18] sm:$0xf]
    %v1596 = vld [vmem:[%s1588 + $0x1c] sm:$0xf]
    %v1597 = vld [vmem:[%s1588 + $0x20] sm:$0xf]
    %v1598 = vld [vmem:[%s1588 + $0x24] sm:$0xf]
    %v1599 = vld [vmem:[%s1588 + $0x28] sm:$0xf]
    %v1600 = vld [vmem:[%s1588 + $0x2c] sm:$0xf]
    %v1601 = vld [vmem:[%s1588 + $0x30] sm:$0xf]
    %v1602 = vld [vmem:[%s1588 + $0x34] sm:$0xf]
    %v1603 = vld [vmem:[%s1588 + $0x38] sm:$0xf]
    %v1604 = vld [vmem:[%s1588 + $0x3c] sm:$0xf]
    %v1605 = vld [vmem:[%s1588 + $0x40] sm:$0xf]
    %v1606 = vld [vmem:[%s1588 + $0x44] sm:$0xf]
    %v1607 = vld [vmem:[%s1588 + $0x48] sm:$0xf]
    %v1608 = vld [vmem:[%s1588 + $0x4c] sm:$0xf]
    %v1609 = vld [vmem:[%s1588 + $0x50] sm:$0xf]
    %v1610 = vld [vmem:[%s1588 + $0x54] sm:$0xf]
    %v1611 = vld [vmem:[%s1588 + $0x58] sm:$0xf]
    %v1612 = vld [vmem:[%s1588 + $0x5c] sm:$0xf]
    %v1613 = vld [vmem:[%s1588 + $0x60] sm:$0xf]
    %v1614 = vld [vmem:[%s1588 + $0x64] sm:$0xf]
    %v1615 = vld [vmem:[%s1588 + $0x68] sm:$0xf]
    %v1616 = vld [vmem:[%s1588 + $0x6c] sm:$0xf]
    %v1617 = vld [vmem:[%s1588 + $0x70] sm:$0xf]
    %v1618 = vld [vmem:[%s1588 + $0x74] sm:$0xf]
    %v1619 = vld [vmem:[%s1588 + $0x78] sm:$0xf]
    %v1620 = vld [vmem:[%s1588 + $0x7c] sm:$0xf]
    %v1621 = vld [vmem:[%s1588 + $0x80] sm:$0xf]
    %v1622 = vld [vmem:[%s1588 + $0x84] sm:$0xf]
    %v1623 = vld [vmem:[%s1588 + $0x88] sm:$0xf]
    %v1624 = vld [vmem:[%s1588 + $0x8c] sm:$0xf]
    %v1625 = vld [vmem:[%s1588 + $0x90] sm:$0xf]
    %v1626 = vld [vmem:[%s1588 + $0x94] sm:$0xf]
    %v1627 = vld [vmem:[%s1588 + $0x98] sm:$0xf]
    %v1628 = vld [vmem:[%s1588 + $0x9c] sm:$0xf]
    %v1629 = vld [vmem:[%s1588 + $0xa0] sm:$0xf]
    %v1630 = vld [vmem:[%s1588 + $0xa4] sm:$0xf]
    %v1631 = vld [vmem:[%s1588 + $0xa8] sm:$0xf]
    %v1632 = vld [vmem:[%s1588 + $0xac] sm:$0xf]
    %v1633 = vld [vmem:[%s1588 + $0xb0] sm:$0xf]
    %v1634 = vld [vmem:[%s1588 + $0xb4] sm:$0xf]
    %v1635 = vld [vmem:[%s1588 + $0xb8] sm:$0xf]
    %v1636 = vld [vmem:[%s1588 + $0xbc] sm:$0xf]
    %v1637 = vld [vmem:[%s1588 + $0xc0] sm:$0xf]
    %v1638 = vld [vmem:[%s1588 + $0xc4] sm:$0xf]
    %v1639 = vld [vmem:[%s1588 + $0xc8] sm:$0xf]
    %v1640 = vld [vmem:[%s1588 + $0xcc] sm:$0xf]
    %v1641 = vld [vmem:[%s1588 + $0xd0] sm:$0xf]
    %v1642 = vld [vmem:[%s1588 + $0xd4] sm:$0xf]
    %v1643 = vld [vmem:[%s1588 + $0xd8] sm:$0xf]
    %v1644 = vld [vmem:[%s1588 + $0xdc] sm:$0xf]
    %v1645 = vld [vmem:[%s1588 + $0xe0] sm:$0xf]
    %v1646 = vld [vmem:[%s1588 + $0xe4] sm:$0xf]
    %v1647 = vld [vmem:[%s1588 + $0xe8] sm:$0xf]
    %v1648 = vld [vmem:[%s1588 + $0xec] sm:$0xf]
    %v1649 = vld [vmem:[%s1588 + $0xf0] sm:$0xf]
    %v1650 = vld [vmem:[%s1588 + $0xf4] sm:$0xf]
    %v1651 = vld [vmem:[%s1588 + $0xf8] sm:$0xf]
    %v1652 = vld [vmem:[%s1588 + $0xfc] sm:$0xf]
    %v1653 = vld [vmem:[%s1] sm:$0xf]
    %v1654 = vld [vmem:[%s1 + $0x4] sm:$0xf]
    %v1655 = vld [vmem:[%s1 + $0x8] sm:$0xf]
    %v1656 = vld [vmem:[%s1 + $0xc] sm:$0xf]
    %v1721 = vunpack.c.l.b16 %v1589
    %v1722 = vunpack.c.l.b16 %v1590
    %v1723 = vunpack.c.l.b16 %v1591
    %v1724 = vunpack.c.l.b16 %v1592
    %v1725 = vunpack.c.l.b16 %v1593
    %v1726 = vunpack.c.l.b16 %v1594
    %v1727 = vunpack.c.l.b16 %v1595
    %v1728 = vunpack.c.l.b16 %v1596
    %v1729 = vunpack.c.l.b16 %v1597
    %v1730 = vunpack.c.l.b16 %v1598
    %v1731 = vunpack.c.l.b16 %v1599
    %v1732 = vunpack.c.l.b16 %v1600
    %v1733 = vunpack.c.l.b16 %v1601
    %v1734 = vunpack.c.l.b16 %v1602
    %v1735 = vunpack.c.l.b16 %v1603
    %v1736 = vunpack.c.l.b16 %v1604
    %v1737 = vunpack.c.l.b16 %v1605
    %v1738 = vunpack.c.l.b16 %v1606
    %v1739 = vunpack.c.l.b16 %v1607
    %v1740 = vunpack.c.l.b16 %v1608
    %v1741 = vunpack.c.l.b16 %v1609
    %v1742 = vunpack.c.l.b16 %v1610
    %v1743 = vunpack.c.l.b16 %v1611
    %v1744 = vunpack.c.l.b16 %v1612
    %v1745 = vunpack.c.l.b16 %v1613
    %v1746 = vunpack.c.l.b16 %v1614
    %v1747 = vunpack.c.l.b16 %v1615
    %v1748 = vunpack.c.l.b16 %v1616
    %v1749 = vunpack.c.l.b16 %v1617
    %v1750 = vunpack.c.l.b16 %v1618
    %v1751 = vunpack.c.l.b16 %v1619
    %v1752 = vunpack.c.l.b16 %v1620
    %v1753 = vunpack.c.l.b16 %v1621
    %v1754 = vunpack.c.l.b16 %v1622
    %v1755 = vunpack.c.l.b16 %v1623
    %v1756 = vunpack.c.l.b16 %v1624
    %v1757 = vunpack.c.l.b16 %v1625
    %v1758 = vunpack.c.l.b16 %v1626
    %v1759 = vunpack.c.l.b16 %v1627
    %v1760 = vunpack.c.l.b16 %v1628
    %v1761 = vunpack.c.l.b16 %v1629
    %v1762 = vunpack.c.l.b16 %v1630
    %v1763 = vunpack.c.l.b16 %v1631
    %v1764 = vunpack.c.l.b16 %v1632
    %v1765 = vunpack.c.l.b16 %v1633
    %v1766 = vunpack.c.l.b16 %v1634
    %v1767 = vunpack.c.l.b16 %v1635
    %v1768 = vunpack.c.l.b16 %v1636
    %v1769 = vunpack.c.l.b16 %v1637
    %v1770 = vunpack.c.l.b16 %v1638
    %v1771 = vunpack.c.l.b16 %v1639
    %v1772 = vunpack.c.l.b16 %v1640
    %v1773 = vunpack.c.l.b16 %v1641
    %v1774 = vunpack.c.l.b16 %v1642
    %v1775 = vunpack.c.l.b16 %v1643
    %v1776 = vunpack.c.l.b16 %v1644
    %v1777 = vunpack.c.l.b16 %v1645
    %v1778 = vunpack.c.l.b16 %v1646
    %v1779 = vunpack.c.l.b16 %v1647
    %v1780 = vunpack.c.l.b16 %v1648
    %v1781 = vunpack.c.l.b16 %v1649
    %v1782 = vunpack.c.l.b16 %v1650
    %v1783 = vunpack.c.l.b16 %v1651
    %v1784 = vunpack.c.l.b16 %v1652
    %v1785 = vpack.c.b16 %v1722, %v1721
    %v1786 = vpack.c.b16 %v1724, %v1723
    %v1787 = vpack.c.b16 %v1726, %v1725
    %v1788 = vpack.c.b16 %v1728, %v1727
    %v1789 = vpack.c.b16 %v1730, %v1729
    %v1790 = vpack.c.b16 %v1732, %v1731
    %v1791 = vpack.c.b16 %v1734, %v1733
    %v1792 = vpack.c.b16 %v1736, %v1735
    %v1793 = vpack.c.b16 %v1738, %v1737
    %v1794 = vpack.c.b16 %v1740, %v1739
    %v1795 = vpack.c.b16 %v1742, %v1741
    %v1796 = vpack.c.b16 %v1744, %v1743
    %v1797 = vpack.c.b16 %v1746, %v1745
    %v1798 = vpack.c.b16 %v1748, %v1747
    %v1799 = vpack.c.b16 %v1750, %v1749
    %v1800 = vpack.c.b16 %v1752, %v1751
    %v1801 = vpack.c.b16 %v1754, %v1753
    %v1802 = vpack.c.b16 %v1756, %v1755
    %v1803 = vpack.c.b16 %v1758, %v1757
    %v1804 = vpack.c.b16 %v1760, %v1759
    %v1805 = vpack.c.b16 %v1762, %v1761
    %v1806 = vpack.c.b16 %v1764, %v1763
    %v1807 = vpack.c.b16 %v1766, %v1765
    %v1808 = vpack.c.b16 %v1768, %v1767
    %v1809 = vpack.c.b16 %v1770, %v1769
    %v1810 = vpack.c.b16 %v1772, %v1771
    %v1811 = vpack.c.b16 %v1774, %v1773
    %v1812 = vpack.c.b16 %v1776, %v1775
    %v1813 = vpack.c.b16 %v1778, %v1777
    %v1814 = vpack.c.b16 %v1780, %v1779
    %v1815 = vpack.c.b16 %v1782, %v1781
    %v1816 = vpack.c.b16 %v1784, %v1783
    %v1821 = vunpack.c.l.b16 %v1653
    %v1822 = vunpack.c.l.b16 %v1654
    %v1823 = vunpack.c.l.b16 %v1655
    %v1824 = vunpack.c.l.b16 %v1656
    %v1825 = vpack.c.b16 %v1822, %v1821
    %v1826 = vpack.c.b16 %v1824, %v1823
    %v1830 = vsel %vm256, %v1785, 0
    %v1833 = vsel %vm256, %v1786, 0
    %v1836 = vsel %vm256, %v1787, 0
    %v1839 = vsel %vm256, %v1788, 0
    %v1842 = vsel %vm256, %v1789, 0
    %v1845 = vsel %vm256, %v1790, 0
    %v1848 = vsel %vm256, %v1791, 0
    %v1851 = vsel %vm256, %v1792, 0
    %v1854 = vsel %vm256, %v1793, 0
    %v1857 = vsel %vm256, %v1794, 0
    %v1860 = vsel %vm256, %v1795, 0
    %v1863 = vsel %vm256, %v1796, 0
    %v1866 = vsel %vm256, %v1797, 0
    %v1869 = vsel %vm256, %v1798, 0
    %v1872 = vsel %vm256, %v1799, 0
    %v1875 = vsel %vm256, %v1800, 0
    %v1878 = vsel %vm256, %v1801, 0
    %v1881 = vsel %vm256, %v1802, 0
    %v1884 = vsel %vm256, %v1803, 0
    %v1887 = vsel %vm256, %v1804, 0
    %v1890 = vsel %vm256, %v1805, 0
    %v1893 = vsel %vm256, %v1806, 0
    %v1896 = vsel %vm256, %v1807, 0
    %v1899 = vsel %vm256, %v1808, 0
    %v1902 = vsel %vm256, %v1809, 0
    %v1905 = vsel %vm256, %v1810, 0
    %v1908 = vsel %vm256, %v1811, 0
    %v1911 = vsel %vm256, %v1812, 0
    %v1914 = vsel %vm256, %v1813, 0
    %v1917 = vsel %vm256, %v1814, 0
    %v1920 = vsel %vm256, %v1815, 0
    %v1923 = vsel %vm256, %v1816, 0
    %1925 = vmatprep.subr.bf16.mxu0 0
    %1926 = vmatpush1.bf16.msra.mxu0 0
    %1927 = vmatprep.subr.bf16.mxu0 0
    %1928 = vmatpush1.bf16.msra.mxu0 0
    %1929 = vmatprep.subr.bf16.mxu0 0
    %1930 = vmatpush1.bf16.msra.mxu0 0
    %1931 = vmatprep.subr.bf16.mxu0 0
    %1932 = vmatpush1.bf16.msra.mxu0 0
    %1933 = vmatprep.subr.bf16.mxu0 0
    %1934 = vmatpush1.bf16.msra.mxu0 0
    %1935 = vmatprep.subr.bf16.mxu0 0
    %1936 = vmatpush1.bf16.msra.mxu0 0
    %1937 = vmatprep.subr.bf16.mxu0 0
    %1938 = vmatpush1.bf16.msra.mxu0 %v1826
    %1939 = vmatprep.subr.bf16.mxu0 0
    %1940 = vmatpush1.bf16.msra.mxu0 %v1825
    %1941 = vmatprep.subr.bf16.mxu0 0
    %1942 = vmatpush2.bf16.msra.mxu0 0
    %1943 = vmatprep.subr.bf16.mxu0 0
    %1944 = vmatpush2.bf16.msra.mxu0 0
    %1945 = vmatprep.subr.bf16.mxu0 0
    %1946 = vmatpush2.bf16.msra.mxu0 0
    %1947 = vmatprep.subr.bf16.mxu0 0
    %1948 = vmatpush2.bf16.msra.mxu0 0
    %1949 = vmatprep.subr.bf16.mxu0 0
    %1950 = vmatpush2.bf16.msra.mxu0 0
    %1951 = vmatprep.subr.bf16.mxu0 0
    %1952 = vmatpush2.bf16.msra.mxu0 0
    %1953 = vmatprep.subr.bf16.mxu0 0
    %1954 = vmatpush2.bf16.msra.mxu0 0
    %1955 = vmatprep.subr.bf16.mxu0 0
    %1956 = vmatpush2.bf16.msra.mxu0 0
    %1957 = vmatprep.mubr.bf16.mxu0 0
    %1958 = vmatmul.mubr.bf16.gmra.mxu0 %v1830
    %v1959 = vpop.f32.mrf.mxu0
    %v1960 = vadd.f32 0.0, %v1959
    %v1961 = vpop.f32.mrf.mxu0
    %v1962 = vpop.f32.mrf.mxu0
    %v1963 = vadd.f32 0.0, %v1962
    %v1964 = vpop.f32.mrf.mxu0
    %1965 = vmatprep.mubr.bf16.mxu0 0
    %1966 = vmatmul.mubr.bf16.gmra.mxu0 %v1833
    %v1967 = vpop.f32.mrf.mxu0
    %v1968 = vadd.f32 0.0, %v1967
    %v1969 = vpop.f32.mrf.mxu0
    %v1970 = vpop.f32.mrf.mxu0
    %v1971 = vadd.f32 0.0, %v1970
    %v1972 = vpop.f32.mrf.mxu0
    %1973 = vmatprep.mubr.bf16.mxu0 0
    %1974 = vmatmul.mubr.bf16.gmra.mxu0 %v1836
    %v1975 = vpop.f32.mrf.mxu0
    %v1976 = vadd.f32 0.0, %v1975
    %v1977 = vpop.f32.mrf.mxu0
    %v1978 = vpop.f32.mrf.mxu0
    %v1979 = vadd.f32 0.0, %v1978
    %v1980 = vpop.f32.mrf.mxu0
    %1981 = vmatprep.mubr.bf16.mxu0 0
    %1982 = vmatmul.mubr.bf16.gmra.mxu0 %v1839
    %v1983 = vpop.f32.mrf.mxu0
    %v1984 = vadd.f32 0.0, %v1983
    %v1985 = vpop.f32.mrf.mxu0
    %v1986 = vpop.f32.mrf.mxu0
    %v1987 = vadd.f32 0.0, %v1986
    %v1988 = vpop.f32.mrf.mxu0
    %1989 = vmatprep.mubr.bf16.mxu0 0
    %1990 = vmatmul.mubr.bf16.gmra.mxu0 %v1842
    %v1991 = vpop.f32.mrf.mxu0
    %v1992 = vadd.f32 0.0, %v1991
    %v1993 = vpop.f32.mrf.mxu0
    %v1994 = vpop.f32.mrf.mxu0
    %v1995 = vadd.f32 0.0, %v1994
    %v1996 = vpop.f32.mrf.mxu0
    %1997 = vmatprep.mubr.bf16.mxu0 0
    %1998 = vmatmul.mubr.bf16.gmra.mxu0 %v1845
    %v1999 = vpop.f32.mrf.mxu0
    %v2000 = vadd.f32 0.0, %v1999
    %v2001 = vpop.f32.mrf.mxu0
    %v2002 = vpop.f32.mrf.mxu0
    %v2003 = vadd.f32 0.0, %v2002
    %v2004 = vpop.f32.mrf.mxu0
    %2005 = vmatprep.mubr.bf16.mxu0 0
    %2006 = vmatmul.mubr.bf16.gmra.mxu0 %v1848
    %v2007 = vpop.f32.mrf.mxu0
    %v2008 = vadd.f32 0.0, %v2007
    %v2009 = vpop.f32.mrf.mxu0
    %v2010 = vpop.f32.mrf.mxu0
    %v2011 = vadd.f32 0.0, %v2010
    %v2012 = vpop.f32.mrf.mxu0
    %2013 = vmatprep.mubr.bf16.mxu0 0
    %2014 = vmatmul.mubr.bf16.gmra.mxu0 %v1851
    %v2015 = vpop.f32.mrf.mxu0
    %v2016 = vadd.f32 0.0, %v2015
    %v2017 = vpop.f32.mrf.mxu0
    %v2018 = vpop.f32.mrf.mxu0
    %v2019 = vadd.f32 0.0, %v2018
    %v2020 = vpop.f32.mrf.mxu0
    %2021 = vmatprep.mubr.bf16.mxu0 0
    %2022 = vmatmul.mubr.bf16.gmra.mxu0 %v1854
    %v2023 = vpop.f32.mrf.mxu0
    %v2024 = vadd.f32 0.0, %v2023
    %v2025 = vpop.f32.mrf.mxu0
    %v2026 = vpop.f32.mrf.mxu0
    %v2027 = vadd.f32 0.0, %v2026
    %v2028 = vpop.f32.mrf.mxu0
    %2029 = vmatprep.mubr.bf16.mxu0 0
    %2030 = vmatmul.mubr.bf16.gmra.mxu0 %v1857
    %v2031 = vpop.f32.mrf.mxu0
    %v2032 = vadd.f32 0.0, %v2031
    %v2033 = vpop.f32.mrf.mxu0
    %v2034 = vpop.f32.mrf.mxu0
    %v2035 = vadd.f32 0.0, %v2034
    %v2036 = vpop.f32.mrf.mxu0
    %2037 = vmatprep.mubr.bf16.mxu0 0
    %2038 = vmatmul.mubr.bf16.gmra.mxu0 %v1860
    %v2039 = vpop.f32.mrf.mxu0
    %v2040 = vadd.f32 0.0, %v2039
    %v2041 = vpop.f32.mrf.mxu0
    %v2042 = vpop.f32.mrf.mxu0
    %v2043 = vadd.f32 0.0, %v2042
    %v2044 = vpop.f32.mrf.mxu0
    %2045 = vmatprep.mubr.bf16.mxu0 0
    %2046 = vmatmul.mubr.bf16.gmra.mxu0 %v1863
    %v2047 = vpop.f32.mrf.mxu0
    %v2048 = vadd.f32 0.0, %v2047
    %v2049 = vpop.f32.mrf.mxu0
    %v2050 = vpop.f32.mrf.mxu0
    %v2051 = vadd.f32 0.0, %v2050
    %v2052 = vpop.f32.mrf.mxu0
    %2053 = vmatprep.mubr.bf16.mxu0 0
    %2054 = vmatmul.mubr.bf16.gmra.mxu0 %v1866
    %v2055 = vpop.f32.mrf.mxu0
    %v2056 = vadd.f32 0.0, %v2055
    %v2057 = vpop.f32.mrf.mxu0
    %v2058 = vpop.f32.mrf.mxu0
    %v2059 = vadd.f32 0.0, %v2058
    %v2060 = vpop.f32.mrf.mxu0
    %2061 = vmatprep.mubr.bf16.mxu0 0
    %2062 = vmatmul.mubr.bf16.gmra.mxu0 %v1869
    %v2063 = vpop.f32.mrf.mxu0
    %v2064 = vadd.f32 0.0, %v2063
    %v2065 = vpop.f32.mrf.mxu0
    %v2066 = vpop.f32.mrf.mxu0
    %v2067 = vadd.f32 0.0, %v2066
    %v2068 = vpop.f32.mrf.mxu0
    %2069 = vmatprep.mubr.bf16.mxu0 0
    %2070 = vmatmul.mubr.bf16.gmra.mxu0 %v1872
    %v2071 = vpop.f32.mrf.mxu0
    %v2072 = vadd.f32 0.0, %v2071
    %v2073 = vpop.f32.mrf.mxu0
    %v2074 = vpop.f32.mrf.mxu0
    %v2075 = vadd.f32 0.0, %v2074
    %v2076 = vpop.f32.mrf.mxu0
    %2077 = vmatprep.mubr.bf16.mxu0 0
    %2078 = vmatmul.mubr.bf16.gmra.mxu0 %v1875
    %v2079 = vpop.f32.mrf.mxu0
    %v2080 = vadd.f32 0.0, %v2079
    %v2081 = vpop.f32.mrf.mxu0
    %v2082 = vpop.f32.mrf.mxu0
    %v2083 = vadd.f32 0.0, %v2082
    %v2084 = vpop.f32.mrf.mxu0
    %2085 = vmatprep.mubr.bf16.mxu0 0
    %2086 = vmatmul.mubr.bf16.gmra.mxu0 %v1878
    %v2087 = vpop.f32.mrf.mxu0
    %v2088 = vadd.f32 0.0, %v2087
    %v2089 = vpop.f32.mrf.mxu0
    %v2090 = vpop.f32.mrf.mxu0
    %v2091 = vadd.f32 0.0, %v2090
    %v2092 = vpop.f32.mrf.mxu0
    %2093 = vmatprep.mubr.bf16.mxu0 0
    %2094 = vmatmul.mubr.bf16.gmra.mxu0 %v1881
    %v2095 = vpop.f32.mrf.mxu0
    %v2096 = vadd.f32 0.0, %v2095
    %v2097 = vpop.f32.mrf.mxu0
    %v2098 = vpop.f32.mrf.mxu0
    %v2099 = vadd.f32 0.0, %v2098
    %v2100 = vpop.f32.mrf.mxu0
    %2101 = vmatprep.mubr.bf16.mxu0 0
    %2102 = vmatmul.mubr.bf16.gmra.mxu0 %v1884
    %v2103 = vpop.f32.mrf.mxu0
    %v2104 = vadd.f32 0.0, %v2103
    %v2105 = vpop.f32.mrf.mxu0
    %v2106 = vpop.f32.mrf.mxu0
    %v2107 = vadd.f32 0.0, %v2106
    %v2108 = vpop.f32.mrf.mxu0
    %2109 = vmatprep.mubr.bf16.mxu0 0
    %2110 = vmatmul.mubr.bf16.gmra.mxu0 %v1887
    %v2111 = vpop.f32.mrf.mxu0
    %v2112 = vadd.f32 0.0, %v2111
    %v2113 = vpop.f32.mrf.mxu0
    %v2114 = vpop.f32.mrf.mxu0
    %v2115 = vadd.f32 0.0, %v2114
    %v2116 = vpop.f32.mrf.mxu0
    %2117 = vmatprep.mubr.bf16.mxu0 0
    %2118 = vmatmul.mubr.bf16.gmra.mxu0 %v1890
    %v2119 = vpop.f32.mrf.mxu0
    %v2120 = vadd.f32 0.0, %v2119
    %v2121 = vpop.f32.mrf.mxu0
    %v2122 = vpop.f32.mrf.mxu0
    %v2123 = vadd.f32 0.0, %v2122
    %v2124 = vpop.f32.mrf.mxu0
    %2125 = vmatprep.mubr.bf16.mxu0 0
    %2126 = vmatmul.mubr.bf16.gmra.mxu0 %v1893
    %v2127 = vpop.f32.mrf.mxu0
    %v2128 = vadd.f32 0.0, %v2127
    %v2129 = vpop.f32.mrf.mxu0
    %v2130 = vpop.f32.mrf.mxu0
    %v2131 = vadd.f32 0.0, %v2130
    %v2132 = vpop.f32.mrf.mxu0
    %2133 = vmatprep.mubr.bf16.mxu0 0
    %2134 = vmatmul.mubr.bf16.gmra.mxu0 %v1896
    %v2135 = vpop.f32.mrf.mxu0
    %v2136 = vadd.f32 0.0, %v2135
    %v2137 = vpop.f32.mrf.mxu0
    %v2138 = vpop.f32.mrf.mxu0
    %v2139 = vadd.f32 0.0, %v2138
    %v2140 = vpop.f32.mrf.mxu0
    %2141 = vmatprep.mubr.bf16.mxu0 0
    %2142 = vmatmul.mubr.bf16.gmra.mxu0 %v1899
    %v2143 = vpop.f32.mrf.mxu0
    %v2144 = vadd.f32 0.0, %v2143
    %v2145 = vpop.f32.mrf.mxu0
    %v2146 = vpop.f32.mrf.mxu0
    %v2147 = vadd.f32 0.0, %v2146
    %v2148 = vpop.f32.mrf.mxu0
    %2149 = vmatprep.mubr.bf16.mxu0 0
    %2150 = vmatmul.mubr.bf16.gmra.mxu0 %v1902
    %v2151 = vpop.f32.mrf.mxu0
    %v2152 = vadd.f32 0.0, %v2151
    %v2153 = vpop.f32.mrf.mxu0
    %v2154 = vpop.f32.mrf.mxu0
    %v2155 = vadd.f32 0.0, %v2154
    %v2156 = vpop.f32.mrf.mxu0
    %2157 = vmatprep.mubr.bf16.mxu0 0
    %2158 = vmatmul.mubr.bf16.gmra.mxu0 %v1905
    %v2159 = vpop.f32.mrf.mxu0
    %v2160 = vadd.f32 0.0, %v2159
    %v2161 = vpop.f32.mrf.mxu0
    %v2162 = vpop.f32.mrf.mxu0
    %v2163 = vadd.f32 0.0, %v2162
    %v2164 = vpop.f32.mrf.mxu0
    %2165 = vmatprep.mubr.bf16.mxu0 0
    %2166 = vmatmul.mubr.bf16.gmra.mxu0 %v1908
    %v2167 = vpop.f32.mrf.mxu0
    %v2168 = vadd.f32 0.0, %v2167
    %v2169 = vpop.f32.mrf.mxu0
    %v2170 = vpop.f32.mrf.mxu0
    %v2171 = vadd.f32 0.0, %v2170
    %v2172 = vpop.f32.mrf.mxu0
    %2173 = vmatprep.mubr.bf16.mxu0 0
    %2174 = vmatmul.mubr.bf16.gmra.mxu0 %v1911
    %v2175 = vpop.f32.mrf.mxu0
    %v2176 = vadd.f32 0.0, %v2175
    %v2177 = vpop.f32.mrf.mxu0
    %v2178 = vpop.f32.mrf.mxu0
    %v2179 = vadd.f32 0.0, %v2178
    %v2180 = vpop.f32.mrf.mxu0
    %2181 = vmatprep.mubr.bf16.mxu0 0
    %2182 = vmatmul.mubr.bf16.gmra.mxu0 %v1914
    %v2183 = vpop.f32.mrf.mxu0
    %v2184 = vadd.f32 0.0, %v2183
    %v2185 = vpop.f32.mrf.mxu0
    %v2186 = vpop.f32.mrf.mxu0
    %v2187 = vadd.f32 0.0, %v2186
    %v2188 = vpop.f32.mrf.mxu0
    %2189 = vmatprep.mubr.bf16.mxu0 0
    %2190 = vmatmul.mubr.bf16.gmra.mxu0 %v1917
    %v2191 = vpop.f32.mrf.mxu0
    %v2192 = vadd.f32 0.0, %v2191
    %v2193 = vpop.f32.mrf.mxu0
    %v2194 = vpop.f32.mrf.mxu0
    %v2195 = vadd.f32 0.0, %v2194
    %v2196 = vpop.f32.mrf.mxu0
    %2197 = vmatprep.mubr.bf16.mxu0 0
    %2198 = vmatmul.mubr.bf16.gmra.mxu0 %v1920
    %v2199 = vpop.f32.mrf.mxu0
    %v2200 = vadd.f32 0.0, %v2199
    %v2201 = vpop.f32.mrf.mxu0
    %v2202 = vpop.f32.mrf.mxu0
    %v2203 = vadd.f32 0.0, %v2202
    %v2204 = vpop.f32.mrf.mxu0
    %2205 = vmatprep.mubr.bf16.mxu0 0
    %2206 = vmatmul.mubr.bf16.gmra.mxu0 %v1923
    %v2207 = vpop.f32.mrf.mxu0
    %v2208 = vadd.f32 0.0, %v2207
    %v2209 = vpop.f32.mrf.mxu0
    %v2210 = vpop.f32.mrf.mxu0
    %v2211 = vadd.f32 0.0, %v2210
    %v2212 = vpop.f32.mrf.mxu0
    %2213 = vdwg.mxu0
    %v2214 = vmax.f32 %v1524, %v1960
    %v2215 = vmax.f32 %v1525, %v1963
    %v2216 = vmax.f32 %v1526, %v1968
    %v2217 = vmax.f32 %v1527, %v1971
    %v2218 = vmax.f32 %v1528, %v1976
    %v2219 = vmax.f32 %v1529, %v1979
    %v2220 = vmax.f32 %v1530, %v1984
    %v2221 = vmax.f32 %v1531, %v1987
    %v2222 = vmax.f32 %v1532, %v1992
    %v2223 = vmax.f32 %v1533, %v1995
    %v2224 = vmax.f32 %v1534, %v2000
    %v2225 = vmax.f32 %v1535, %v2003
    %v2226 = vmax.f32 %v1536, %v2008
    %v2227 = vmax.f32 %v1537, %v2011
    %v2228 = vmax.f32 %v1538, %v2016
    %v2229 = vmax.f32 %v1539, %v2019
    %v2230 = vmax.f32 %v1540, %v2024
    %v2231 = vmax.f32 %v1541, %v2027
    %v2232 = vmax.f32 %v1542, %v2032
    %v2233 = vmax.f32 %v1543, %v2035
    %v2234 = vmax.f32 %v1544, %v2040
    %v2235 = vmax.f32 %v1545, %v2043
    %v2236 = vmax.f32 %v1546, %v2048
    %v2237 = vmax.f32 %v1547, %v2051
    %v2238 = vmax.f32 %v1548, %v2056
    %v2239 = vmax.f32 %v1549, %v2059
    %v2240 = vmax.f32 %v1550, %v2064
    %v2241 = vmax.f32 %v1551, %v2067
    %v2242 = vmax.f32 %v1552, %v2072
    %v2243 = vmax.f32 %v1553, %v2075
    %v2244 = vmax.f32 %v1554, %v2080
    %v2245 = vmax.f32 %v1555, %v2083
    %v2246 = vmax.f32 %v1556, %v2088
    %v2247 = vmax.f32 %v1557, %v2091
    %v2248 = vmax.f32 %v1558, %v2096
    %v2249 = vmax.f32 %v1559, %v2099
    %v2250 = vmax.f32 %v1560, %v2104
    %v2251 = vmax.f32 %v1561, %v2107
    %v2252 = vmax.f32 %v1562, %v2112
    %v2253 = vmax.f32 %v1563, %v2115
    %v2254 = vmax.f32 %v1564, %v2120
    %v2255 = vmax.f32 %v1565, %v2123
    %v2256 = vmax.f32 %v1566, %v2128
    %v2257 = vmax.f32 %v1567, %v2131
    %v2258 = vmax.f32 %v1568, %v2136
    %v2259 = vmax.f32 %v1569, %v2139
    %v2260 = vmax.f32 %v1570, %v2144
    %v2261 = vmax.f32 %v1571, %v2147
    %v2262 = vmax.f32 %v1572, %v2152
    %v2263 = vmax.f32 %v1573, %v2155
    %v2264 = vmax.f32 %v1574, %v2160
    %v2265 = vmax.f32 %v1575, %v2163
    %v2266 = vmax.f32 %v1576, %v2168
    %v2267 = vmax.f32 %v1577, %v2171
    %v2268 = vmax.f32 %v1578, %v2176
    %v2269 = vmax.f32 %v1579, %v2179
    %v2270 = vmax.f32 %v1580, %v2184
    %v2271 = vmax.f32 %v1581, %v2187
    %v2272 = vmax.f32 %v1582, %v2192
    %v2273 = vmax.f32 %v1583, %v2195
    %v2274 = vmax.f32 %v1584, %v2200
    %v2275 = vmax.f32 %v1585, %v2203
    %v2276 = vmax.f32 %v1586, %v2208
    %v2277 = vmax.f32 %v1587, %v2211
    %2278 = vst [vmem:[#allocation2] sm:$0xff] %v2214
    %2279 = vst [vmem:[#allocation2 + $0x8] sm:$0xff] %v2215
    %2280 = vst [vmem:[#allocation2 + $0x10] sm:$0xff] %v2216
    %2281 = vst [vmem:[#allocation2 + $0x18] sm:$0xff] %v2217
    %2282 = vst [vmem:[#allocation2 + $0x20] sm:$0xff] %v2218
    %2283 = vst [vmem:[#allocation2 + $0x28] sm:$0xff] %v2219
    %2284 = vst [vmem:[#allocation2 + $0x30] sm:$0xff] %v2220
    %2285 = vst [vmem:[#allocation2 + $0x38] sm:$0xff] %v2221
    %2286 = vst [vmem:[#allocation2 + $0x40] sm:$0xff] %v2222
    %2287 = vst [vmem:[#allocation2 + $0x48] sm:$0xff] %v2223
    %2288 = vst [vmem:[#allocation2 + $0x50] sm:$0xff] %v2224
    %2289 = vst [vmem:[#allocation2 + $0x58] sm:$0xff] %v2225
    %2290 = vst [vmem:[#allocation2 + $0x60] sm:$0xff] %v2226
    %2291 = vst [vmem:[#allocation2 + $0x68] sm:$0xff] %v2227
    %2292 = vst [vmem:[#allocation2 + $0x70] sm:$0xff] %v2228
    %2293 = vst [vmem:[#allocation2 + $0x78] sm:$0xff] %v2229
    %2294 = vst [vmem:[#allocation2 + $0x80] sm:$0xff] %v2230
    %2295 = vst [vmem:[#allocation2 + $0x88] sm:$0xff] %v2231
    %2296 = vst [vmem:[#allocation2 + $0x90] sm:$0xff] %v2232
    %2297 = vst [vmem:[#allocation2 + $0x98] sm:$0xff] %v2233
    %2298 = vst [vmem:[#allocation2 + $0xa0] sm:$0xff] %v2234
    %2299 = vst [vmem:[#allocation2 + $0xa8] sm:$0xff] %v2235
    %2300 = vst [vmem:[#allocation2 + $0xb0] sm:$0xff] %v2236
    %2301 = vst [vmem:[#allocation2 + $0xb8] sm:$0xff] %v2237
    %2302 = vst [vmem:[#allocation2 + $0xc0] sm:$0xff] %v2238
    %2303 = vst [vmem:[#allocation2 + $0xc8] sm:$0xff] %v2239
    %2304 = vst [vmem:[#allocation2 + $0xd0] sm:$0xff] %v2240
    %2305 = vst [vmem:[#allocation2 + $0xd8] sm:$0xff] %v2241
    %2306 = vst [vmem:[#allocation2 + $0xe0] sm:$0xff] %v2242
    %2307 = vst [vmem:[#allocation2 + $0xe8] sm:$0xff] %v2243
    %2308 = vst [vmem:[#allocation2 + $0xf0] sm:$0xff] %v2244
    %2309 = vst [vmem:[#allocation2 + $0xf8] sm:$0xff] %v2245
    %2310 = vst [vmem:[#allocation2 + $0x100] sm:$0xff] %v2246
    %2311 = vst [vmem:[#allocation2 + $0x108] sm:$0xff] %v2247
    %2312 = vst [vmem:[#allocation2 + $0x110] sm:$0xff] %v2248
    %2313 = vst [vmem:[#allocation2 + $0x118] sm:$0xff] %v2249
    %2314 = vst [vmem:[#allocation2 + $0x120] sm:$0xff] %v2250
    %2315 = vst [vmem:[#allocation2 + $0x128] sm:$0xff] %v2251
    %2316 = vst [vmem:[#allocation2 + $0x130] sm:$0xff] %v2252
    %2317 = vst [vmem:[#allocation2 + $0x138] sm:$0xff] %v2253
    %2318 = vst [vmem:[#allocation2 + $0x140] sm:$0xff] %v2254
    %2319 = vst [vmem:[#allocation2 + $0x148] sm:$0xff] %v2255
    %2320 = vst [vmem:[#allocation2 + $0x150] sm:$0xff] %v2256
    %2321 = vst [vmem:[#allocation2 + $0x158] sm:$0xff] %v2257
    %2322 = vst [vmem:[#allocation2 + $0x160] sm:$0xff] %v2258
    %2323 = vst [vmem:[#allocation2 + $0x168] sm:$0xff] %v2259
    %2324 = vst [vmem:[#allocation2 + $0x170] sm:$0xff] %v2260
    %2325 = vst [vmem:[#allocation2 + $0x178] sm:$0xff] %v2261
    %2326 = vst [vmem:[#allocation2 + $0x180] sm:$0xff] %v2262
    %2327 = vst [vmem:[#allocation2 + $0x188] sm:$0xff] %v2263
    %2328 = vst [vmem:[#allocation2 + $0x190] sm:$0xff] %v2264
    %2329 = vst [vmem:[#allocation2 + $0x198] sm:$0xff] %v2265
    %2330 = vst [vmem:[#allocation2 + $0x1a0] sm:$0xff] %v2266
    %2331 = vst [vmem:[#allocation2 + $0x1a8] sm:$0xff] %v2267
    %2332 = vst [vmem:[#allocation2 + $0x1b0] sm:$0xff] %v2268
    %2333 = vst [vmem:[#allocation2 + $0x1b8] sm:$0xff] %v2269
    %2334 = vst [vmem:[#allocation2 + $0x1c0] sm:$0xff] %v2270
    %2335 = vst [vmem:[#allocation2 + $0x1c8] sm:$0xff] %v2271
    %2336 = vst [vmem:[#allocation2 + $0x1d0] sm:$0xff] %v2272
    %2337 = vst [vmem:[#allocation2 + $0x1d8] sm:$0xff] %v2273
    %2338 = vst [vmem:[#allocation2 + $0x1e0] sm:$0xff] %v2274
    %2339 = vst [vmem:[#allocation2 + $0x1e8] sm:$0xff] %v2275
    %2340 = vst [vmem:[#allocation2 + $0x1f0] sm:$0xff] %v2276
    %2341 = vst [vmem:[#allocation2 + $0x1f8] sm:$0xff] %v2277
    %v2342 = vld [vmem:[#allocation2] sm:$0xff]
    %v2343 = vld [vmem:[#allocation2 + $0x8] sm:$0xff]
    %v2344 = vld [vmem:[#allocation2 + $0x10] sm:$0xff]
    %v2345 = vld [vmem:[#allocation2 + $0x18] sm:$0xff]
    %v2346 = vld [vmem:[#allocation2 + $0x20] sm:$0xff]
    %v2347 = vld [vmem:[#allocation2 + $0x28] sm:$0xff]
    %v2348 = vld [vmem:[#allocation2 + $0x30] sm:$0xff]
    %v2349 = vld [vmem:[#allocation2 + $0x38] sm:$0xff]
    %v2350 = vld [vmem:[#allocation2 + $0x40] sm:$0xff]
    %v2351 = vld [vmem:[#allocation2 + $0x48] sm:$0xff]
    %v2352 = vld [vmem:[#allocation2 + $0x50] sm:$0xff]
    %v2353 = vld [vmem:[#allocation2 + $0x58] sm:$0xff]
    %v2354 = vld [vmem:[#allocation2 + $0x60] sm:$0xff]
    %v2355 = vld [vmem:[#allocation2 + $0x68] sm:$0xff]
    %v2356 = vld [vmem:[#allocation2 + $0x70] sm:$0xff]
    %v2357 = vld [vmem:[#allocation2 + $0x78] sm:$0xff]
    %v2358 = vld [vmem:[#allocation2 + $0x80] sm:$0xff]
    %v2359 = vld [vmem:[#allocation2 + $0x88] sm:$0xff]
    %v2360 = vld [vmem:[#allocation2 + $0x90] sm:$0xff]
    %v2361 = vld [vmem:[#allocation2 + $0x98] sm:$0xff]
    %v2362 = vld [vmem:[#allocation2 + $0xa0] sm:$0xff]
    %v2363 = vld [vmem:[#allocation2 + $0xa8] sm:$0xff]
    %v2364 = vld [vmem:[#allocation2 + $0xb0] sm:$0xff]
    %v2365 = vld [vmem:[#allocation2 + $0xb8] sm:$0xff]
    %v2366 = vld [vmem:[#allocation2 + $0xc0] sm:$0xff]
    %v2367 = vld [vmem:[#allocation2 + $0xc8] sm:$0xff]
    %v2368 = vld [vmem:[#allocation2 + $0xd0] sm:$0xff]
    %v2369 = vld [vmem:[#allocation2 + $0xd8] sm:$0xff]
    %v2370 = vld [vmem:[#allocation2 + $0xe0] sm:$0xff]
    %v2371 = vld [vmem:[#allocation2 + $0xe8] sm:$0xff]
    %v2372 = vld [vmem:[#allocation2 + $0xf0] sm:$0xff]
    %v2373 = vld [vmem:[#allocation2 + $0xf8] sm:$0xff]
    %v2374 = vld [vmem:[#allocation2 + $0x100] sm:$0xff]
    %v2375 = vld [vmem:[#allocation2 + $0x108] sm:$0xff]
    %v2376 = vld [vmem:[#allocation2 + $0x110] sm:$0xff]
    %v2377 = vld [vmem:[#allocation2 + $0x118] sm:$0xff]
    %v2378 = vld [vmem:[#allocation2 + $0x120] sm:$0xff]
    %v2379 = vld [vmem:[#allocation2 + $0x128] sm:$0xff]
    %v2380 = vld [vmem:[#allocation2 + $0x130] sm:$0xff]
    %v2381 = vld [vmem:[#allocation2 + $0x138] sm:$0xff]
    %v2382 = vld [vmem:[#allocation2 + $0x140] sm:$0xff]
    %v2383 = vld [vmem:[#allocation2 + $0x148] sm:$0xff]
    %v2384 = vld [vmem:[#allocation2 + $0x150] sm:$0xff]
    %v2385 = vld [vmem:[#allocation2 + $0x158] sm:$0xff]
    %v2386 = vld [vmem:[#allocation2 + $0x160] sm:$0xff]
    %v2387 = vld [vmem:[#allocation2 + $0x168] sm:$0xff]
    %v2388 = vld [vmem:[#allocation2 + $0x170] sm:$0xff]
    %v2389 = vld [vmem:[#allocation2 + $0x178] sm:$0xff]
    %v2390 = vld [vmem:[#allocation2 + $0x180] sm:$0xff]
    %v2391 = vld [vmem:[#allocation2 + $0x188] sm:$0xff]
    %v2392 = vld [vmem:[#allocation2 + $0x190] sm:$0xff]
    %v2393 = vld [vmem:[#allocation2 + $0x198] sm:$0xff]
    %v2394 = vld [vmem:[#allocation2 + $0x1a0] sm:$0xff]
    %v2395 = vld [vmem:[#allocation2 + $0x1a8] sm:$0xff]
    %v2396 = vld [vmem:[#allocation2 + $0x1b0] sm:$0xff]
    %v2397 = vld [vmem:[#allocation2 + $0x1b8] sm:$0xff]
    %v2398 = vld [vmem:[#allocation2 + $0x1c0] sm:$0xff]
    %v2399 = vld [vmem:[#allocation2 + $0x1c8] sm:$0xff]
    %v2400 = vld [vmem:[#allocation2 + $0x1d0] sm:$0xff]
    %v2401 = vld [vmem:[#allocation2 + $0x1d8] sm:$0xff]
    %v2402 = vld [vmem:[#allocation2 + $0x1e0] sm:$0xff]
    %v2403 = vld [vmem:[#allocation2 + $0x1e8] sm:$0xff]
    %v2404 = vld [vmem:[#allocation2 + $0x1f0] sm:$0xff]
    %v2405 = vld [vmem:[#allocation2 + $0x1f8] sm:$0xff]
    %s2406 = scalar_lea.vmem %s0, 768
    %v2407 = vld [vmem:[%s2406] sm:$0xf]
    %v2408 = vld [vmem:[%s2406 + $0x4] sm:$0xf]
    %v2409 = vld [vmem:[%s2406 + $0x8] sm:$0xf]
    %v2410 = vld [vmem:[%s2406 + $0xc] sm:$0xf]
    %v2411 = vld [vmem:[%s2406 + $0x10] sm:$0xf]
    %v2412 = vld [vmem:[%s2406 + $0x14] sm:$0xf]
    %v2413 = vld [vmem:[%s2406 + $0x18] sm:$0xf]
    %v2414 = vld [vmem:[%s2406 + $0x1c] sm:$0xf]
    %v2415 = vld [vmem:[%s2406 + $0x20] sm:$0xf]
    %v2416 = vld [vmem:[%s2406 + $0x24] sm:$0xf]
    %v2417 = vld [vmem:[%s2406 + $0x28] sm:$0xf]
    %v2418 = vld [vmem:[%s2406 + $0x2c] sm:$0xf]
    %v2419 = vld [vmem:[%s2406 + $0x30] sm:$0xf]
    %v2420 = vld [vmem:[%s2406 + $0x34] sm:$0xf]
    %v2421 = vld [vmem:[%s2406 + $0x38] sm:$0xf]
    %v2422 = vld [vmem:[%s2406 + $0x3c] sm:$0xf]
    %v2423 = vld [vmem:[%s2406 + $0x40] sm:$0xf]
    %v2424 = vld [vmem:[%s2406 + $0x44] sm:$0xf]
    %v2425 = vld [vmem:[%s2406 + $0x48] sm:$0xf]
    %v2426 = vld [vmem:[%s2406 + $0x4c] sm:$0xf]
    %v2427 = vld [vmem:[%s2406 + $0x50] sm:$0xf]
    %v2428 = vld [vmem:[%s2406 + $0x54] sm:$0xf]
    %v2429 = vld [vmem:[%s2406 + $0x58] sm:$0xf]
    %v2430 = vld [vmem:[%s2406 + $0x5c] sm:$0xf]
    %v2431 = vld [vmem:[%s2406 + $0x60] sm:$0xf]
    %v2432 = vld [vmem:[%s2406 + $0x64] sm:$0xf]
    %v2433 = vld [vmem:[%s2406 + $0x68] sm:$0xf]
    %v2434 = vld [vmem:[%s2406 + $0x6c] sm:$0xf]
    %v2435 = vld [vmem:[%s2406 + $0x70] sm:$0xf]
    %v2436 = vld [vmem:[%s2406 + $0x74] sm:$0xf]
    %v2437 = vld [vmem:[%s2406 + $0x78] sm:$0xf]
    %v2438 = vld [vmem:[%s2406 + $0x7c] sm:$0xf]
    %v2439 = vld [vmem:[%s2406 + $0x80] sm:$0xf]
    %v2440 = vld [vmem:[%s2406 + $0x84] sm:$0xf]
    %v2441 = vld [vmem:[%s2406 + $0x88] sm:$0xf]
    %v2442 = vld [vmem:[%s2406 + $0x8c] sm:$0xf]
    %v2443 = vld [vmem:[%s2406 + $0x90] sm:$0xf]
    %v2444 = vld [vmem:[%s2406 + $0x94] sm:$0xf]
    %v2445 = vld [vmem:[%s2406 + $0x98] sm:$0xf]
    %v2446 = vld [vmem:[%s2406 + $0x9c] sm:$0xf]
    %v2447 = vld [vmem:[%s2406 + $0xa0] sm:$0xf]
    %v2448 = vld [vmem:[%s2406 + $0xa4] sm:$0xf]
    %v2449 = vld [vmem:[%s2406 + $0xa8] sm:$0xf]
    %v2450 = vld [vmem:[%s2406 + $0xac] sm:$0xf]
    %v2451 = vld [vmem:[%s2406 + $0xb0] sm:$0xf]
    %v2452 = vld [vmem:[%s2406 + $0xb4] sm:$0xf]
    %v2453 = vld [vmem:[%s2406 + $0xb8] sm:$0xf]
    %v2454 = vld [vmem:[%s2406 + $0xbc] sm:$0xf]
    %v2455 = vld [vmem:[%s2406 + $0xc0] sm:$0xf]
    %v2456 = vld [vmem:[%s2406 + $0xc4] sm:$0xf]
    %v2457 = vld [vmem:[%s2406 + $0xc8] sm:$0xf]
    %v2458 = vld [vmem:[%s2406 + $0xcc] sm:$0xf]
    %v2459 = vld [vmem:[%s2406 + $0xd0] sm:$0xf]
    %v2460 = vld [vmem:[%s2406 + $0xd4] sm:$0xf]
    %v2461 = vld [vmem:[%s2406 + $0xd8] sm:$0xf]
    %v2462 = vld [vmem:[%s2406 + $0xdc] sm:$0xf]
    %v2463 = vld [vmem:[%s2406 + $0xe0] sm:$0xf]
    %v2464 = vld [vmem:[%s2406 + $0xe4] sm:$0xf]
    %v2465 = vld [vmem:[%s2406 + $0xe8] sm:$0xf]
    %v2466 = vld [vmem:[%s2406 + $0xec] sm:$0xf]
    %v2467 = vld [vmem:[%s2406 + $0xf0] sm:$0xf]
    %v2468 = vld [vmem:[%s2406 + $0xf4] sm:$0xf]
    %v2469 = vld [vmem:[%s2406 + $0xf8] sm:$0xf]
    %v2470 = vld [vmem:[%s2406 + $0xfc] sm:$0xf]
    %v2471 = vld [vmem:[%s1] sm:$0xf]
    %v2472 = vld [vmem:[%s1 + $0x4] sm:$0xf]
    %v2473 = vld [vmem:[%s1 + $0x8] sm:$0xf]
    %v2474 = vld [vmem:[%s1 + $0xc] sm:$0xf]
    %v2539 = vunpack.c.l.b16 %v2407
    %v2540 = vunpack.c.l.b16 %v2408
    %v2541 = vunpack.c.l.b16 %v2409
    %v2542 = vunpack.c.l.b16 %v2410
    %v2543 = vunpack.c.l.b16 %v2411
    %v2544 = vunpack.c.l.b16 %v2412
    %v2545 = vunpack.c.l.b16 %v2413
    %v2546 = vunpack.c.l.b16 %v2414
    %v2547 = vunpack.c.l.b16 %v2415
    %v2548 = vunpack.c.l.b16 %v2416
    %v2549 = vunpack.c.l.b16 %v2417
    %v2550 = vunpack.c.l.b16 %v2418
    %v2551 = vunpack.c.l.b16 %v2419
    %v2552 = vunpack.c.l.b16 %v2420
    %v2553 = vunpack.c.l.b16 %v2421
    %v2554 = vunpack.c.l.b16 %v2422
    %v2555 = vunpack.c.l.b16 %v2423
    %v2556 = vunpack.c.l.b16 %v2424
    %v2557 = vunpack.c.l.b16 %v2425
    %v2558 = vunpack.c.l.b16 %v2426
    %v2559 = vunpack.c.l.b16 %v2427
    %v2560 = vunpack.c.l.b16 %v2428
    %v2561 = vunpack.c.l.b16 %v2429
    %v2562 = vunpack.c.l.b16 %v2430
    %v2563 = vunpack.c.l.b16 %v2431
    %v2564 = vunpack.c.l.b16 %v2432
    %v2565 = vunpack.c.l.b16 %v2433
    %v2566 = vunpack.c.l.b16 %v2434
    %v2567 = vunpack.c.l.b16 %v2435
    %v2568 = vunpack.c.l.b16 %v2436
    %v2569 = vunpack.c.l.b16 %v2437
    %v2570 = vunpack.c.l.b16 %v2438
    %v2571 = vunpack.c.l.b16 %v2439
    %v2572 = vunpack.c.l.b16 %v2440
    %v2573 = vunpack.c.l.b16 %v2441
    %v2574 = vunpack.c.l.b16 %v2442
    %v2575 = vunpack.c.l.b16 %v2443
    %v2576 = vunpack.c.l.b16 %v2444
    %v2577 = vunpack.c.l.b16 %v2445
    %v2578 = vunpack.c.l.b16 %v2446
    %v2579 = vunpack.c.l.b16 %v2447
    %v2580 = vunpack.c.l.b16 %v2448
    %v2581 = vunpack.c.l.b16 %v2449
    %v2582 = vunpack.c.l.b16 %v2450
    %v2583 = vunpack.c.l.b16 %v2451
    %v2584 = vunpack.c.l.b16 %v2452
    %v2585 = vunpack.c.l.b16 %v2453
    %v2586 = vunpack.c.l.b16 %v2454
    %v2587 = vunpack.c.l.b16 %v2455
    %v2588 = vunpack.c.l.b16 %v2456
    %v2589 = vunpack.c.l.b16 %v2457
    %v2590 = vunpack.c.l.b16 %v2458
    %v2591 = vunpack.c.l.b16 %v2459
    %v2592 = vunpack.c.l.b16 %v2460
    %v2593 = vunpack.c.l.b16 %v2461
    %v2594 = vunpack.c.l.b16 %v2462
    %v2595 = vunpack.c.l.b16 %v2463
    %v2596 = vunpack.c.l.b16 %v2464
    %v2597 = vunpack.c.l.b16 %v2465
    %v2598 = vunpack.c.l.b16 %v2466
    %v2599 = vunpack.c.l.b16 %v2467
    %v2600 = vunpack.c.l.b16 %v2468
    %v2601 = vunpack.c.l.b16 %v2469
    %v2602 = vunpack.c.l.b16 %v2470
    %v2603 = vpack.c.b16 %v2540, %v2539
    %v2604 = vpack.c.b16 %v2542, %v2541
    %v2605 = vpack.c.b16 %v2544, %v2543
    %v2606 = vpack.c.b16 %v2546, %v2545
    %v2607 = vpack.c.b16 %v2548, %v2547
    %v2608 = vpack.c.b16 %v2550, %v2549
    %v2609 = vpack.c.b16 %v2552, %v2551
    %v2610 = vpack.c.b16 %v2554, %v2553
    %v2611 = vpack.c.b16 %v2556, %v2555
    %v2612 = vpack.c.b16 %v2558, %v2557
    %v2613 = vpack.c.b16 %v2560, %v2559
    %v2614 = vpack.c.b16 %v2562, %v2561
    %v2615 = vpack.c.b16 %v2564, %v2563
    %v2616 = vpack.c.b16 %v2566, %v2565
    %v2617 = vpack.c.b16 %v2568, %v2567
    %v2618 = vpack.c.b16 %v2570, %v2569
    %v2619 = vpack.c.b16 %v2572, %v2571
    %v2620 = vpack.c.b16 %v2574, %v2573
    %v2621 = vpack.c.b16 %v2576, %v2575
    %v2622 = vpack.c.b16 %v2578, %v2577
    %v2623 = vpack.c.b16 %v2580, %v2579
    %v2624 = vpack.c.b16 %v2582, %v2581
    %v2625 = vpack.c.b16 %v2584, %v2583
    %v2626 = vpack.c.b16 %v2586, %v2585
    %v2627 = vpack.c.b16 %v2588, %v2587
    %v2628 = vpack.c.b16 %v2590, %v2589
    %v2629 = vpack.c.b16 %v2592, %v2591
    %v2630 = vpack.c.b16 %v2594, %v2593
    %v2631 = vpack.c.b16 %v2596, %v2595
    %v2632 = vpack.c.b16 %v2598, %v2597
    %v2633 = vpack.c.b16 %v2600, %v2599
    %v2634 = vpack.c.b16 %v2602, %v2601
    %v2639 = vunpack.c.l.b16 %v2471
    %v2640 = vunpack.c.l.b16 %v2472
    %v2641 = vunpack.c.l.b16 %v2473
    %v2642 = vunpack.c.l.b16 %v2474
    %v2643 = vpack.c.b16 %v2640, %v2639
    %v2644 = vpack.c.b16 %v2642, %v2641
    %v2648 = vsel %vm256, %v2603, 0
    %v2651 = vsel %vm256, %v2604, 0
    %v2654 = vsel %vm256, %v2605, 0
    %v2657 = vsel %vm256, %v2606, 0
    %v2660 = vsel %vm256, %v2607, 0
    %v2663 = vsel %vm256, %v2608, 0
    %v2666 = vsel %vm256, %v2609, 0
    %v2669 = vsel %vm256, %v2610, 0
    %v2672 = vsel %vm256, %v2611, 0
    %v2675 = vsel %vm256, %v2612, 0
    %v2678 = vsel %vm256, %v2613, 0
    %v2681 = vsel %vm256, %v2614, 0
    %v2684 = vsel %vm256, %v2615, 0
    %v2687 = vsel %vm256, %v2616, 0
    %v2690 = vsel %vm256, %v2617, 0
    %v2693 = vsel %vm256, %v2618, 0
    %v2696 = vsel %vm256, %v2619, 0
    %v2699 = vsel %vm256, %v2620, 0
    %v2702 = vsel %vm256, %v2621, 0
    %v2705 = vsel %vm256, %v2622, 0
    %v2708 = vsel %vm256, %v2623, 0
    %v2711 = vsel %vm256, %v2624, 0
    %v2714 = vsel %vm256, %v2625, 0
    %v2717 = vsel %vm256, %v2626, 0
    %v2720 = vsel %vm256, %v2627, 0
    %v2723 = vsel %vm256, %v2628, 0
    %v2726 = vsel %vm256, %v2629, 0
    %v2729 = vsel %vm256, %v2630, 0
    %v2732 = vsel %vm256, %v2631, 0
    %v2735 = vsel %vm256, %v2632, 0
    %v2738 = vsel %vm256, %v2633, 0
    %v2741 = vsel %vm256, %v2634, 0
    %2743 = vmatprep.subr.bf16.mxu0 0
    %2744 = vmatpush1.bf16.msra.mxu0 0
    %2745 = vmatprep.subr.bf16.mxu0 0
    %2746 = vmatpush1.bf16.msra.mxu0 0
    %2747 = vmatprep.subr.bf16.mxu0 0
    %2748 = vmatpush1.bf16.msra.mxu0 0
    %2749 = vmatprep.subr.bf16.mxu0 0
    %2750 = vmatpush1.bf16.msra.mxu0 0
    %2751 = vmatprep.subr.bf16.mxu0 0
    %2752 = vmatpush1.bf16.msra.mxu0 0
    %2753 = vmatprep.subr.bf16.mxu0 0
    %2754 = vmatpush1.bf16.msra.mxu0 0
    %2755 = vmatprep.subr.bf16.mxu0 0
    %2756 = vmatpush1.bf16.msra.mxu0 %v2644
    %2757 = vmatprep.subr.bf16.mxu0 0
    %2758 = vmatpush1.bf16.msra.mxu0 %v2643
    %2759 = vmatprep.subr.bf16.mxu0 0
    %2760 = vmatpush2.bf16.msra.mxu0 0
    %2761 = vmatprep.subr.bf16.mxu0 0
    %2762 = vmatpush2.bf16.msra.mxu0 0
    %2763 = vmatprep.subr.bf16.mxu0 0
    %2764 = vmatpush2.bf16.msra.mxu0 0
    %2765 = vmatprep.subr.bf16.mxu0 0
    %2766 = vmatpush2.bf16.msra.mxu0 0
    %2767 = vmatprep.subr.bf16.mxu0 0
    %2768 = vmatpush2.bf16.msra.mxu0 0
    %2769 = vmatprep.subr.bf16.mxu0 0
    %2770 = vmatpush2.bf16.msra.mxu0 0
    %2771 = vmatprep.subr.bf16.mxu0 0
    %2772 = vmatpush2.bf16.msra.mxu0 0
    %2773 = vmatprep.subr.bf16.mxu0 0
    %2774 = vmatpush2.bf16.msra.mxu0 0
    %2775 = vmatprep.mubr.bf16.mxu0 0
    %2776 = vmatmul.mubr.bf16.gmra.mxu0 %v2648
    %v2777 = vpop.f32.mrf.mxu0
    %v2778 = vadd.f32 0.0, %v2777
    %v2779 = vpop.f32.mrf.mxu0
    %v2780 = vpop.f32.mrf.mxu0
    %v2781 = vadd.f32 0.0, %v2780
    %v2782 = vpop.f32.mrf.mxu0
    %2783 = vmatprep.mubr.bf16.mxu0 0
    %2784 = vmatmul.mubr.bf16.gmra.mxu0 %v2651
    %v2785 = vpop.f32.mrf.mxu0
    %v2786 = vadd.f32 0.0, %v2785
    %v2787 = vpop.f32.mrf.mxu0
    %v2788 = vpop.f32.mrf.mxu0
    %v2789 = vadd.f32 0.0, %v2788
    %v2790 = vpop.f32.mrf.mxu0
    %2791 = vmatprep.mubr.bf16.mxu0 0
    %2792 = vmatmul.mubr.bf16.gmra.mxu0 %v2654
    %v2793 = vpop.f32.mrf.mxu0
    %v2794 = vadd.f32 0.0, %v2793
    %v2795 = vpop.f32.mrf.mxu0
    %v2796 = vpop.f32.mrf.mxu0
    %v2797 = vadd.f32 0.0, %v2796
    %v2798 = vpop.f32.mrf.mxu0
    %2799 = vmatprep.mubr.bf16.mxu0 0
    %2800 = vmatmul.mubr.bf16.gmra.mxu0 %v2657
    %v2801 = vpop.f32.mrf.mxu0
    %v2802 = vadd.f32 0.0, %v2801
    %v2803 = vpop.f32.mrf.mxu0
    %v2804 = vpop.f32.mrf.mxu0
    %v2805 = vadd.f32 0.0, %v2804
    %v2806 = vpop.f32.mrf.mxu0
    %2807 = vmatprep.mubr.bf16.mxu0 0
    %2808 = vmatmul.mubr.bf16.gmra.mxu0 %v2660
    %v2809 = vpop.f32.mrf.mxu0
    %v2810 = vadd.f32 0.0, %v2809
    %v2811 = vpop.f32.mrf.mxu0
    %v2812 = vpop.f32.mrf.mxu0
    %v2813 = vadd.f32 0.0, %v2812
    %v2814 = vpop.f32.mrf.mxu0
    %2815 = vmatprep.mubr.bf16.mxu0 0
    %2816 = vmatmul.mubr.bf16.gmra.mxu0 %v2663
    %v2817 = vpop.f32.mrf.mxu0
    %v2818 = vadd.f32 0.0, %v2817
    %v2819 = vpop.f32.mrf.mxu0
    %v2820 = vpop.f32.mrf.mxu0
    %v2821 = vadd.f32 0.0, %v2820
    %v2822 = vpop.f32.mrf.mxu0
    %2823 = vmatprep.mubr.bf16.mxu0 0
    %2824 = vmatmul.mubr.bf16.gmra.mxu0 %v2666
    %v2825 = vpop.f32.mrf.mxu0
    %v2826 = vadd.f32 0.0, %v2825
    %v2827 = vpop.f32.mrf.mxu0
    %v2828 = vpop.f32.mrf.mxu0
    %v2829 = vadd.f32 0.0, %v2828
    %v2830 = vpop.f32.mrf.mxu0
    %2831 = vmatprep.mubr.bf16.mxu0 0
    %2832 = vmatmul.mubr.bf16.gmra.mxu0 %v2669
    %v2833 = vpop.f32.mrf.mxu0
    %v2834 = vadd.f32 0.0, %v2833
    %v2835 = vpop.f32.mrf.mxu0
    %v2836 = vpop.f32.mrf.mxu0
    %v2837 = vadd.f32 0.0, %v2836
    %v2838 = vpop.f32.mrf.mxu0
    %2839 = vmatprep.mubr.bf16.mxu0 0
    %2840 = vmatmul.mubr.bf16.gmra.mxu0 %v2672
    %v2841 = vpop.f32.mrf.mxu0
    %v2842 = vadd.f32 0.0, %v2841
    %v2843 = vpop.f32.mrf.mxu0
    %v2844 = vpop.f32.mrf.mxu0
    %v2845 = vadd.f32 0.0, %v2844
    %v2846 = vpop.f32.mrf.mxu0
    %2847 = vmatprep.mubr.bf16.mxu0 0
    %2848 = vmatmul.mubr.bf16.gmra.mxu0 %v2675
    %v2849 = vpop.f32.mrf.mxu0
    %v2850 = vadd.f32 0.0, %v2849
    %v2851 = vpop.f32.mrf.mxu0
    %v2852 = vpop.f32.mrf.mxu0
    %v2853 = vadd.f32 0.0, %v2852
    %v2854 = vpop.f32.mrf.mxu0
    %2855 = vmatprep.mubr.bf16.mxu0 0
    %2856 = vmatmul.mubr.bf16.gmra.mxu0 %v2678
    %v2857 = vpop.f32.mrf.mxu0
    %v2858 = vadd.f32 0.0, %v2857
    %v2859 = vpop.f32.mrf.mxu0
    %v2860 = vpop.f32.mrf.mxu0
    %v2861 = vadd.f32 0.0, %v2860
    %v2862 = vpop.f32.mrf.mxu0
    %2863 = vmatprep.mubr.bf16.mxu0 0
    %2864 = vmatmul.mubr.bf16.gmra.mxu0 %v2681
    %v2865 = vpop.f32.mrf.mxu0
    %v2866 = vadd.f32 0.0, %v2865
    %v2867 = vpop.f32.mrf.mxu0
    %v2868 = vpop.f32.mrf.mxu0
    %v2869 = vadd.f32 0.0, %v2868
    %v2870 = vpop.f32.mrf.mxu0
    %2871 = vmatprep.mubr.bf16.mxu0 0
    %2872 = vmatmul.mubr.bf16.gmra.mxu0 %v2684
    %v2873 = vpop.f32.mrf.mxu0
    %v2874 = vadd.f32 0.0, %v2873
    %v2875 = vpop.f32.mrf.mxu0
    %v2876 = vpop.f32.mrf.mxu0
    %v2877 = vadd.f32 0.0, %v2876
    %v2878 = vpop.f32.mrf.mxu0
    %2879 = vmatprep.mubr.bf16.mxu0 0
    %2880 = vmatmul.mubr.bf16.gmra.mxu0 %v2687
    %v2881 = vpop.f32.mrf.mxu0
    %v2882 = vadd.f32 0.0, %v2881
    %v2883 = vpop.f32.mrf.mxu0
    %v2884 = vpop.f32.mrf.mxu0
    %v2885 = vadd.f32 0.0, %v2884
    %v2886 = vpop.f32.mrf.mxu0
    %2887 = vmatprep.mubr.bf16.mxu0 0
    %2888 = vmatmul.mubr.bf16.gmra.mxu0 %v2690
    %v2889 = vpop.f32.mrf.mxu0
    %v2890 = vadd.f32 0.0, %v2889
    %v2891 = vpop.f32.mrf.mxu0
    %v2892 = vpop.f32.mrf.mxu0
    %v2893 = vadd.f32 0.0, %v2892
    %v2894 = vpop.f32.mrf.mxu0
    %2895 = vmatprep.mubr.bf16.mxu0 0
    %2896 = vmatmul.mubr.bf16.gmra.mxu0 %v2693
    %v2897 = vpop.f32.mrf.mxu0
    %v2898 = vadd.f32 0.0, %v2897
    %v2899 = vpop.f32.mrf.mxu0
    %v2900 = vpop.f32.mrf.mxu0
    %v2901 = vadd.f32 0.0, %v2900
    %v2902 = vpop.f32.mrf.mxu0
    %2903 = vmatprep.mubr.bf16.mxu0 0
    %2904 = vmatmul.mubr.bf16.gmra.mxu0 %v2696
    %v2905 = vpop.f32.mrf.mxu0
    %v2906 = vadd.f32 0.0, %v2905
    %v2907 = vpop.f32.mrf.mxu0
    %v2908 = vpop.f32.mrf.mxu0
    %v2909 = vadd.f32 0.0, %v2908
    %v2910 = vpop.f32.mrf.mxu0
    %2911 = vmatprep.mubr.bf16.mxu0 0
    %2912 = vmatmul.mubr.bf16.gmra.mxu0 %v2699
    %v2913 = vpop.f32.mrf.mxu0
    %v2914 = vadd.f32 0.0, %v2913
    %v2915 = vpop.f32.mrf.mxu0
    %v2916 = vpop.f32.mrf.mxu0
    %v2917 = vadd.f32 0.0, %v2916
    %v2918 = vpop.f32.mrf.mxu0
    %2919 = vmatprep.mubr.bf16.mxu0 0
    %2920 = vmatmul.mubr.bf16.gmra.mxu0 %v2702
    %v2921 = vpop.f32.mrf.mxu0
    %v2922 = vadd.f32 0.0, %v2921
    %v2923 = vpop.f32.mrf.mxu0
    %v2924 = vpop.f32.mrf.mxu0
    %v2925 = vadd.f32 0.0, %v2924
    %v2926 = vpop.f32.mrf.mxu0
    %2927 = vmatprep.mubr.bf16.mxu0 0
    %2928 = vmatmul.mubr.bf16.gmra.mxu0 %v2705
    %v2929 = vpop.f32.mrf.mxu0
    %v2930 = vadd.f32 0.0, %v2929
    %v2931 = vpop.f32.mrf.mxu0
    %v2932 = vpop.f32.mrf.mxu0
    %v2933 = vadd.f32 0.0, %v2932
    %v2934 = vpop.f32.mrf.mxu0
    %2935 = vmatprep.mubr.bf16.mxu0 0
    %2936 = vmatmul.mubr.bf16.gmra.mxu0 %v2708
    %v2937 = vpop.f32.mrf.mxu0
    %v2938 = vadd.f32 0.0, %v2937
    %v2939 = vpop.f32.mrf.mxu0
    %v2940 = vpop.f32.mrf.mxu0
    %v2941 = vadd.f32 0.0, %v2940
    %v2942 = vpop.f32.mrf.mxu0
    %2943 = vmatprep.mubr.bf16.mxu0 0
    %2944 = vmatmul.mubr.bf16.gmra.mxu0 %v2711
    %v2945 = vpop.f32.mrf.mxu0
    %v2946 = vadd.f32 0.0, %v2945
    %v2947 = vpop.f32.mrf.mxu0
    %v2948 = vpop.f32.mrf.mxu0
    %v2949 = vadd.f32 0.0, %v2948
    %v2950 = vpop.f32.mrf.mxu0
    %2951 = vmatprep.mubr.bf16.mxu0 0
    %2952 = vmatmul.mubr.bf16.gmra.mxu0 %v2714
    %v2953 = vpop.f32.mrf.mxu0
    %v2954 = vadd.f32 0.0, %v2953
    %v2955 = vpop.f32.mrf.mxu0
    %v2956 = vpop.f32.mrf.mxu0
    %v2957 = vadd.f32 0.0, %v2956
    %v2958 = vpop.f32.mrf.mxu0
    %2959 = vmatprep.mubr.bf16.mxu0 0
    %2960 = vmatmul.mubr.bf16.gmra.mxu0 %v2717
    %v2961 = vpop.f32.mrf.mxu0
    %v2962 = vadd.f32 0.0, %v2961
    %v2963 = vpop.f32.mrf.mxu0
    %v2964 = vpop.f32.mrf.mxu0
    %v2965 = vadd.f32 0.0, %v2964
    %v2966 = vpop.f32.mrf.mxu0
    %2967 = vmatprep.mubr.bf16.mxu0 0
    %2968 = vmatmul.mubr.bf16.gmra.mxu0 %v2720
    %v2969 = vpop.f32.mrf.mxu0
    %v2970 = vadd.f32 0.0, %v2969
    %v2971 = vpop.f32.mrf.mxu0
    %v2972 = vpop.f32.mrf.mxu0
    %v2973 = vadd.f32 0.0, %v2972
    %v2974 = vpop.f32.mrf.mxu0
    %2975 = vmatprep.mubr.bf16.mxu0 0
    %2976 = vmatmul.mubr.bf16.gmra.mxu0 %v2723
    %v2977 = vpop.f32.mrf.mxu0
    %v2978 = vadd.f32 0.0, %v2977
    %v2979 = vpop.f32.mrf.mxu0
    %v2980 = vpop.f32.mrf.mxu0
    %v2981 = vadd.f32 0.0, %v2980
    %v2982 = vpop.f32.mrf.mxu0
    %2983 = vmatprep.mubr.bf16.mxu0 0
    %2984 = vmatmul.mubr.bf16.gmra.mxu0 %v2726
    %v2985 = vpop.f32.mrf.mxu0
    %v2986 = vadd.f32 0.0, %v2985
    %v2987 = vpop.f32.mrf.mxu0
    %v2988 = vpop.f32.mrf.mxu0
    %v2989 = vadd.f32 0.0, %v2988
    %v2990 = vpop.f32.mrf.mxu0
    %2991 = vmatprep.mubr.bf16.mxu0 0
    %2992 = vmatmul.mubr.bf16.gmra.mxu0 %v2729
    %v2993 = vpop.f32.mrf.mxu0
    %v2994 = vadd.f32 0.0, %v2993
    %v2995 = vpop.f32.mrf.mxu0
    %v2996 = vpop.f32.mrf.mxu0
    %v2997 = vadd.f32 0.0, %v2996
    %v2998 = vpop.f32.mrf.mxu0
    %2999 = vmatprep.mubr.bf16.mxu0 0
    %3000 = vmatmul.mubr.bf16.gmra.mxu0 %v2732
    %v3001 = vpop.f32.mrf.mxu0
    %v3002 = vadd.f32 0.0, %v3001
    %v3003 = vpop.f32.mrf.mxu0
    %v3004 = vpop.f32.mrf.mxu0
    %v3005 = vadd.f32 0.0, %v3004
    %v3006 = vpop.f32.mrf.mxu0
    %3007 = vmatprep.mubr.bf16.mxu0 0
    %3008 = vmatmul.mubr.bf16.gmra.mxu0 %v2735
    %v3009 = vpop.f32.mrf.mxu0
    %v3010 = vadd.f32 0.0, %v3009
    %v3011 = vpop.f32.mrf.mxu0
    %v3012 = vpop.f32.mrf.mxu0
    %v3013 = vadd.f32 0.0, %v3012
    %v3014 = vpop.f32.mrf.mxu0
    %3015 = vmatprep.mubr.bf16.mxu0 0
    %3016 = vmatmul.mubr.bf16.gmra.mxu0 %v2738
    %v3017 = vpop.f32.mrf.mxu0
    %v3018 = vadd.f32 0.0, %v3017
    %v3019 = vpop.f32.mrf.mxu0
    %v3020 = vpop.f32.mrf.mxu0
    %v3021 = vadd.f32 0.0, %v3020
    %v3022 = vpop.f32.mrf.mxu0
    %3023 = vmatprep.mubr.bf16.mxu0 0
    %3024 = vmatmul.mubr.bf16.gmra.mxu0 %v2741
    %v3025 = vpop.f32.mrf.mxu0
    %v3026 = vadd.f32 0.0, %v3025
    %v3027 = vpop.f32.mrf.mxu0
    %v3028 = vpop.f32.mrf.mxu0
    %v3029 = vadd.f32 0.0, %v3028
    %v3030 = vpop.f32.mrf.mxu0
    %3031 = vdwg.mxu0
    %v3032 = vmax.f32 %v2342, %v2778
    %v3033 = vmax.f32 %v2343, %v2781
    %v3034 = vmax.f32 %v2344, %v2786
    %v3035 = vmax.f32 %v2345, %v2789
    %v3036 = vmax.f32 %v2346, %v2794
    %v3037 = vmax.f32 %v2347, %v2797
    %v3038 = vmax.f32 %v2348, %v2802
    %v3039 = vmax.f32 %v2349, %v2805
    %v3040 = vmax.f32 %v2350, %v2810
    %v3041 = vmax.f32 %v2351, %v2813
    %v3042 = vmax.f32 %v2352, %v2818
    %v3043 = vmax.f32 %v2353, %v2821
    %v3044 = vmax.f32 %v2354, %v2826
    %v3045 = vmax.f32 %v2355, %v2829
    %v3046 = vmax.f32 %v2356, %v2834
    %v3047 = vmax.f32 %v2357, %v2837
    %v3048 = vmax.f32 %v2358, %v2842
    %v3049 = vmax.f32 %v2359, %v2845
    %v3050 = vmax.f32 %v2360, %v2850
    %v3051 = vmax.f32 %v2361, %v2853
    %v3052 = vmax.f32 %v2362, %v2858
    %v3053 = vmax.f32 %v2363, %v2861
    %v3054 = vmax.f32 %v2364, %v2866
    %v3055 = vmax.f32 %v2365, %v2869
    %v3056 = vmax.f32 %v2366, %v2874
    %v3057 = vmax.f32 %v2367, %v2877
    %v3058 = vmax.f32 %v2368, %v2882
    %v3059 = vmax.f32 %v2369, %v2885
    %v3060 = vmax.f32 %v2370, %v2890
    %v3061 = vmax.f32 %v2371, %v2893
    %v3062 = vmax.f32 %v2372, %v2898
    %v3063 = vmax.f32 %v2373, %v2901
    %v3064 = vmax.f32 %v2374, %v2906
    %v3065 = vmax.f32 %v2375, %v2909
    %v3066 = vmax.f32 %v2376, %v2914
    %v3067 = vmax.f32 %v2377, %v2917
    %v3068 = vmax.f32 %v2378, %v2922
    %v3069 = vmax.f32 %v2379, %v2925
    %v3070 = vmax.f32 %v2380, %v2930
    %v3071 = vmax.f32 %v2381, %v2933
    %v3072 = vmax.f32 %v2382, %v2938
    %v3073 = vmax.f32 %v2383, %v2941
    %v3074 = vmax.f32 %v2384, %v2946
    %v3075 = vmax.f32 %v2385, %v2949
    %v3076 = vmax.f32 %v2386, %v2954
    %v3077 = vmax.f32 %v2387, %v2957
    %v3078 = vmax.f32 %v2388, %v2962
    %v3079 = vmax.f32 %v2389, %v2965
    %v3080 = vmax.f32 %v2390, %v2970
    %v3081 = vmax.f32 %v2391, %v2973
    %v3082 = vmax.f32 %v2392, %v2978
    %v3083 = vmax.f32 %v2393, %v2981
    %v3084 = vmax.f32 %v2394, %v2986
    %v3085 = vmax.f32 %v2395, %v2989
    %v3086 = vmax.f32 %v2396, %v2994
    %v3087 = vmax.f32 %v2397, %v2997
    %v3088 = vmax.f32 %v2398, %v3002
    %v3089 = vmax.f32 %v2399, %v3005
    %v3090 = vmax.f32 %v2400, %v3010
    %v3091 = vmax.f32 %v2401, %v3013
    %v3092 = vmax.f32 %v2402, %v3018
    %v3093 = vmax.f32 %v2403, %v3021
    %v3094 = vmax.f32 %v2404, %v3026
    %v3095 = vmax.f32 %v2405, %v3029
    %3096 = vst [vmem:[#allocation2] sm:$0xff] %v3032
    %3097 = vst [vmem:[#allocation2 + $0x8] sm:$0xff] %v3033
    %3098 = vst [vmem:[#allocation2 + $0x10] sm:$0xff] %v3034
    %3099 = vst [vmem:[#allocation2 + $0x18] sm:$0xff] %v3035
    %3100 = vst [vmem:[#allocation2 + $0x20] sm:$0xff] %v3036
    %3101 = vst [vmem:[#allocation2 + $0x28] sm:$0xff] %v3037
    %3102 = vst [vmem:[#allocation2 + $0x30] sm:$0xff] %v3038
    %3103 = vst [vmem:[#allocation2 + $0x38] sm:$0xff] %v3039
    %3104 = vst [vmem:[#allocation2 + $0x40] sm:$0xff] %v3040
    %3105 = vst [vmem:[#allocation2 + $0x48] sm:$0xff] %v3041
    %3106 = vst [vmem:[#allocation2 + $0x50] sm:$0xff] %v3042
    %3107 = vst [vmem:[#allocation2 + $0x58] sm:$0xff] %v3043
    %3108 = vst [vmem:[#allocation2 + $0x60] sm:$0xff] %v3044
    %3109 = vst [vmem:[#allocation2 + $0x68] sm:$0xff] %v3045
    %3110 = vst [vmem:[#allocation2 + $0x70] sm:$0xff] %v3046
    %3111 = vst [vmem:[#allocation2 + $0x78] sm:$0xff] %v3047
    %3112 = vst [vmem:[#allocation2 + $0x80] sm:$0xff] %v3048
    %3113 = vst [vmem:[#allocation2 + $0x88] sm:$0xff] %v3049
    %3114 = vst [vmem:[#allocation2 + $0x90] sm:$0xff] %v3050
    %3115 = vst [vmem:[#allocation2 + $0x98] sm:$0xff] %v3051
    %3116 = vst [vmem:[#allocation2 + $0xa0] sm:$0xff] %v3052
    %3117 = vst [vmem:[#allocation2 + $0xa8] sm:$0xff] %v3053
    %3118 = vst [vmem:[#allocation2 + $0xb0] sm:$0xff] %v3054
    %3119 = vst [vmem:[#allocation2 + $0xb8] sm:$0xff] %v3055
    %3120 = vst [vmem:[#allocation2 + $0xc0] sm:$0xff] %v3056
    %3121 = vst [vmem:[#allocation2 + $0xc8] sm:$0xff] %v3057
    %3122 = vst [vmem:[#allocation2 + $0xd0] sm:$0xff] %v3058
    %3123 = vst [vmem:[#allocation2 + $0xd8] sm:$0xff] %v3059
    %3124 = vst [vmem:[#allocation2 + $0xe0] sm:$0xff] %v3060
    %3125 = vst [vmem:[#allocation2 + $0xe8] sm:$0xff] %v3061
    %3126 = vst [vmem:[#allocation2 + $0xf0] sm:$0xff] %v3062
    %3127 = vst [vmem:[#allocation2 + $0xf8] sm:$0xff] %v3063
    %3128 = vst [vmem:[#allocation2 + $0x100] sm:$0xff] %v3064
    %3129 = vst [vmem:[#allocation2 + $0x108] sm:$0xff] %v3065
    %3130 = vst [vmem:[#allocation2 + $0x110] sm:$0xff] %v3066
    %3131 = vst [vmem:[#allocation2 + $0x118] sm:$0xff] %v3067
    %3132 = vst [vmem:[#allocation2 + $0x120] sm:$0xff] %v3068
    %3133 = vst [vmem:[#allocation2 + $0x128] sm:$0xff] %v3069
    %3134 = vst [vmem:[#allocation2 + $0x130] sm:$0xff] %v3070
    %3135 = vst [vmem:[#allocation2 + $0x138] sm:$0xff] %v3071
    %3136 = vst [vmem:[#allocation2 + $0x140] sm:$0xff] %v3072
    %3137 = vst [vmem:[#allocation2 + $0x148] sm:$0xff] %v3073
    %3138 = vst [vmem:[#allocation2 + $0x150] sm:$0xff] %v3074
    %3139 = vst [vmem:[#allocation2 + $0x158] sm:$0xff] %v3075
    %3140 = vst [vmem:[#allocation2 + $0x160] sm:$0xff] %v3076
    %3141 = vst [vmem:[#allocation2 + $0x168] sm:$0xff] %v3077
    %3142 = vst [vmem:[#allocation2 + $0x170] sm:$0xff] %v3078
    %3143 = vst [vmem:[#allocation2 + $0x178] sm:$0xff] %v3079
    %3144 = vst [vmem:[#allocation2 + $0x180] sm:$0xff] %v3080
    %3145 = vst [vmem:[#allocation2 + $0x188] sm:$0xff] %v3081
    %3146 = vst [vmem:[#allocation2 + $0x190] sm:$0xff] %v3082
    %3147 = vst [vmem:[#allocation2 + $0x198] sm:$0xff] %v3083
    %3148 = vst [vmem:[#allocation2 + $0x1a0] sm:$0xff] %v3084
    %3149 = vst [vmem:[#allocation2 + $0x1a8] sm:$0xff] %v3085
    %3150 = vst [vmem:[#allocation2 + $0x1b0] sm:$0xff] %v3086
    %3151 = vst [vmem:[#allocation2 + $0x1b8] sm:$0xff] %v3087
    %3152 = vst [vmem:[#allocation2 + $0x1c0] sm:$0xff] %v3088
    %3153 = vst [vmem:[#allocation2 + $0x1c8] sm:$0xff] %v3089
    %3154 = vst [vmem:[#allocation2 + $0x1d0] sm:$0xff] %v3090
    %3155 = vst [vmem:[#allocation2 + $0x1d8] sm:$0xff] %v3091
    %3156 = vst [vmem:[#allocation2 + $0x1e0] sm:$0xff] %v3092
    %3157 = vst [vmem:[#allocation2 + $0x1e8] sm:$0xff] %v3093
    %3158 = vst [vmem:[#allocation2 + $0x1f0] sm:$0xff] %v3094
    %3159 = vst [vmem:[#allocation2 + $0x1f8] sm:$0xff] %v3095
    %v3160 = vld [vmem:[#allocation2] sm:$0xff]
    %v3161 = vld [vmem:[#allocation2 + $0x8] sm:$0xff]
    %v3162 = vld [vmem:[#allocation2 + $0x10] sm:$0xff]
    %v3163 = vld [vmem:[#allocation2 + $0x18] sm:$0xff]
    %v3164 = vld [vmem:[#allocation2 + $0x20] sm:$0xff]
    %v3165 = vld [vmem:[#allocation2 + $0x28] sm:$0xff]
    %v3166 = vld [vmem:[#allocation2 + $0x30] sm:$0xff]
    %v3167 = vld [vmem:[#allocation2 + $0x38] sm:$0xff]
    %v3168 = vld [vmem:[#allocation2 + $0x40] sm:$0xff]
    %v3169 = vld [vmem:[#allocation2 + $0x48] sm:$0xff]
    %v3170 = vld [vmem:[#allocation2 + $0x50] sm:$0xff]
    %v3171 = vld [vmem:[#allocation2 + $0x58] sm:$0xff]
    %v3172 = vld [vmem:[#allocation2 + $0x60] sm:$0xff]
    %v3173 = vld [vmem:[#allocation2 + $0x68] sm:$0xff]
    %v3174 = vld [vmem:[#allocation2 + $0x70] sm:$0xff]
    %v3175 = vld [vmem:[#allocation2 + $0x78] sm:$0xff]
    %v3176 = vld [vmem:[#allocation2 + $0x80] sm:$0xff]
    %v3177 = vld [vmem:[#allocation2 + $0x88] sm:$0xff]
    %v3178 = vld [vmem:[#allocation2 + $0x90] sm:$0xff]
    %v3179 = vld [vmem:[#allocation2 + $0x98] sm:$0xff]
    %v3180 = vld [vmem:[#allocation2 + $0xa0] sm:$0xff]
    %v3181 = vld [vmem:[#allocation2 + $0xa8] sm:$0xff]
    %v3182 = vld [vmem:[#allocation2 + $0xb0] sm:$0xff]
    %v3183 = vld [vmem:[#allocation2 + $0xb8] sm:$0xff]
    %v3184 = vld [vmem:[#allocation2 + $0xc0] sm:$0xff]
    %v3185 = vld [vmem:[#allocation2 + $0xc8] sm:$0xff]
    %v3186 = vld [vmem:[#allocation2 + $0xd0] sm:$0xff]
    %v3187 = vld [vmem:[#allocation2 + $0xd8] sm:$0xff]
    %v3188 = vld [vmem:[#allocation2 + $0xe0] sm:$0xff]
    %v3189 = vld [vmem:[#allocation2 + $0xe8] sm:$0xff]
    %v3190 = vld [vmem:[#allocation2 + $0xf0] sm:$0xff]
    %v3191 = vld [vmem:[#allocation2 + $0xf8] sm:$0xff]
    %v3192 = vld [vmem:[#allocation2 + $0x100] sm:$0xff]
    %v3193 = vld [vmem:[#allocation2 + $0x108] sm:$0xff]
    %v3194 = vld [vmem:[#allocation2 + $0x110] sm:$0xff]
    %v3195 = vld [vmem:[#allocation2 + $0x118] sm:$0xff]
    %v3196 = vld [vmem:[#allocation2 + $0x120] sm:$0xff]
    %v3197 = vld [vmem:[#allocation2 + $0x128] sm:$0xff]
    %v3198 = vld [vmem:[#allocation2 + $0x130] sm:$0xff]
    %v3199 = vld [vmem:[#allocation2 + $0x138] sm:$0xff]
    %v3200 = vld [vmem:[#allocation2 + $0x140] sm:$0xff]
    %v3201 = vld [vmem:[#allocation2 + $0x148] sm:$0xff]
    %v3202 = vld [vmem:[#allocation2 + $0x150] sm:$0xff]
    %v3203 = vld [vmem:[#allocation2 + $0x158] sm:$0xff]
    %v3204 = vld [vmem:[#allocation2 + $0x160] sm:$0xff]
    %v3205 = vld [vmem:[#allocation2 + $0x168] sm:$0xff]
    %v3206 = vld [vmem:[#allocation2 + $0x170] sm:$0xff]
    %v3207 = vld [vmem:[#allocation2 + $0x178] sm:$0xff]
    %v3208 = vld [vmem:[#allocation2 + $0x180] sm:$0xff]
    %v3209 = vld [vmem:[#allocation2 + $0x188] sm:$0xff]
    %v3210 = vld [vmem:[#allocation2 + $0x190] sm:$0xff]
    %v3211 = vld [vmem:[#allocation2 + $0x198] sm:$0xff]
    %v3212 = vld [vmem:[#allocation2 + $0x1a0] sm:$0xff]
    %v3213 = vld [vmem:[#allocation2 + $0x1a8] sm:$0xff]
    %v3214 = vld [vmem:[#allocation2 + $0x1b0] sm:$0xff]
    %v3215 = vld [vmem:[#allocation2 + $0x1b8] sm:$0xff]
    %v3216 = vld [vmem:[#allocation2 + $0x1c0] sm:$0xff]
    %v3217 = vld [vmem:[#allocation2 + $0x1c8] sm:$0xff]
    %v3218 = vld [vmem:[#allocation2 + $0x1d0] sm:$0xff]
    %v3219 = vld [vmem:[#allocation2 + $0x1d8] sm:$0xff]
    %v3220 = vld [vmem:[#allocation2 + $0x1e0] sm:$0xff]
    %v3221 = vld [vmem:[#allocation2 + $0x1e8] sm:$0xff]
    %v3222 = vld [vmem:[#allocation2 + $0x1f0] sm:$0xff]
    %v3223 = vld [vmem:[#allocation2 + $0x1f8] sm:$0xff]
    %v3224 = vld [vmem:[%s2] sm:$0x1]
    %v3226 = vlaneseq
    %v3227 = vshrl.u32 %v3226, 7
    %v3228 = vsub.s32 0, %v3227
    %v3229 = vrot.slane %v3224, %v3228
    %v3231 = vadd.f32 %v3160, %v3229
    %v3232 = vadd.f32 %v3161, %v3229
    %v3233 = vadd.f32 %v3162, %v3229
    %v3234 = vadd.f32 %v3163, %v3229
    %v3235 = vadd.f32 %v3164, %v3229
    %v3236 = vadd.f32 %v3165, %v3229
    %v3237 = vadd.f32 %v3166, %v3229
    %v3238 = vadd.f32 %v3167, %v3229
    %v3239 = vadd.f32 %v3168, %v3229
    %v3240 = vadd.f32 %v3169, %v3229
    %v3241 = vadd.f32 %v3170, %v3229
    %v3242 = vadd.f32 %v3171, %v3229
    %v3243 = vadd.f32 %v3172, %v3229
    %v3244 = vadd.f32 %v3173, %v3229
    %v3245 = vadd.f32 %v3174, %v3229
    %v3246 = vadd.f32 %v3175, %v3229
    %v3247 = vadd.f32 %v3176, %v3229
    %v3248 = vadd.f32 %v3177, %v3229
    %v3249 = vadd.f32 %v3178, %v3229
    %v3250 = vadd.f32 %v3179, %v3229
    %v3251 = vadd.f32 %v3180, %v3229
    %v3252 = vadd.f32 %v3181, %v3229
    %v3253 = vadd.f32 %v3182, %v3229
    %v3254 = vadd.f32 %v3183, %v3229
    %v3255 = vadd.f32 %v3184, %v3229
    %v3256 = vadd.f32 %v3185, %v3229
    %v3257 = vadd.f32 %v3186, %v3229
    %v3258 = vadd.f32 %v3187, %v3229
    %v3259 = vadd.f32 %v3188, %v3229
    %v3260 = vadd.f32 %v3189, %v3229
    %v3261 = vadd.f32 %v3190, %v3229
    %v3262 = vadd.f32 %v3191, %v3229
    %v3263 = vadd.f32 %v3192, %v3229
    %v3264 = vadd.f32 %v3193, %v3229
    %v3265 = vadd.f32 %v3194, %v3229
    %v3266 = vadd.f32 %v3195, %v3229
    %v3267 = vadd.f32 %v3196, %v3229
    %v3268 = vadd.f32 %v3197, %v3229
    %v3269 = vadd.f32 %v3198, %v3229
    %v3270 = vadd.f32 %v3199, %v3229
    %v3271 = vadd.f32 %v3200, %v3229
    %v3272 = vadd.f32 %v3201, %v3229
    %v3273 = vadd.f32 %v3202, %v3229
    %v3274 = vadd.f32 %v3203, %v3229
    %v3275 = vadd.f32 %v3204, %v3229
    %v3276 = vadd.f32 %v3205, %v3229
    %v3277 = vadd.f32 %v3206, %v3229
    %v3278 = vadd.f32 %v3207, %v3229
    %v3279 = vadd.f32 %v3208, %v3229
    %v3280 = vadd.f32 %v3209, %v3229
    %v3281 = vadd.f32 %v3210, %v3229
    %v3282 = vadd.f32 %v3211, %v3229
    %v3283 = vadd.f32 %v3212, %v3229
    %v3284 = vadd.f32 %v3213, %v3229
    %v3285 = vadd.f32 %v3214, %v3229
    %v3286 = vadd.f32 %v3215, %v3229
    %v3287 = vadd.f32 %v3216, %v3229
    %v3288 = vadd.f32 %v3217, %v3229
    %v3289 = vadd.f32 %v3218, %v3229
    %v3290 = vadd.f32 %v3219, %v3229
    %v3291 = vadd.f32 %v3220, %v3229
    %v3292 = vadd.f32 %v3221, %v3229
    %v3293 = vadd.f32 %v3222, %v3229
    %v3294 = vadd.f32 %v3223, %v3229
    %v3295 = vmax.f32 %v3231, 0.0
    %v3296 = vmax.f32 %v3232, 0.0
    %v3297 = vmax.f32 %v3233, 0.0
    %v3298 = vmax.f32 %v3234, 0.0
    %v3299 = vmax.f32 %v3235, 0.0
    %v3300 = vmax.f32 %v3236, 0.0
    %v3301 = vmax.f32 %v3237, 0.0
    %v3302 = vmax.f32 %v3238, 0.0
    %v3303 = vmax.f32 %v3239, 0.0
    %v3304 = vmax.f32 %v3240, 0.0
    %v3305 = vmax.f32 %v3241, 0.0
    %v3306 = vmax.f32 %v3242, 0.0
    %v3307 = vmax.f32 %v3243, 0.0
    %v3308 = vmax.f32 %v3244, 0.0
    %v3309 = vmax.f32 %v3245, 0.0
    %v3310 = vmax.f32 %v3246, 0.0
    %v3311 = vmax.f32 %v3247, 0.0
    %v3312 = vmax.f32 %v3248, 0.0
    %v3313 = vmax.f32 %v3249, 0.0
    %v3314 = vmax.f32 %v3250, 0.0
    %v3315 = vmax.f32 %v3251, 0.0
    %v3316 = vmax.f32 %v3252, 0.0
    %v3317 = vmax.f32 %v3253, 0.0
    %v3318 = vmax.f32 %v3254, 0.0
    %v3319 = vmax.f32 %v3255, 0.0
    %v3320 = vmax.f32 %v3256, 0.0
    %v3321 = vmax.f32 %v3257, 0.0
    %v3322 = vmax.f32 %v3258, 0.0
    %v3323 = vmax.f32 %v3259, 0.0
    %v3324 = vmax.f32 %v3260, 0.0
    %v3325 = vmax.f32 %v3261, 0.0
    %v3326 = vmax.f32 %v3262, 0.0
    %v3327 = vmax.f32 %v3263, 0.0
    %v3328 = vmax.f32 %v3264, 0.0
    %v3329 = vmax.f32 %v3265, 0.0
    %v3330 = vmax.f32 %v3266, 0.0
    %v3331 = vmax.f32 %v3267, 0.0
    %v3332 = vmax.f32 %v3268, 0.0
    %v3333 = vmax.f32 %v3269, 0.0
    %v3334 = vmax.f32 %v3270, 0.0
    %v3335 = vmax.f32 %v3271, 0.0
    %v3336 = vmax.f32 %v3272, 0.0
    %v3337 = vmax.f32 %v3273, 0.0
    %v3338 = vmax.f32 %v3274, 0.0
    %v3339 = vmax.f32 %v3275, 0.0
    %v3340 = vmax.f32 %v3276, 0.0
    %v3341 = vmax.f32 %v3277, 0.0
    %v3342 = vmax.f32 %v3278, 0.0
    %v3343 = vmax.f32 %v3279, 0.0
    %v3344 = vmax.f32 %v3280, 0.0
    %v3345 = vmax.f32 %v3281, 0.0
    %v3346 = vmax.f32 %v3282, 0.0
    %v3347 = vmax.f32 %v3283, 0.0
    %v3348 = vmax.f32 %v3284, 0.0
    %v3349 = vmax.f32 %v3285, 0.0
    %v3350 = vmax.f32 %v3286, 0.0
    %v3351 = vmax.f32 %v3287, 0.0
    %v3352 = vmax.f32 %v3288, 0.0
    %v3353 = vmax.f32 %v3289, 0.0
    %v3354 = vmax.f32 %v3290, 0.0
    %v3355 = vmax.f32 %v3291, 0.0
    %v3356 = vmax.f32 %v3292, 0.0
    %v3357 = vmax.f32 %v3293, 0.0
    %v3358 = vmax.f32 %v3294, 0.0
    %v3359 = vpack.c.bf16 %v3296, %v3295
    %v3360 = vpack.c.bf16 %v3298, %v3297
    %v3361 = vpack.c.bf16 %v3300, %v3299
    %v3362 = vpack.c.bf16 %v3302, %v3301
    %v3363 = vpack.c.bf16 %v3304, %v3303
    %v3364 = vpack.c.bf16 %v3306, %v3305
    %v3365 = vpack.c.bf16 %v3308, %v3307
    %v3366 = vpack.c.bf16 %v3310, %v3309
    %v3367 = vpack.c.bf16 %v3312, %v3311
    %v3368 = vpack.c.bf16 %v3314, %v3313
    %v3369 = vpack.c.bf16 %v3316, %v3315
    %v3370 = vpack.c.bf16 %v3318, %v3317
    %v3371 = vpack.c.bf16 %v3320, %v3319
    %v3372 = vpack.c.bf16 %v3322, %v3321
    %v3373 = vpack.c.bf16 %v3324, %v3323
    %v3374 = vpack.c.bf16 %v3326, %v3325
    %v3375 = vpack.c.bf16 %v3328, %v3327
    %v3376 = vpack.c.bf16 %v3330, %v3329
    %v3377 = vpack.c.bf16 %v3332, %v3331
    %v3378 = vpack.c.bf16 %v3334, %v3333
    %v3379 = vpack.c.bf16 %v3336, %v3335
    %v3380 = vpack.c.bf16 %v3338, %v3337
    %v3381 = vpack.c.bf16 %v3340, %v3339
    %v3382 = vpack.c.bf16 %v3342, %v3341
    %v3383 = vpack.c.bf16 %v3344, %v3343
    %v3384 = vpack.c.bf16 %v3346, %v3345
    %v3385 = vpack.c.bf16 %v3348, %v3347
    %v3386 = vpack.c.bf16 %v3350, %v3349
    %v3387 = vpack.c.bf16 %v3352, %v3351
    %v3388 = vpack.c.bf16 %v3354, %v3353
    %v3389 = vpack.c.bf16 %v3356, %v3355
    %v3390 = vpack.c.bf16 %v3358, %v3357
    %v3423 = vunpack.c.l.b16 %v3359
    %v3424 = vunpack.c.h.b16 %v3359
    %v3425 = vunpack.c.l.b16 %v3360
    %v3426 = vunpack.c.h.b16 %v3360
    %v3427 = vunpack.c.l.b16 %v3361
    %v3428 = vunpack.c.h.b16 %v3361
    %v3429 = vunpack.c.l.b16 %v3362
    %v3430 = vunpack.c.h.b16 %v3362
    %v3431 = vunpack.c.l.b16 %v3363
    %v3432 = vunpack.c.h.b16 %v3363
    %v3433 = vunpack.c.l.b16 %v3364
    %v3434 = vunpack.c.h.b16 %v3364
    %v3435 = vunpack.c.l.b16 %v3365
    %v3436 = vunpack.c.h.b16 %v3365
    %v3437 = vunpack.c.l.b16 %v3366
    %v3438 = vunpack.c.h.b16 %v3366
    %v3439 = vunpack.c.l.b16 %v3367
    %v3440 = vunpack.c.h.b16 %v3367
    %v3441 = vunpack.c.l.b16 %v3368
    %v3442 = vunpack.c.h.b16 %v3368
    %v3443 = vunpack.c.l.b16 %v3369
    %v3444 = vunpack.c.h.b16 %v3369
    %v3445 = vunpack.c.l.b16 %v3370
    %v3446 = vunpack.c.h.b16 %v3370
    %v3447 = vunpack.c.l.b16 %v3371
    %v3448 = vunpack.c.h.b16 %v3371
    %v3449 = vunpack.c.l.b16 %v3372
    %v3450 = vunpack.c.h.b16 %v3372
    %v3451 = vunpack.c.l.b16 %v3373
    %v3452 = vunpack.c.h.b16 %v3373
    %v3453 = vunpack.c.l.b16 %v3374
    %v3454 = vunpack.c.h.b16 %v3374
    %v3455 = vunpack.c.l.b16 %v3375
    %v3456 = vunpack.c.h.b16 %v3375
    %v3457 = vunpack.c.l.b16 %v3376
    %v3458 = vunpack.c.h.b16 %v3376
    %v3459 = vunpack.c.l.b16 %v3377
    %v3460 = vunpack.c.h.b16 %v3377
    %v3461 = vunpack.c.l.b16 %v3378
    %v3462 = vunpack.c.h.b16 %v3378
    %v3463 = vunpack.c.l.b16 %v3379
    %v3464 = vunpack.c.h.b16 %v3379
    %v3465 = vunpack.c.l.b16 %v3380
    %v3466 = vunpack.c.h.b16 %v3380
    %v3467 = vunpack.c.l.b16 %v3381
    %v3468 = vunpack.c.h.b16 %v3381
    %v3469 = vunpack.c.l.b16 %v3382
    %v3470 = vunpack.c.h.b16 %v3382
    %v3471 = vunpack.c.l.b16 %v3383
    %v3472 = vunpack.c.h.b16 %v3383
    %v3473 = vunpack.c.l.b16 %v3384
    %v3474 = vunpack.c.h.b16 %v3384
    %v3475 = vunpack.c.l.b16 %v3385
    %v3476 = vunpack.c.h.b16 %v3385
    %v3477 = vunpack.c.l.b16 %v3386
    %v3478 = vunpack.c.h.b16 %v3386
    %v3479 = vunpack.c.l.b16 %v3387
    %v3480 = vunpack.c.h.b16 %v3387
    %v3481 = vunpack.c.l.b16 %v3388
    %v3482 = vunpack.c.h.b16 %v3388
    %v3483 = vunpack.c.l.b16 %v3389
    %v3484 = vunpack.c.h.b16 %v3389
    %v3485 = vunpack.c.l.b16 %v3390
    %v3486 = vunpack.c.h.b16 %v3390
    %v3487 = vpack.c.b16 %v3423, %v3423
    %v3488 = vpack.c.b16 %v3424, %v3424
    %v3489 = vpack.c.b16 %v3425, %v3425
    %v3490 = vpack.c.b16 %v3426, %v3426
    %v3491 = vpack.c.b16 %v3427, %v3427
    %v3492 = vpack.c.b16 %v3428, %v3428
    %v3493 = vpack.c.b16 %v3429, %v3429
    %v3494 = vpack.c.b16 %v3430, %v3430
    %v3495 = vpack.c.b16 %v3431, %v3431
    %v3496 = vpack.c.b16 %v3432, %v3432
    %v3497 = vpack.c.b16 %v3433, %v3433
    %v3498 = vpack.c.b16 %v3434, %v3434
    %v3499 = vpack.c.b16 %v3435, %v3435
    %v3500 = vpack.c.b16 %v3436, %v3436
    %v3501 = vpack.c.b16 %v3437, %v3437
    %v3502 = vpack.c.b16 %v3438, %v3438
    %v3503 = vpack.c.b16 %v3439, %v3439
    %v3504 = vpack.c.b16 %v3440, %v3440
    %v3505 = vpack.c.b16 %v3441, %v3441
    %v3506 = vpack.c.b16 %v3442, %v3442
    %v3507 = vpack.c.b16 %v3443, %v3443
    %v3508 = vpack.c.b16 %v3444, %v3444
    %v3509 = vpack.c.b16 %v3445, %v3445
    %v3510 = vpack.c.b16 %v3446, %v3446
    %v3511 = vpack.c.b16 %v3447, %v3447
    %v3512 = vpack.c.b16 %v3448, %v3448
    %v3513 = vpack.c.b16 %v3449, %v3449
    %v3514 = vpack.c.b16 %v3450, %v3450
    %v3515 = vpack.c.b16 %v3451, %v3451
    %v3516 = vpack.c.b16 %v3452, %v3452
    %v3517 = vpack.c.b16 %v3453, %v3453
    %v3518 = vpack.c.b16 %v3454, %v3454
    %v3519 = vpack.c.b16 %v3455, %v3455
    %v3520 = vpack.c.b16 %v3456, %v3456
    %v3521 = vpack.c.b16 %v3457, %v3457
    %v3522 = vpack.c.b16 %v3458, %v3458
    %v3523 = vpack.c.b16 %v3459, %v3459
    %v3524 = vpack.c.b16 %v3460, %v3460
    %v3525 = vpack.c.b16 %v3461, %v3461
    %v3526 = vpack.c.b16 %v3462, %v3462
    %v3527 = vpack.c.b16 %v3463, %v3463
    %v3528 = vpack.c.b16 %v3464, %v3464
    %v3529 = vpack.c.b16 %v3465, %v3465
    %v3530 = vpack.c.b16 %v3466, %v3466
    %v3531 = vpack.c.b16 %v3467, %v3467
    %v3532 = vpack.c.b16 %v3468, %v3468
    %v3533 = vpack.c.b16 %v3469, %v3469
    %v3534 = vpack.c.b16 %v3470, %v3470
    %v3535 = vpack.c.b16 %v3471, %v3471
    %v3536 = vpack.c.b16 %v3472, %v3472
    %v3537 = vpack.c.b16 %v3473, %v3473
    %v3538 = vpack.c.b16 %v3474, %v3474
    %v3539 = vpack.c.b16 %v3475, %v3475
    %v3540 = vpack.c.b16 %v3476, %v3476
    %v3541 = vpack.c.b16 %v3477, %v3477
    %v3542 = vpack.c.b16 %v3478, %v3478
    %v3543 = vpack.c.b16 %v3479, %v3479
    %v3544 = vpack.c.b16 %v3480, %v3480
    %v3545 = vpack.c.b16 %v3481, %v3481
    %v3546 = vpack.c.b16 %v3482, %v3482
    %v3547 = vpack.c.b16 %v3483, %v3483
    %v3548 = vpack.c.b16 %v3484, %v3484
    %v3549 = vpack.c.b16 %v3485, %v3485
    %v3550 = vpack.c.b16 %v3486, %v3486
    %3615 = vst [vmem:[#allocation3] sm:$0xf] %v3487
    %3616 = vst [vmem:[#allocation3 + $0x4] sm:$0xf] %v3488
    %3617 = vst [vmem:[#allocation3 + $0x8] sm:$0xf] %v3489
    %3618 = vst [vmem:[#allocation3 + $0xc] sm:$0xf] %v3490
    %3619 = vst [vmem:[#allocation3 + $0x10] sm:$0xf] %v3491
    %3620 = vst [vmem:[#allocation3 + $0x14] sm:$0xf] %v3492
    %3621 = vst [vmem:[#allocation3 + $0x18] sm:$0xf] %v3493
    %3622 = vst [vmem:[#allocation3 + $0x1c] sm:$0xf] %v3494
    %3623 = vst [vmem:[#allocation3 + $0x20] sm:$0xf] %v3495
    %3624 = vst [vmem:[#allocation3 + $0x24] sm:$0xf] %v3496
    %3625 = vst [vmem:[#allocation3 + $0x28] sm:$0xf] %v3497
    %3626 = vst [vmem:[#allocation3 + $0x2c] sm:$0xf] %v3498
    %3627 = vst [vmem:[#allocation3 + $0x30] sm:$0xf] %v3499
    %3628 = vst [vmem:[#allocation3 + $0x34] sm:$0xf] %v3500
    %3629 = vst [vmem:[#allocation3 + $0x38] sm:$0xf] %v3501
    %3630 = vst [vmem:[#allocation3 + $0x3c] sm:$0xf] %v3502
    %3631 = vst [vmem:[#allocation3 + $0x40] sm:$0xf] %v3503
    %3632 = vst [vmem:[#allocation3 + $0x44] sm:$0xf] %v3504
    %3633 = vst [vmem:[#allocation3 + $0x48] sm:$0xf] %v3505
    %3634 = vst [vmem:[#allocation3 + $0x4c] sm:$0xf] %v3506
    %3635 = vst [vmem:[#allocation3 + $0x50] sm:$0xf] %v3507
    %3636 = vst [vmem:[#allocation3 + $0x54] sm:$0xf] %v3508
    %3637 = vst [vmem:[#allocation3 + $0x58] sm:$0xf] %v3509
    %3638 = vst [vmem:[#allocation3 + $0x5c] sm:$0xf] %v3510
    %3639 = vst [vmem:[#allocation3 + $0x60] sm:$0xf] %v3511
    %3640 = vst [vmem:[#allocation3 + $0x64] sm:$0xf] %v3512
    %3641 = vst [vmem:[#allocation3 + $0x68] sm:$0xf] %v3513
    %3642 = vst [vmem:[#allocation3 + $0x6c] sm:$0xf] %v3514
    %3643 = vst [vmem:[#allocation3 + $0x70] sm:$0xf] %v3515
    %3644 = vst [vmem:[#allocation3 + $0x74] sm:$0xf] %v3516
    %3645 = vst [vmem:[#allocation3 + $0x78] sm:$0xf] %v3517
    %3646 = vst [vmem:[#allocation3 + $0x7c] sm:$0xf] %v3518
    %3647 = vst [vmem:[#allocation3 + $0x80] sm:$0xf] %v3519
    %3648 = vst [vmem:[#allocation3 + $0x84] sm:$0xf] %v3520
    %3649 = vst [vmem:[#allocation3 + $0x88] sm:$0xf] %v3521
    %3650 = vst [vmem:[#allocation3 + $0x8c] sm:$0xf] %v3522
    %3651 = vst [vmem:[#allocation3 + $0x90] sm:$0xf] %v3523
    %3652 = vst [vmem:[#allocation3 + $0x94] sm:$0xf] %v3524
    %3653 = vst [vmem:[#allocation3 + $0x98] sm:$0xf] %v3525
    %3654 = vst [vmem:[#allocation3 + $0x9c] sm:$0xf] %v3526
    %3655 = vst [vmem:[#allocation3 + $0xa0] sm:$0xf] %v3527
    %3656 = vst [vmem:[#allocation3 + $0xa4] sm:$0xf] %v3528
    %3657 = vst [vmem:[#allocation3 + $0xa8] sm:$0xf] %v3529
    %3658 = vst [vmem:[#allocation3 + $0xac] sm:$0xf] %v3530
    %3659 = vst [vmem:[#allocation3 + $0xb0] sm:$0xf] %v3531
    %3660 = vst [vmem:[#allocation3 + $0xb4] sm:$0xf] %v3532
    %3661 = vst [vmem:[#allocation3 + $0xb8] sm:$0xf] %v3533
    %3662 = vst [vmem:[#allocation3 + $0xbc] sm:$0xf] %v3534
    %3663 = vst [vmem:[#allocation3 + $0xc0] sm:$0xf] %v3535
    %3664 = vst [vmem:[#allocation3 + $0xc4] sm:$0xf] %v3536
    %3665 = vst [vmem:[#allocation3 + $0xc8] sm:$0xf] %v3537
    %3666 = vst [vmem:[#allocation3 + $0xcc] sm:$0xf] %v3538
    %3667 = vst [vmem:[#allocation3 + $0xd0] sm:$0xf] %v3539
    %3668 = vst [vmem:[#allocation3 + $0xd4] sm:$0xf] %v3540
    %3669 = vst [vmem:[#allocation3 + $0xd8] sm:$0xf] %v3541
    %3670 = vst [vmem:[#allocation3 + $0xdc] sm:$0xf] %v3542
    %3671 = vst [vmem:[#allocation3 + $0xe0] sm:$0xf] %v3543
    %3672 = vst [vmem:[#allocation3 + $0xe4] sm:$0xf] %v3544
    %3673 = vst [vmem:[#allocation3 + $0xe8] sm:$0xf] %v3545
    %3674 = vst [vmem:[#allocation3 + $0xec] sm:$0xf] %v3546
    %3675 = vst [vmem:[#allocation3 + $0xf0] sm:$0xf] %v3547
    %3676 = vst [vmem:[#allocation3 + $0xf4] sm:$0xf] %v3548
    %3677 = vst [vmem:[#allocation3 + $0xf8] sm:$0xf] %v3549
    %3678 = vst [vmem:[#allocation3 + $0xfc] sm:$0xf] %v3550
    // Predicated region
    $region14: #{tpu_custom_call.1} parent=1 // pred_check
      _
    $region15: #{tpu_custom_call.1} parent=1 // pred_check_branch
      %3680 = sbr.rel (0) target = $region17
    $region16: #{tpu_custom_call.1} parent=1 // pred_region
      %s3682 = ssub.s32 4096, 4096
      %3683 = vsyncadd [#allocation4], %s3682
      %s3684 = sshll.u32 [#allocation3], 4
      %s3685 = int_to_ptr.vmem [resolvable:$true] %s3684
      %3690 = dma.vmem_to_hbm [thread:$0]  %s3685, 4096, %s3, [#allocation4], 64, 64, 4
    $region17: #{tpu_custom_call.1} parent=1 // pred_fallthru
      _
    // Predicated region
    $region18: #{tpu_custom_call.1} parent=1 // pred_check
      _
    $region19: #{tpu_custom_call.1} parent=1 // pred_check_branch
      %3692 = sbr.rel (0) target = $region21
    $region20: #{tpu_custom_call.1} parent=1 // pred_region
      %3693 = dma.done [#allocation4], 4096
    $region21: #{tpu_custom_call.1} parent=1 // pred_fallthru
      _
    %3694 = vsyncpa [#allocation4], 1

</llo_original>
